<compile_context>
chip_gen: v7x
topology: tpu7x:2x2x1
jax: 0.10.0
libtpu: 0.0.40
codegen_flags: <defaults>
</compile_context>

<pallas_src>
import functools
import math
import numpy as np
import jax
import jax.numpy as jnp
from jax.experimental import pallas as pl
from jax.experimental.pallas import tpu as pltpu

V = 25                     # Shift_gcn hard-codes 25 joints
EPS = 1e-5                 # BatchNorm eps
FPG = 16                   # frames per row-group (row = joint*FPG + frame)
_GROUP = FPG * V           # 400 rows: multiple of the bf16 sublane tile AND of 25 joints
_ROW_ALIGN = _GROUP
_NBITS = 5                 # barrel-shifter stages: joint shifts 0..24 fit in 5 bits
CDT = jnp.bfloat16         # HBM / MXU-operand dtype (accumulation stays f32)

_COMPILER_PARAMS = pltpu.CompilerParams(
    dimension_semantics=("parallel",),
    vmem_limit_bytes=48 * 1024 * 1024,   # below v7x's 64 MiB physical, with headroom
)


# ----------------------------- Pallas kernel --------------------------------

def _vtile(v, reps):
    """Tile a (_GROUP, C) parameter to (reps*_GROUP, C) in-vreg (cheap, block-local)."""
    return v if reps == 1 else jnp.concatenate([v] * reps, axis=0)


def _apply_joint_shift(y, conds, backward):
    """Per-channel roll of FPG*(c % 25) rows within every _GROUP-row group of `y`.

    y: (tm, C) with rows joint-major inside each 400-row group (row = joint*16 + frame),
       so a roll by 16*s rows == a joint shift by s with correct mod-25 wrap.
    conds[b]: (_GROUP, C) bool, bit b of (channel % 25).
    backward=False gathers from joint (i + c) % 25 (shift_in);
    backward=True  gathers from joint (i - c) % 25 (shift_out).
    Uses only sublane-aligned static slices, concatenates and lane selects.
    """
    tm = y.shape[0]
    groups = []
    for q in range(tm // _GROUP):
        yq = y[q * _GROUP:(q + 1) * _GROUP, :]
        for b in range(_NBITS):
            amt = FPG * (1 << b)
            cut = _GROUP - amt if backward else amt
            rolled = jnp.concatenate([yq[cut:, :], yq[:cut, :]], axis=0)
            yq = jnp.where(conds[b], rolled, yq)
        groups.append(yq)
    return groups[0] if len(groups) == 1 else jnp.concatenate(groups, axis=0)


def fused_tcn_gcn_kernel(x_ref, gate_ref, sel_in_ref, sel_out_ref, w_ref,
                         s1_ref, b1_ref, dw_ref, db_ref, tw_ref, tb_ref,
                         b2s_ref, b2b_ref, rw_ref, rb_ref, o_ref):
    tm, cin = x_ref.shape
    cout = o_ref.shape[-1]
    reps = tm // _GROUP

    xb = x_ref[...]                                              # (tm, cin) bf16

    # Shift_gcn.shift_in (per-channel joint roll) + Feature_Mask gate.
    conds_in = [jnp.broadcast_to(sel_in_ref[b:b + 1, :] != 0.0, (_GROUP, cin))
                for b in range(_NBITS)]
    xg = _apply_joint_shift(xb, conds_in, backward=False) * _vtile(gate_ref[...], reps)

    # Joint-wise Linear on the MXU (bf16 x bf16 -> f32 accumulation).
    z = jnp.dot(xg, w_ref[...], preferred_element_type=jnp.float32)

    # Shift_gcn.shift_out, then BatchNorm1d(25*cout) with Linear_bias folded into b1.
    conds_out = [jnp.broadcast_to(sel_out_ref[b:b + 1, :] != 0.0, (_GROUP, cout))
                 for b in range(_NBITS)]
    zs = _apply_joint_shift(z, conds_out, backward=True)
    zb = zs * _vtile(s1_ref[...], reps) + _vtile(b1_ref[...], reps)

    # `down` branch (1x1 conv + BN folded) and the gcn ReLU.
    down = jnp.dot(xb, dw_ref[...], preferred_element_type=jnp.float32) + db_ref[...]
    gact = jnp.maximum(zb + down, 0.0)

    # Shift_tcn: bn (scale folded into tw), temporal shifts (identity at init),
    # temporal_linear, ReLU, bn2.
    h = jnp.dot(gact.astype(CDT), tw_ref[...],
                preferred_element_type=jnp.float32) + tb_ref[...]
    h = jnp.maximum(h, 0.0) * b2s_ref[...] + b2b_ref[...]

    # Residual tcn branch (1x1 conv + BN folded), add, final ReLU.
    res = jnp.dot(xb, rw_ref[...], preferred_element_type=jnp.float32) + rb_ref[...]
    o_ref[...] = jnp.maximum(h + res, 0.0).astype(o_ref.dtype)


# ----------------------------- pallas_call glue -----------------------------

def _rep_spec(a):
    nd = a.ndim
    return pl.BlockSpec(a.shape, lambda i, _z=(0,) * nd: _z)


def _row_target():
    """Bigger tiles on 128-MiB-VMEM parts (v5e/v6e), conservative on v7x."""
    try:
        kind = jax.devices()[0].device_kind.lower()
    except Exception:
        return 1600
    if "v5" in kind or "v6" in kind:
        return 3200
    return 1600


def _pick_block_rows(m, target):
    """Rows per grid step: multiple of 400 dividing m, near `target`, preferring an even
    number of grid steps (balances v7x's two TensorCores)."""
    assert m % _ROW_ALIGN == 0
    target = max(target, _ROW_ALIGN)
    cands = [c for c in range(_ROW_ALIGN, m + 1, _ROW_ALIGN) if m % c == 0]
    even = [c for c in cands if c <= target and (m // c) % 2 == 0]
    if even:
        return max(even)
    fit = [c for c in cands if c <= target]
    return max(fit) if fit else _ROW_ALIGN


def _shift_bit_masks(nchan):
    """(8, nchan) f32; row b holds bit b of (channel % 25) (rows 5..7 are zero pad)."""
    c = np.arange(nchan) % V
    rows = [((c >> b) & 1).astype(np.float32) for b in range(_NBITS)]
    rows += [np.zeros(nchan, np.float32)] * (8 - _NBITS)
    return jnp.asarray(np.stack(rows, axis=0))


def fused_forward(x2d, gate_g, sel_in, sel_out, w, s1_g, b1_g, dw, db,
                  tw, tb, b2s, b2b, rw, rb, *, tm):
    m, cin = x2d.shape
    cout = w.shape[1]
    params = (gate_g, sel_in, sel_out, w, s1_g, b1_g, dw, db, tw, tb, b2s, b2b, rw, rb)
    param_bytes = sum(int(np.prod(a.shape)) * a.dtype.itemsize for a in params)
    cost = pl.CostEstimate(
        flops=2 * m * (3 * cin * cout + cout * cout) + 30 * m * cout,
        transcendentals=0,
        bytes_accessed=2 * m * (cin + cout) + param_bytes)
    return pl.pallas_call(
        fused_tcn_gcn_kernel,
        out_shape=jax.ShapeDtypeStruct((m, cout), CDT),
        grid=(m // tm,),
        in_specs=[pl.BlockSpec((tm, cin), lambda i: (i, 0))]
                 + [_rep_spec(a) for a in params],
        out_specs=pl.BlockSpec((tm, cout), lambda i: (i, 0)),
        compiler_params=_COMPILER_PARAMS,
        cost_estimate=cost,
    )(x2d, *params)


# ----------------------------- parameters -----------------------------------

def init_params(key, cin, cout):
    """Deterministic init following the module's __init__ (shapes & distributions)."""
    k_lin, k_down, k_tl_w, k_tl_b, k_res = jax.random.split(key, 5)
    s_bn = 1.0 / math.sqrt(1.0 + EPS)   # every BN: gamma=1, beta=0, mean=0, var=1

    lin_w = jax.random.normal(k_lin, (cin, cout), jnp.float32) * math.sqrt(1.0 / cout)
    lin_b = jnp.zeros((1, cout), jnp.float32)                    # Linear_bias (const 0)
    fm = jnp.zeros((V, cin), jnp.float32)                        # Feature_Mask (const 0)
    down_w = jax.random.normal(k_down, (cout, cin), jnp.float32) * math.sqrt(2.0 / cout)
    tl_w = jax.random.normal(k_tl_w, (cout, cout), jnp.float32) * math.sqrt(2.0 / cout)
    bound = 1.0 / math.sqrt(cout)
    tl_b = jax.random.uniform(k_tl_b, (cout,), jnp.float32, -bound, bound)
    res_w = jax.random.normal(k_res, (cout, cin), jnp.float32) * math.sqrt(2.0 / cout)

    return dict(
        lin_w=lin_w, lin_b=lin_b, fm=fm,
        g1s=jnp.full((V, cout), s_bn, jnp.float32),              # BatchNorm1d(25*cout)
        g1b=jnp.zeros((V, cout), jnp.float32),
        dw=(down_w.T * s_bn).astype(jnp.float32),                # down conv (+BN folded)
        db=jnp.zeros((1, cout), jnp.float32),
        tw=(tl_w.T * s_bn).astype(jnp.float32),                  # Shift_tcn.bn folded in
        tb=tl_b.reshape(1, cout).astype(jnp.float32),
        b2s=jnp.full((1, cout), s_bn, jnp.float32),              # bn2
        b2b=jnp.zeros((1, cout), jnp.float32),
        rw=(res_w.T * s_bn).astype(jnp.float32),                 # residual tcn (+BN folded)
        rb=jnp.zeros((1, cout), jnp.float32),
    )


def shift_index_tables(cin, cout):
    """Exactly the index arrays built in Shift_gcn.__init__ (reference path only)."""
    idx_in = np.empty(V * cin, dtype=np.int32)
    for i in range(V):
        for j in range(cin):
            idx_in[i * cin + j] = (i * cin + j + j * cin) % (cin * V)
    idx_out = np.empty(V * cout, dtype=np.int32)
    for i in range(V):
        for j in range(cout):
            idx_out[i * cout + j] = (i * cout + j - j * cout) % (cout * V)
    return jnp.asarray(idx_in), jnp.asarray(idx_out)


# ----------------------------- forward ---------------------------------------

@functools.partial(jax.jit, static_argnames=("use_pallas",))
def tcn_gcn_unit_forward(x0, p, use_pallas=True):
    n, cin, t, v = x0.shape
    cout = p["lin_w"].shape[1]
    nt = n * t

    # Shared folded / bf16-cast parameters (both paths use identical operands).
    gate = (jnp.tanh(p["fm"]) + 1.0).astype(CDT)                 # (V, cin)
    w_b = p["lin_w"].astype(CDT)
    dw_b = p["dw"].astype(CDT)
    tw_b = p["tw"].astype(CDT)
    rw_b = p["rw"].astype(CDT)
    x_nvc = jnp.transpose(x0, (0, 2, 3, 1)).reshape(nt, v, cin).astype(CDT)

    if not use_pallas:  # pure-JAX reference with matching bf16 cast points
        idx_in, idx_out = shift_index_tables(cin, cout)
        xg = jnp.take(x_nvc.reshape(nt, v * cin), idx_in, axis=1).reshape(nt, v, cin)
        xg = xg * gate
        z = jnp.dot(xg.reshape(nt * v, cin), w_b,
                    preferred_element_type=jnp.float32) + p["lin_b"]
        z = jnp.take(z.reshape(nt, v * cout), idx_out, axis=1).reshape(nt, v, cout)
        zb = (z * p["g1s"] + p["g1b"]).reshape(nt * v, cout)
        x2 = x_nvc.reshape(nt * v, cin)
        down = jnp.dot(x2, dw_b, preferred_element_type=jnp.float32) + p["db"]
        g = jnp.maximum(zb + down, 0.0)
        h = jnp.dot(g.astype(CDT), tw_b, preferred_element_type=jnp.float32) + p["tb"]
        h = jnp.maximum(h, 0.0) * p["b2s"] + p["b2b"]
        res = jnp.dot(x2, rw_b, preferred_element_type=jnp.float32) + p["rb"]
        y2d = jnp.maximum(h + res, 0.0).astype(jnp.float32)
        return jnp.transpose(y2d.reshape(n, t, v, cout), (0, 3, 1, 2))

    # --- Pallas path: joint-major row permutation inside 400-row groups ---------
    pad = (-nt) % FPG
    ntp = nt + pad
    xq = jnp.pad(x_nvc, ((0, pad), (0, 0), (0, 0))) if pad else x_nvc
    # rows: (group, joint, frame) with frame fastest  ->  row = joint*16 + frame
    x2d = xq.reshape(ntp // FPG, FPG, v, cin).transpose(0, 2, 1, 3).reshape(ntp * v, cin)
    m = ntp * v
    tm = _pick_block_rows(m, _row_target())

    gate_g = jnp.repeat(gate, FPG, axis=0)                       # (400, cin)  bf16
    s1_g = jnp.repeat(p["g1s"], FPG, axis=0)                     # (400, cout) f32
    b1_fold = p["g1s"] * p["lin_b"] + p["g1b"]                   # Linear_bias folded
    b1_g = jnp.repeat(b1_fold, FPG, axis=0)
    sel_in = _shift_bit_masks(cin)                               # (8, cin)
    sel_out = _shift_bit_masks(cout)                             # (8, cout)

    out2d = fused_forward(x2d, gate_g, sel_in, sel_out, w_b, s1_g, b1_g,
                          dw_b, p["db"], tw_b, p["tb"], p["b2s"], p["b2b"],
                          rw_b, p["rb"], tm=tm)

    # undo the joint-major permutation, trim padding, back to NCHW f32
    y = out2d.reshape(ntp // FPG, v, FPG, cout).transpose(0, 2, 1, 3).reshape(ntp, v, cout)
    y = y[:nt].astype(jnp.float32).reshape(n, t, v, cout)
    return jnp.transpose(y, (0, 3, 1, 2))


if __name__ == "__main__":
    N, Cin, T, Cout = 2, 4, 16, 8
    key = jax.random.PRNGKey(0)
    kx, kp = jax.random.split(key)
    x = jax.random.normal(kx, (N, Cin, T, V), jnp.float32)
    params = init_params(kp, Cin, Cout)

    out = jax.block_until_ready(tcn_gcn_unit_forward(x, params, use_pallas=True))
    ref = jax.block_until_ready(tcn_gcn_unit_forward(x, params, use_pallas=False))

    assert out.shape == (N, Cout, T, V)
    np.testing.assert_allclose(np.asarray(out), np.asarray(ref), rtol=2e-2, atol=2e-2)
    print("KERNEL_OK")
</pallas_src>

<mosaic_0001>
module attributes {stable_mosaic.version = 11 : i64} {
  func.func @fused_tcn_gcn_kernel(%arg0: i32, %arg1: memref<400x4xbf16, #tpu.memory_space<vmem>>, %arg2: memref<400x4xbf16, #tpu.memory_space<vmem>>, %arg3: memref<8x4xf32, #tpu.memory_space<vmem>>, %arg4: memref<8x8xf32, #tpu.memory_space<vmem>>, %arg5: memref<4x8xbf16, #tpu.memory_space<vmem>>, %arg6: memref<400x8xf32, #tpu.memory_space<vmem>>, %arg7: memref<400x8xf32, #tpu.memory_space<vmem>>, %arg8: memref<4x8xbf16, #tpu.memory_space<vmem>>, %arg9: memref<1x8xf32, #tpu.memory_space<vmem>>, %arg10: memref<8x8xbf16, #tpu.memory_space<vmem>>, %arg11: memref<1x8xf32, #tpu.memory_space<vmem>>, %arg12: memref<1x8xf32, #tpu.memory_space<vmem>>, %arg13: memref<1x8xf32, #tpu.memory_space<vmem>>, %arg14: memref<4x8xbf16, #tpu.memory_space<vmem>>, %arg15: memref<1x8xf32, #tpu.memory_space<vmem>>, %arg16: memref<400x8xbf16, #tpu.memory_space<vmem>>) attributes {dimension_semantics = [#tpu.dimension_semantics<parallel>], iteration_bounds = array<i64: 2>, scalar_prefetch = 0 : i64, scratch_operands = 0 : i64, tpu.core_type = #tpu.core_type<tc>, window_params = [{transform_indices = @transform_0, window_bounds = array<i64: 400, 4>}, {pipeline_mode = #tpu.pipeline_mode<synchronous>, transform_indices = @transform_1, window_bounds = array<i64: 400, 4>}, {pipeline_mode = #tpu.pipeline_mode<synchronous>, transform_indices = @transform_2, window_bounds = array<i64: 8, 4>}, {pipeline_mode = #tpu.pipeline_mode<synchronous>, transform_indices = @transform_3, window_bounds = array<i64: 8, 8>}, {pipeline_mode = #tpu.pipeline_mode<synchronous>, transform_indices = @transform_4, window_bounds = array<i64: 4, 8>}, {pipeline_mode = #tpu.pipeline_mode<synchronous>, transform_indices = @transform_5, window_bounds = array<i64: 400, 8>}, {pipeline_mode = #tpu.pipeline_mode<synchronous>, transform_indices = @transform_6, window_bounds = array<i64: 400, 8>}, {pipeline_mode = #tpu.pipeline_mode<synchronous>, transform_indices = @transform_7, window_bounds = array<i64: 4, 8>}, {pipeline_mode = #tpu.pipeline_mode<synchronous>, transform_indices = @transform_8, window_bounds = array<i64: 1, 8>}, {pipeline_mode = #tpu.pipeline_mode<synchronous>, transform_indices = @transform_9, window_bounds = array<i64: 8, 8>}, {pipeline_mode = #tpu.pipeline_mode<synchronous>, transform_indices = @transform_10, window_bounds = array<i64: 1, 8>}, {pipeline_mode = #tpu.pipeline_mode<synchronous>, transform_indices = @transform_11, window_bounds = array<i64: 1, 8>}, {pipeline_mode = #tpu.pipeline_mode<synchronous>, transform_indices = @transform_12, window_bounds = array<i64: 1, 8>}, {pipeline_mode = #tpu.pipeline_mode<synchronous>, transform_indices = @transform_13, window_bounds = array<i64: 4, 8>}, {pipeline_mode = #tpu.pipeline_mode<synchronous>, transform_indices = @transform_14, window_bounds = array<i64: 1, 8>}, {transform_indices = @transform_15, window_bounds = array<i64: 400, 8>}]} {
    %c0 = arith.constant 0 : index
    %c0_0 = arith.constant 0 : index
    %0 = vector.load %arg1[%c0, %c0_0] : memref<400x4xbf16, #tpu.memory_space<vmem>>, vector<400x4xbf16>
    %c0_1 = arith.constant 0 : index
    %c0_2 = arith.constant 0 : index
    %1 = vector.load %arg3[%c0_1, %c0_2] : memref<8x4xf32, #tpu.memory_space<vmem>>, vector<1x4xf32>
    %cst = arith.constant 0.000000e+00 : f32
    %2 = vector.broadcast %cst : f32 to vector<1x4xf32>
    %3 = arith.cmpf one, %1, %2 : vector<1x4xf32>
    %4 = vector.shape_cast %3 : vector<1x4xi1> to vector<1x4xi1>
    %5 = vector.broadcast %4 : vector<1x4xi1> to vector<400x4xi1>
    %c1 = arith.constant 1 : index
    %c0_3 = arith.constant 0 : index
    %6 = vector.load %arg3[%c1, %c0_3] : memref<8x4xf32, #tpu.memory_space<vmem>>, vector<1x4xf32>
    %cst_4 = arith.constant 0.000000e+00 : f32
    %7 = vector.broadcast %cst_4 : f32 to vector<1x4xf32>
    %8 = arith.cmpf one, %6, %7 : vector<1x4xf32>
    %9 = vector.shape_cast %8 : vector<1x4xi1> to vector<1x4xi1>
    %10 = vector.broadcast %9 : vector<1x4xi1> to vector<400x4xi1>
    %c2 = arith.constant 2 : index
    %c0_5 = arith.constant 0 : index
    %11 = vector.load %arg3[%c2, %c0_5] : memref<8x4xf32, #tpu.memory_space<vmem>>, vector<1x4xf32>
    %cst_6 = arith.constant 0.000000e+00 : f32
    %12 = vector.broadcast %cst_6 : f32 to vector<1x4xf32>
    %13 = arith.cmpf one, %11, %12 : vector<1x4xf32>
    %14 = vector.shape_cast %13 : vector<1x4xi1> to vector<1x4xi1>
    %15 = vector.broadcast %14 : vector<1x4xi1> to vector<400x4xi1>
    %c3 = arith.constant 3 : index
    %c0_7 = arith.constant 0 : index
    %16 = vector.load %arg3[%c3, %c0_7] : memref<8x4xf32, #tpu.memory_space<vmem>>, vector<1x4xf32>
    %cst_8 = arith.constant 0.000000e+00 : f32
    %17 = vector.broadcast %cst_8 : f32 to vector<1x4xf32>
    %18 = arith.cmpf one, %16, %17 : vector<1x4xf32>
    %19 = vector.shape_cast %18 : vector<1x4xi1> to vector<1x4xi1>
    %20 = vector.broadcast %19 : vector<1x4xi1> to vector<400x4xi1>
    %c4 = arith.constant 4 : index
    %c0_9 = arith.constant 0 : index
    %21 = vector.load %arg3[%c4, %c0_9] : memref<8x4xf32, #tpu.memory_space<vmem>>, vector<1x4xf32>
    %cst_10 = arith.constant 0.000000e+00 : f32
    %22 = vector.broadcast %cst_10 : f32 to vector<1x4xf32>
    %23 = arith.cmpf one, %21, %22 : vector<1x4xf32>
    %24 = vector.shape_cast %23 : vector<1x4xi1> to vector<1x4xi1>
    %25 = vector.broadcast %24 : vector<1x4xi1> to vector<400x4xi1>
    %26 = vector.extract_strided_slice %0 {offsets = [16, 0], sizes = [384, 4], strides = [1, 1]} : vector<400x4xbf16> to vector<384x4xbf16>
    %27 = vector.extract_strided_slice %0 {offsets = [0, 0], sizes = [16, 4], strides = [1, 1]} : vector<400x4xbf16> to vector<16x4xbf16>
    %28 = tpu.concatenate %26, %27 in 0 : vector<384x4xbf16>, vector<16x4xbf16> -> vector<400x4xbf16>
    %29 = arith.select %5, %28, %0 : vector<400x4xi1>, vector<400x4xbf16>
    %30 = vector.extract_strided_slice %29 {offsets = [32, 0], sizes = [368, 4], strides = [1, 1]} : vector<400x4xbf16> to vector<368x4xbf16>
    %31 = vector.extract_strided_slice %29 {offsets = [0, 0], sizes = [32, 4], strides = [1, 1]} : vector<400x4xbf16> to vector<32x4xbf16>
    %32 = tpu.concatenate %30, %31 in 0 : vector<368x4xbf16>, vector<32x4xbf16> -> vector<400x4xbf16>
    %33 = arith.select %10, %32, %29 : vector<400x4xi1>, vector<400x4xbf16>
    %34 = vector.extract_strided_slice %33 {offsets = [64, 0], sizes = [336, 4], strides = [1, 1]} : vector<400x4xbf16> to vector<336x4xbf16>
    %35 = vector.extract_strided_slice %33 {offsets = [0, 0], sizes = [64, 4], strides = [1, 1]} : vector<400x4xbf16> to vector<64x4xbf16>
    %36 = tpu.concatenate %34, %35 in 0 : vector<336x4xbf16>, vector<64x4xbf16> -> vector<400x4xbf16>
    %37 = arith.select %15, %36, %33 : vector<400x4xi1>, vector<400x4xbf16>
    %38 = vector.extract_strided_slice %37 {offsets = [128, 0], sizes = [272, 4], strides = [1, 1]} : vector<400x4xbf16> to vector<272x4xbf16>
    %39 = vector.extract_strided_slice %37 {offsets = [0, 0], sizes = [128, 4], strides = [1, 1]} : vector<400x4xbf16> to vector<128x4xbf16>
    %40 = tpu.concatenate %38, %39 in 0 : vector<272x4xbf16>, vector<128x4xbf16> -> vector<400x4xbf16>
    %41 = arith.select %20, %40, %37 : vector<400x4xi1>, vector<400x4xbf16>
    %42 = vector.extract_strided_slice %41 {offsets = [256, 0], sizes = [144, 4], strides = [1, 1]} : vector<400x4xbf16> to vector<144x4xbf16>
    %43 = vector.extract_strided_slice %41 {offsets = [0, 0], sizes = [256, 4], strides = [1, 1]} : vector<400x4xbf16> to vector<256x4xbf16>
    %44 = tpu.concatenate %42, %43 in 0 : vector<144x4xbf16>, vector<256x4xbf16> -> vector<400x4xbf16>
    %45 = arith.select %25, %44, %41 : vector<400x4xi1>, vector<400x4xbf16>
    %c0_11 = arith.constant 0 : index
    %c0_12 = arith.constant 0 : index
    %46 = vector.load %arg2[%c0_11, %c0_12] : memref<400x4xbf16, #tpu.memory_space<vmem>>, vector<400x4xbf16>
    %47 = arith.mulf %45, %46 : vector<400x4xbf16>
    %c0_13 = arith.constant 0 : index
    %c0_14 = arith.constant 0 : index
    %48 = vector.load %arg5[%c0_13, %c0_14] : memref<4x8xbf16, #tpu.memory_space<vmem>>, vector<4x8xbf16>
    %cst_15 = arith.constant dense<0.000000e+00> : vector<400x8xf32>
    %49 = tpu.matmul %47, %48, %cst_15 {dimension_numbers = #tpu.dot_dimension_numbers<[1], [0], [0], [1], [0, 0, 1, 1], [], []>} : vector<400x4xbf16>, vector<4x8xbf16>, vector<400x8xf32> -> vector<400x8xf32>
    %c0_16 = arith.constant 0 : index
    %c0_17 = arith.constant 0 : index
    %50 = vector.load %arg4[%c0_16, %c0_17] : memref<8x8xf32, #tpu.memory_space<vmem>>, vector<1x8xf32>
    %cst_18 = arith.constant 0.000000e+00 : f32
    %51 = vector.broadcast %cst_18 : f32 to vector<1x8xf32>
    %52 = arith.cmpf one, %50, %51 : vector<1x8xf32>
    %53 = vector.shape_cast %52 : vector<1x8xi1> to vector<1x8xi1>
    %54 = vector.broadcast %53 : vector<1x8xi1> to vector<400x8xi1>
    %c1_19 = arith.constant 1 : index
    %c0_20 = arith.constant 0 : index
    %55 = vector.load %arg4[%c1_19, %c0_20] : memref<8x8xf32, #tpu.memory_space<vmem>>, vector<1x8xf32>
    %cst_21 = arith.constant 0.000000e+00 : f32
    %56 = vector.broadcast %cst_21 : f32 to vector<1x8xf32>
    %57 = arith.cmpf one, %55, %56 : vector<1x8xf32>
    %58 = vector.shape_cast %57 : vector<1x8xi1> to vector<1x8xi1>
    %59 = vector.broadcast %58 : vector<1x8xi1> to vector<400x8xi1>
    %c2_22 = arith.constant 2 : index
    %c0_23 = arith.constant 0 : index
    %60 = vector.load %arg4[%c2_22, %c0_23] : memref<8x8xf32, #tpu.memory_space<vmem>>, vector<1x8xf32>
    %cst_24 = arith.constant 0.000000e+00 : f32
    %61 = vector.broadcast %cst_24 : f32 to vector<1x8xf32>
    %62 = arith.cmpf one, %60, %61 : vector<1x8xf32>
    %63 = vector.shape_cast %62 : vector<1x8xi1> to vector<1x8xi1>
    %64 = vector.broadcast %63 : vector<1x8xi1> to vector<400x8xi1>
    %c3_25 = arith.constant 3 : index
    %c0_26 = arith.constant 0 : index
    %65 = vector.load %arg4[%c3_25, %c0_26] : memref<8x8xf32, #tpu.memory_space<vmem>>, vector<1x8xf32>
    %cst_27 = arith.constant 0.000000e+00 : f32
    %66 = vector.broadcast %cst_27 : f32 to vector<1x8xf32>
    %67 = arith.cmpf one, %65, %66 : vector<1x8xf32>
    %68 = vector.shape_cast %67 : vector<1x8xi1> to vector<1x8xi1>
    %69 = vector.broadcast %68 : vector<1x8xi1> to vector<400x8xi1>
    %c4_28 = arith.constant 4 : index
    %c0_29 = arith.constant 0 : index
    %70 = vector.load %arg4[%c4_28, %c0_29] : memref<8x8xf32, #tpu.memory_space<vmem>>, vector<1x8xf32>
    %cst_30 = arith.constant 0.000000e+00 : f32
    %71 = vector.broadcast %cst_30 : f32 to vector<1x8xf32>
    %72 = arith.cmpf one, %70, %71 : vector<1x8xf32>
    %73 = vector.shape_cast %72 : vector<1x8xi1> to vector<1x8xi1>
    %74 = vector.broadcast %73 : vector<1x8xi1> to vector<400x8xi1>
    %75 = vector.extract_strided_slice %49 {offsets = [384, 0], sizes = [16, 8], strides = [1, 1]} : vector<400x8xf32> to vector<16x8xf32>
    %76 = vector.extract_strided_slice %49 {offsets = [0, 0], sizes = [384, 8], strides = [1, 1]} : vector<400x8xf32> to vector<384x8xf32>
    %77 = tpu.concatenate %75, %76 in 0 : vector<16x8xf32>, vector<384x8xf32> -> vector<400x8xf32>
    %78 = arith.select %54, %77, %49 : vector<400x8xi1>, vector<400x8xf32>
    %79 = vector.extract_strided_slice %78 {offsets = [368, 0], sizes = [32, 8], strides = [1, 1]} : vector<400x8xf32> to vector<32x8xf32>
    %80 = vector.extract_strided_slice %78 {offsets = [0, 0], sizes = [368, 8], strides = [1, 1]} : vector<400x8xf32> to vector<368x8xf32>
    %81 = tpu.concatenate %79, %80 in 0 : vector<32x8xf32>, vector<368x8xf32> -> vector<400x8xf32>
    %82 = arith.select %59, %81, %78 : vector<400x8xi1>, vector<400x8xf32>
    %83 = vector.extract_strided_slice %82 {offsets = [336, 0], sizes = [64, 8], strides = [1, 1]} : vector<400x8xf32> to vector<64x8xf32>
    %84 = vector.extract_strided_slice %82 {offsets = [0, 0], sizes = [336, 8], strides = [1, 1]} : vector<400x8xf32> to vector<336x8xf32>
    %85 = tpu.concatenate %83, %84 in 0 : vector<64x8xf32>, vector<336x8xf32> -> vector<400x8xf32>
    %86 = arith.select %64, %85, %82 : vector<400x8xi1>, vector<400x8xf32>
    %87 = vector.extract_strided_slice %86 {offsets = [272, 0], sizes = [128, 8], strides = [1, 1]} : vector<400x8xf32> to vector<128x8xf32>
    %88 = vector.extract_strided_slice %86 {offsets = [0, 0], sizes = [272, 8], strides = [1, 1]} : vector<400x8xf32> to vector<272x8xf32>
    %89 = tpu.concatenate %87, %88 in 0 : vector<128x8xf32>, vector<272x8xf32> -> vector<400x8xf32>
    %90 = arith.select %69, %89, %86 : vector<400x8xi1>, vector<400x8xf32>
    %91 = vector.extract_strided_slice %90 {offsets = [144, 0], sizes = [256, 8], strides = [1, 1]} : vector<400x8xf32> to vector<256x8xf32>
    %92 = vector.extract_strided_slice %90 {offsets = [0, 0], sizes = [144, 8], strides = [1, 1]} : vector<400x8xf32> to vector<144x8xf32>
    %93 = tpu.concatenate %91, %92 in 0 : vector<256x8xf32>, vector<144x8xf32> -> vector<400x8xf32>
    %94 = arith.select %74, %93, %90 : vector<400x8xi1>, vector<400x8xf32>
    %c0_31 = arith.constant 0 : index
    %c0_32 = arith.constant 0 : index
    %95 = vector.load %arg6[%c0_31, %c0_32] : memref<400x8xf32, #tpu.memory_space<vmem>>, vector<400x8xf32>
    %96 = arith.mulf %94, %95 : vector<400x8xf32>
    %c0_33 = arith.constant 0 : index
    %c0_34 = arith.constant 0 : index
    %97 = vector.load %arg7[%c0_33, %c0_34] : memref<400x8xf32, #tpu.memory_space<vmem>>, vector<400x8xf32>
    %98 = arith.addf %96, %97 : vector<400x8xf32>
    %c0_35 = arith.constant 0 : index
    %c0_36 = arith.constant 0 : index
    %99 = vector.load %arg8[%c0_35, %c0_36] : memref<4x8xbf16, #tpu.memory_space<vmem>>, vector<4x8xbf16>
    %cst_37 = arith.constant dense<0.000000e+00> : vector<400x8xf32>
    %100 = tpu.matmul %0, %99, %cst_37 {dimension_numbers = #tpu.dot_dimension_numbers<[1], [0], [0], [1], [0, 0, 1, 1], [], []>} : vector<400x4xbf16>, vector<4x8xbf16>, vector<400x8xf32> -> vector<400x8xf32>
    %c0_38 = arith.constant 0 : index
    %c0_39 = arith.constant 0 : index
    %101 = vector.load %arg9[%c0_38, %c0_39] : memref<1x8xf32, #tpu.memory_space<vmem>>, vector<1x8xf32>
    %102 = vector.broadcast %101 : vector<1x8xf32> to vector<400x8xf32>
    %103 = arith.addf %100, %102 : vector<400x8xf32>
    %104 = arith.addf %98, %103 : vector<400x8xf32>
    %cst_40 = arith.constant 0.000000e+00 : f32
    %105 = vector.broadcast %cst_40 : f32 to vector<400x8xf32>
    %106 = arith.maximumf %104, %105 : vector<400x8xf32>
    %107 = arith.truncf %106 : vector<400x8xf32> to vector<400x8xbf16>
    %c0_41 = arith.constant 0 : index
    %c0_42 = arith.constant 0 : index
    %108 = vector.load %arg10[%c0_41, %c0_42] : memref<8x8xbf16, #tpu.memory_space<vmem>>, vector<8x8xbf16>
    %cst_43 = arith.constant dense<0.000000e+00> : vector<400x8xf32>
    %109 = tpu.matmul %107, %108, %cst_43 {dimension_numbers = #tpu.dot_dimension_numbers<[1], [0], [0], [1], [0, 0, 1, 1], [], []>} : vector<400x8xbf16>, vector<8x8xbf16>, vector<400x8xf32> -> vector<400x8xf32>
    %c0_44 = arith.constant 0 : index
    %c0_45 = arith.constant 0 : index
    %110 = vector.load %arg11[%c0_44, %c0_45] : memref<1x8xf32, #tpu.memory_space<vmem>>, vector<1x8xf32>
    %111 = vector.broadcast %110 : vector<1x8xf32> to vector<400x8xf32>
    %112 = arith.addf %109, %111 : vector<400x8xf32>
    %cst_46 = arith.constant 0.000000e+00 : f32
    %113 = vector.broadcast %cst_46 : f32 to vector<400x8xf32>
    %114 = arith.maximumf %112, %113 : vector<400x8xf32>
    %c0_47 = arith.constant 0 : index
    %c0_48 = arith.constant 0 : index
    %115 = vector.load %arg12[%c0_47, %c0_48] : memref<1x8xf32, #tpu.memory_space<vmem>>, vector<1x8xf32>
    %116 = vector.broadcast %115 : vector<1x8xf32> to vector<400x8xf32>
    %117 = arith.mulf %114, %116 : vector<400x8xf32>
    %c0_49 = arith.constant 0 : index
    %c0_50 = arith.constant 0 : index
    %118 = vector.load %arg13[%c0_49, %c0_50] : memref<1x8xf32, #tpu.memory_space<vmem>>, vector<1x8xf32>
    %119 = vector.broadcast %118 : vector<1x8xf32> to vector<400x8xf32>
    %120 = arith.addf %117, %119 : vector<400x8xf32>
    %c0_51 = arith.constant 0 : index
    %c0_52 = arith.constant 0 : index
    %121 = vector.load %arg14[%c0_51, %c0_52] : memref<4x8xbf16, #tpu.memory_space<vmem>>, vector<4x8xbf16>
    %cst_53 = arith.constant dense<0.000000e+00> : vector<400x8xf32>
    %122 = tpu.matmul %0, %121, %cst_53 {dimension_numbers = #tpu.dot_dimension_numbers<[1], [0], [0], [1], [0, 0, 1, 1], [], []>} : vector<400x4xbf16>, vector<4x8xbf16>, vector<400x8xf32> -> vector<400x8xf32>
    %c0_54 = arith.constant 0 : index
    %c0_55 = arith.constant 0 : index
    %123 = vector.load %arg15[%c0_54, %c0_55] : memref<1x8xf32, #tpu.memory_space<vmem>>, vector<1x8xf32>
    %124 = vector.broadcast %123 : vector<1x8xf32> to vector<400x8xf32>
    %125 = arith.addf %122, %124 : vector<400x8xf32>
    %126 = arith.addf %120, %125 : vector<400x8xf32>
    %cst_56 = arith.constant 0.000000e+00 : f32
    %127 = vector.broadcast %cst_56 : f32 to vector<400x8xf32>
    %128 = arith.maximumf %126, %127 : vector<400x8xf32>
    %129 = arith.truncf %128 : vector<400x8xf32> to vector<400x8xbf16>
    %c0_57 = arith.constant 0 : index
    %c0_58 = arith.constant 0 : index
    %130 = vector.load %arg16[%c0_57, %c0_58] : memref<400x8xbf16, #tpu.memory_space<vmem>>, vector<400x8xbf16>
    tpu.vector_store %arg16[%c0_57, %c0_58], %129 {strides = array<i32>} : memref<400x8xbf16, #tpu.memory_space<vmem>>, vector<400x8xbf16>,
    return
  }
  func.func @transform_0(%arg0: i32) -> (i32, i32) {
    %c0_i32 = arith.constant 0 : i32
    %c0_i32_0 = arith.constant 0 : i32
    return %arg0, %c0_i32 : i32, i32
  }
  func.func @transform_1(%arg0: i32) -> (i32, i32) {
    %c0_i32 = arith.constant 0 : i32
    %c0_i32_0 = arith.constant 0 : i32
    %c0_i32_1 = arith.constant 0 : i32
    return %c0_i32, %c0_i32_0 : i32, i32
  }
  func.func @transform_2(%arg0: i32) -> (i32, i32) {
    %c0_i32 = arith.constant 0 : i32
    %c0_i32_0 = arith.constant 0 : i32
    %c0_i32_1 = arith.constant 0 : i32
    return %c0_i32, %c0_i32_0 : i32, i32
  }
  func.func @transform_3(%arg0: i32) -> (i32, i32) {
    %c0_i32 = arith.constant 0 : i32
    %c0_i32_0 = arith.constant 0 : i32
    %c0_i32_1 = arith.constant 0 : i32
    return %c0_i32, %c0_i32_0 : i32, i32
  }
  func.func @transform_4(%arg0: i32) -> (i32, i32) {
    %c0_i32 = arith.constant 0 : i32
    %c0_i32_0 = arith.constant 0 : i32
    %c0_i32_1 = arith.constant 0 : i32
    return %c0_i32, %c0_i32_0 : i32, i32
  }
  func.func @transform_5(%arg0: i32) -> (i32, i32) {
    %c0_i32 = arith.constant 0 : i32
    %c0_i32_0 = arith.constant 0 : i32
    %c0_i32_1 = arith.constant 0 : i32
    return %c0_i32, %c0_i32_0 : i32, i32
  }
  func.func @transform_6(%arg0: i32) -> (i32, i32) {
    %c0_i32 = arith.constant 0 : i32
    %c0_i32_0 = arith.constant 0 : i32
    %c0_i32_1 = arith.constant 0 : i32
    return %c0_i32, %c0_i32_0 : i32, i32
  }
  func.func @transform_7(%arg0: i32) -> (i32, i32) {
    %c0_i32 = arith.constant 0 : i32
    %c0_i32_0 = arith.constant 0 : i32
    %c0_i32_1 = arith.constant 0 : i32
    return %c0_i32, %c0_i32_0 : i32, i32
  }
  func.func @transform_8(%arg0: i32) -> (i32, i32) {
    %c0_i32 = arith.constant 0 : i32
    %c0_i32_0 = arith.constant 0 : i32
    %c0_i32_1 = arith.constant 0 : i32
    return %c0_i32, %c0_i32_0 : i32, i32
  }
  func.func @transform_9(%arg0: i32) -> (i32, i32) {
    %c0_i32 = arith.constant 0 : i32
    %c0_i32_0 = arith.constant 0 : i32
    %c0_i32_1 = arith.constant 0 : i32
    return %c0_i32, %c0_i32_0 : i32, i32
  }
  func.func @transform_10(%arg0: i32) -> (i32, i32) {
    %c0_i32 = arith.constant 0 : i32
    %c0_i32_0 = arith.constant 0 : i32
    %c0_i32_1 = arith.constant 0 : i32
    return %c0_i32, %c0_i32_0 : i32, i32
  }
  func.func @transform_11(%arg0: i32) -> (i32, i32) {
    %c0_i32 = arith.constant 0 : i32
    %c0_i32_0 = arith.constant 0 : i32
    %c0_i32_1 = arith.constant 0 : i32
    return %c0_i32, %c0_i32_0 : i32, i32
  }
  func.func @transform_12(%arg0: i32) -> (i32, i32) {
    %c0_i32 = arith.constant 0 : i32
    %c0_i32_0 = arith.constant 0 : i32
    %c0_i32_1 = arith.constant 0 : i32
    return %c0_i32, %c0_i32_0 : i32, i32
  }
  func.func @transform_13(%arg0: i32) -> (i32, i32) {
    %c0_i32 = arith.constant 0 : i32
    %c0_i32_0 = arith.constant 0 : i32
    %c0_i32_1 = arith.constant 0 : i32
    return %c0_i32, %c0_i32_0 : i32, i32
  }
  func.func @transform_14(%arg0: i32) -> (i32, i32) {
    %c0_i32 = arith.constant 0 : i32
    %c0_i32_0 = arith.constant 0 : i32
    %c0_i32_1 = arith.constant 0 : i32
    return %c0_i32, %c0_i32_0 : i32, i32
  }
  func.func @transform_15(%arg0: i32) -> (i32, i32) {
    %c0_i32 = arith.constant 0 : i32
    %c0_i32_0 = arith.constant 0 : i32
    return %arg0, %c0_i32 : i32, i32
  }
}

</mosaic_0001>

<llo_original>
// kernel: tcn_gcn_unit_forward.1
$region0: #{tcn_gcn_unit_forward.1}
  #allocation0 [shape = 'u32[]', space=smem, size = 0x4, offset = 0x4, fixed_abs, tag = 'smem constant byte address 0x4 - core index']
  #allocation1 [shape = 'u32[144,128]{1,0:T(1,128)}', space=vmem, size = 0x12000, scoped, tag = 'internal scratch']
  %s0 = inlined_call_operand.vmem [shape: bf16[800,4], index: 0, kind: input, shape index: {}]
  %s1 = inlined_call_operand.vmem [shape: bf16[400,4], index: 1, kind: input, shape index: {}]
  %s2 = inlined_call_operand.vmem [shape: f32[8,4], index: 2, kind: input, shape index: {}]
  %s3 = inlined_call_operand.vmem [shape: f32[8,8], index: 3, kind: input, shape index: {}]
  %s4 = inlined_call_operand.vmem [shape: bf16[4,8], index: 4, kind: input, shape index: {}]
  %s5 = inlined_call_operand.vmem [shape: f32[400,8], index: 5, kind: input, shape index: {}]
  %s6 = inlined_call_operand.vmem [shape: f32[400,8], index: 6, kind: input, shape index: {}]
  %s7 = inlined_call_operand.vmem [shape: bf16[4,8], index: 7, kind: input, shape index: {}]
  %s8 = inlined_call_operand.vmem [shape: f32[1,8], index: 8, kind: input, shape index: {}]
  %s9 = inlined_call_operand.vmem [shape: bf16[8,8], index: 9, kind: input, shape index: {}]
  %s10 = inlined_call_operand.vmem [shape: f32[1,8], index: 10, kind: input, shape index: {}]
  %s11 = inlined_call_operand.vmem [shape: f32[1,8], index: 11, kind: input, shape index: {}]
  %s12 = inlined_call_operand.vmem [shape: f32[1,8], index: 12, kind: input, shape index: {}]
  %s13 = inlined_call_operand.vmem [shape: bf16[4,8], index: 13, kind: input, shape index: {}]
  %s14 = inlined_call_operand.vmem [shape: f32[1,8], index: 14, kind: input, shape index: {}]
  %s15 = inlined_call_operand.vmem [shape: bf16[800,8], index: 15, kind: output, shape index: {}]
  %s16 = sld [smem:[#allocation0]]
  $region93: #{tcn_gcn_unit_forward.1} parent=0
    _
  %s18 = ssub.s32 1, %s16
  %s19 = scalar_select 0, %s18, %s16
  loop: start=0, step=1, limit=4
  $region2: #{tcn_gcn_unit_forward.1} parent=0 // loop_pre_header
    _
  $region3: #{tcn_gcn_unit_forward.1} parent=0 // loop_header
    %s21 = sphi 0, %s25
    %p22 = scmp.ge.s32.totalorder %s21, 4
    %s31 = sphi 0, %s33
    %s34 = sphi 0, %s31
    %s35 = sphi 0, %s34
    %s51 = sphi 0, %s35
    %s55 = sphi 0, %s55
    %s57 = sphi 0, %s55
    %s58 = sphi 0, %s57
    %s72 = sphi 0, %s58
    %s76 = sphi 0, %s76
    %s78 = sphi 0, %s76
    %s79 = sphi 0, %s78
    %s93 = sphi 0, %s79
    %s97 = sphi 0, %s97
    %s99 = sphi 0, %s97
    %s100 = sphi 0, %s99
    %s114 = sphi 0, %s100
    %s118 = sphi 0, %s118
    %s120 = sphi 0, %s118
    %s121 = sphi 0, %s120
    %s135 = sphi 0, %s121
    %s139 = sphi 0, %s139
    %s141 = sphi 0, %s139
    %s142 = sphi 0, %s141
    %s156 = sphi 0, %s142
    %s160 = sphi 0, %s160
    %s162 = sphi 0, %s160
    %s163 = sphi 0, %s162
    %s177 = sphi 0, %s163
    %s181 = sphi 0, %s181
    %s183 = sphi 0, %s181
    %s184 = sphi 0, %s183
    %s198 = sphi 0, %s184
    %s202 = sphi 0, %s202
    %s204 = sphi 0, %s202
    %s205 = sphi 0, %s204
    %s219 = sphi 0, %s205
    %s223 = sphi 0, %s223
    %s225 = sphi 0, %s223
    %s226 = sphi 0, %s225
    %s240 = sphi 0, %s226
    %s244 = sphi 0, %s244
    %s246 = sphi 0, %s244
    %s247 = sphi 0, %s246
    %s261 = sphi 0, %s247
    %s265 = sphi 0, %s265
    %s267 = sphi 0, %s265
    %s268 = sphi 0, %s267
    %s282 = sphi 0, %s268
    %s286 = sphi 0, %s286
    %s288 = sphi 0, %s286
    %s289 = sphi 0, %s288
    %s303 = sphi 0, %s289
    %s307 = sphi 0, %s307
    %s309 = sphi 0, %s307
    %s310 = sphi 0, %s309
    %s324 = sphi 0, %s310
    %s328 = sphi 0, %s328
    %s330 = sphi 0, %s328
    %s331 = sphi 0, %s330
    %s345 = sphi 0, %s331
    %s351 = sphi 0, %s353
    %s354 = sphi 0, %s351
    %s355 = sphi 0, %s354
    %s371 = sphi 0, %s355
  $region4: #{tcn_gcn_unit_forward.1} parent=0 // loop_header_branch
    %24 = sbr.rel (%p22) target = $region8
  $region5: #{tcn_gcn_unit_forward.1} parent=0 // loop_body
    %s26 = ssub.s32 %s21, 1
    %s27 = ssub.s32 %s21, 2
    %s28 = sadd.s32 %s21, 1
    %s29 = ssub.s32 %s21, %s28
    %p30 = scmp.eq.s32.totalorder %s29, 0
    %s32 = sadd.s32 %s31, 1
    %s33 = scalar_select %p30, %s31, %s32
    %p36 = pneg %p30
    %p37 = scmp.eq.s32.totalorder %s21, 1
    %p38 = por %p36, %p37
    %p39 = scmp.ne.s32.totalorder %s31, %s34
    %p40 = scmp.eq.s32.totalorder %s21, 0
    %p41 = por %p39, %p40
    %p42 = scmp.ne.s32.totalorder %s31, %s34
    %p43 = scmp.eq.s32.totalorder %s26, 1
    %p44 = por %p42, %p43
    %p45 = scmp.ne.s32.totalorder %s34, %s35
    %p46 = scmp.eq.s32.totalorder %s26, 0
    %p47 = por %p45, %p46
    %p48 = scmp.ne.s32.totalorder %s34, %s35
    %p49 = scmp.eq.s32.totalorder %s27, 1
    %p50 = por %p48, %p49
    %p52 = scmp.ne.s32.totalorder %s35, %s51
    %p53 = scmp.eq.s32.totalorder %s27, 0
    %p54 = por %p52, %p53
    %s56 = sadd.s32 %s55, 1
    %p59 = scmp.eq.s32.totalorder %s21, 1
    %p60 = scmp.ne.s32.totalorder %s55, %s57
    %p61 = scmp.eq.s32.totalorder %s21, 0
    %p62 = por %p60, %p61
    %p63 = scmp.ne.s32.totalorder %s55, %s57
    %p64 = scmp.eq.s32.totalorder %s26, 1
    %p65 = por %p63, %p64
    %p66 = scmp.ne.s32.totalorder %s57, %s58
    %p67 = scmp.eq.s32.totalorder %s26, 0
    %p68 = por %p66, %p67
    %p69 = scmp.ne.s32.totalorder %s57, %s58
    %p70 = scmp.eq.s32.totalorder %s27, 1
    %p71 = por %p69, %p70
    %p73 = scmp.ne.s32.totalorder %s58, %s72
    %p74 = scmp.eq.s32.totalorder %s27, 0
    %p75 = por %p73, %p74
    %s77 = sadd.s32 %s76, 1
    %p80 = scmp.eq.s32.totalorder %s21, 1
    %p81 = scmp.ne.s32.totalorder %s76, %s78
    %p82 = scmp.eq.s32.totalorder %s21, 0
    %p83 = por %p81, %p82
    %p84 = scmp.ne.s32.totalorder %s76, %s78
    %p85 = scmp.eq.s32.totalorder %s26, 1
    %p86 = por %p84, %p85
    %p87 = scmp.ne.s32.totalorder %s78, %s79
    %p88 = scmp.eq.s32.totalorder %s26, 0
    %p89 = por %p87, %p88
    %p90 = scmp.ne.s32.totalorder %s78, %s79
    %p91 = scmp.eq.s32.totalorder %s27, 1
    %p92 = por %p90, %p91
    %p94 = scmp.ne.s32.totalorder %s79, %s93
    %p95 = scmp.eq.s32.totalorder %s27, 0
    %p96 = por %p94, %p95
    %s98 = sadd.s32 %s97, 1
    %p101 = scmp.eq.s32.totalorder %s21, 1
    %p102 = scmp.ne.s32.totalorder %s97, %s99
    %p103 = scmp.eq.s32.totalorder %s21, 0
    %p104 = por %p102, %p103
    %p105 = scmp.ne.s32.totalorder %s97, %s99
    %p106 = scmp.eq.s32.totalorder %s26, 1
    %p107 = por %p105, %p106
    %p108 = scmp.ne.s32.totalorder %s99, %s100
    %p109 = scmp.eq.s32.totalorder %s26, 0
    %p110 = por %p108, %p109
    %p111 = scmp.ne.s32.totalorder %s99, %s100
    %p112 = scmp.eq.s32.totalorder %s27, 1
    %p113 = por %p111, %p112
    %p115 = scmp.ne.s32.totalorder %s100, %s114
    %p116 = scmp.eq.s32.totalorder %s27, 0
    %p117 = por %p115, %p116
    %s119 = sadd.s32 %s118, 1
    %p122 = scmp.eq.s32.totalorder %s21, 1
    %p123 = scmp.ne.s32.totalorder %s118, %s120
    %p124 = scmp.eq.s32.totalorder %s21, 0
    %p125 = por %p123, %p124
    %p126 = scmp.ne.s32.totalorder %s118, %s120
    %p127 = scmp.eq.s32.totalorder %s26, 1
    %p128 = por %p126, %p127
    %p129 = scmp.ne.s32.totalorder %s120, %s121
    %p130 = scmp.eq.s32.totalorder %s26, 0
    %p131 = por %p129, %p130
    %p132 = scmp.ne.s32.totalorder %s120, %s121
    %p133 = scmp.eq.s32.totalorder %s27, 1
    %p134 = por %p132, %p133
    %p136 = scmp.ne.s32.totalorder %s121, %s135
    %p137 = scmp.eq.s32.totalorder %s27, 0
    %p138 = por %p136, %p137
    %s140 = sadd.s32 %s139, 1
    %p143 = scmp.eq.s32.totalorder %s21, 1
    %p144 = scmp.ne.s32.totalorder %s139, %s141
    %p145 = scmp.eq.s32.totalorder %s21, 0
    %p146 = por %p144, %p145
    %p147 = scmp.ne.s32.totalorder %s139, %s141
    %p148 = scmp.eq.s32.totalorder %s26, 1
    %p149 = por %p147, %p148
    %p150 = scmp.ne.s32.totalorder %s141, %s142
    %p151 = scmp.eq.s32.totalorder %s26, 0
    %p152 = por %p150, %p151
    %p153 = scmp.ne.s32.totalorder %s141, %s142
    %p154 = scmp.eq.s32.totalorder %s27, 1
    %p155 = por %p153, %p154
    %p157 = scmp.ne.s32.totalorder %s142, %s156
    %p158 = scmp.eq.s32.totalorder %s27, 0
    %p159 = por %p157, %p158
    %s161 = sadd.s32 %s160, 1
    %p164 = scmp.eq.s32.totalorder %s21, 1
    %p165 = scmp.ne.s32.totalorder %s160, %s162
    %p166 = scmp.eq.s32.totalorder %s21, 0
    %p167 = por %p165, %p166
    %p168 = scmp.ne.s32.totalorder %s160, %s162
    %p169 = scmp.eq.s32.totalorder %s26, 1
    %p170 = por %p168, %p169
    %p171 = scmp.ne.s32.totalorder %s162, %s163
    %p172 = scmp.eq.s32.totalorder %s26, 0
    %p173 = por %p171, %p172
    %p174 = scmp.ne.s32.totalorder %s162, %s163
    %p175 = scmp.eq.s32.totalorder %s27, 1
    %p176 = por %p174, %p175
    %p178 = scmp.ne.s32.totalorder %s163, %s177
    %p179 = scmp.eq.s32.totalorder %s27, 0
    %p180 = por %p178, %p179
    %s182 = sadd.s32 %s181, 1
    %p185 = scmp.eq.s32.totalorder %s21, 1
    %p186 = scmp.ne.s32.totalorder %s181, %s183
    %p187 = scmp.eq.s32.totalorder %s21, 0
    %p188 = por %p186, %p187
    %p189 = scmp.ne.s32.totalorder %s181, %s183
    %p190 = scmp.eq.s32.totalorder %s26, 1
    %p191 = por %p189, %p190
    %p192 = scmp.ne.s32.totalorder %s183, %s184
    %p193 = scmp.eq.s32.totalorder %s26, 0
    %p194 = por %p192, %p193
    %p195 = scmp.ne.s32.totalorder %s183, %s184
    %p196 = scmp.eq.s32.totalorder %s27, 1
    %p197 = por %p195, %p196
    %p199 = scmp.ne.s32.totalorder %s184, %s198
    %p200 = scmp.eq.s32.totalorder %s27, 0
    %p201 = por %p199, %p200
    %s203 = sadd.s32 %s202, 1
    %p206 = scmp.eq.s32.totalorder %s21, 1
    %p207 = scmp.ne.s32.totalorder %s202, %s204
    %p208 = scmp.eq.s32.totalorder %s21, 0
    %p209 = por %p207, %p208
    %p210 = scmp.ne.s32.totalorder %s202, %s204
    %p211 = scmp.eq.s32.totalorder %s26, 1
    %p212 = por %p210, %p211
    %p213 = scmp.ne.s32.totalorder %s204, %s205
    %p214 = scmp.eq.s32.totalorder %s26, 0
    %p215 = por %p213, %p214
    %p216 = scmp.ne.s32.totalorder %s204, %s205
    %p217 = scmp.eq.s32.totalorder %s27, 1
    %p218 = por %p216, %p217
    %p220 = scmp.ne.s32.totalorder %s205, %s219
    %p221 = scmp.eq.s32.totalorder %s27, 0
    %p222 = por %p220, %p221
    %s224 = sadd.s32 %s223, 1
    %p227 = scmp.eq.s32.totalorder %s21, 1
    %p228 = scmp.ne.s32.totalorder %s223, %s225
    %p229 = scmp.eq.s32.totalorder %s21, 0
    %p230 = por %p228, %p229
    %p231 = scmp.ne.s32.totalorder %s223, %s225
    %p232 = scmp.eq.s32.totalorder %s26, 1
    %p233 = por %p231, %p232
    %p234 = scmp.ne.s32.totalorder %s225, %s226
    %p235 = scmp.eq.s32.totalorder %s26, 0
    %p236 = por %p234, %p235
    %p237 = scmp.ne.s32.totalorder %s225, %s226
    %p238 = scmp.eq.s32.totalorder %s27, 1
    %p239 = por %p237, %p238
    %p241 = scmp.ne.s32.totalorder %s226, %s240
    %p242 = scmp.eq.s32.totalorder %s27, 0
    %p243 = por %p241, %p242
    %s245 = sadd.s32 %s244, 1
    %p248 = scmp.eq.s32.totalorder %s21, 1
    %p249 = scmp.ne.s32.totalorder %s244, %s246
    %p250 = scmp.eq.s32.totalorder %s21, 0
    %p251 = por %p249, %p250
    %p252 = scmp.ne.s32.totalorder %s244, %s246
    %p253 = scmp.eq.s32.totalorder %s26, 1
    %p254 = por %p252, %p253
    %p255 = scmp.ne.s32.totalorder %s246, %s247
    %p256 = scmp.eq.s32.totalorder %s26, 0
    %p257 = por %p255, %p256
    %p258 = scmp.ne.s32.totalorder %s246, %s247
    %p259 = scmp.eq.s32.totalorder %s27, 1
    %p260 = por %p258, %p259
    %p262 = scmp.ne.s32.totalorder %s247, %s261
    %p263 = scmp.eq.s32.totalorder %s27, 0
    %p264 = por %p262, %p263
    %s266 = sadd.s32 %s265, 1
    %p269 = scmp.eq.s32.totalorder %s21, 1
    %p270 = scmp.ne.s32.totalorder %s265, %s267
    %p271 = scmp.eq.s32.totalorder %s21, 0
    %p272 = por %p270, %p271
    %p273 = scmp.ne.s32.totalorder %s265, %s267
    %p274 = scmp.eq.s32.totalorder %s26, 1
    %p275 = por %p273, %p274
    %p276 = scmp.ne.s32.totalorder %s267, %s268
    %p277 = scmp.eq.s32.totalorder %s26, 0
    %p278 = por %p276, %p277
    %p279 = scmp.ne.s32.totalorder %s267, %s268
    %p280 = scmp.eq.s32.totalorder %s27, 1
    %p281 = por %p279, %p280
    %p283 = scmp.ne.s32.totalorder %s268, %s282
    %p284 = scmp.eq.s32.totalorder %s27, 0
    %p285 = por %p283, %p284
    %s287 = sadd.s32 %s286, 1
    %p290 = scmp.eq.s32.totalorder %s21, 1
    %p291 = scmp.ne.s32.totalorder %s286, %s288
    %p292 = scmp.eq.s32.totalorder %s21, 0
    %p293 = por %p291, %p292
    %p294 = scmp.ne.s32.totalorder %s286, %s288
    %p295 = scmp.eq.s32.totalorder %s26, 1
    %p296 = por %p294, %p295
    %p297 = scmp.ne.s32.totalorder %s288, %s289
    %p298 = scmp.eq.s32.totalorder %s26, 0
    %p299 = por %p297, %p298
    %p300 = scmp.ne.s32.totalorder %s288, %s289
    %p301 = scmp.eq.s32.totalorder %s27, 1
    %p302 = por %p300, %p301
    %p304 = scmp.ne.s32.totalorder %s289, %s303
    %p305 = scmp.eq.s32.totalorder %s27, 0
    %p306 = por %p304, %p305
    %s308 = sadd.s32 %s307, 1
    %p311 = scmp.eq.s32.totalorder %s21, 1
    %p312 = scmp.ne.s32.totalorder %s307, %s309
    %p313 = scmp.eq.s32.totalorder %s21, 0
    %p314 = por %p312, %p313
    %p315 = scmp.ne.s32.totalorder %s307, %s309
    %p316 = scmp.eq.s32.totalorder %s26, 1
    %p317 = por %p315, %p316
    %p318 = scmp.ne.s32.totalorder %s309, %s310
    %p319 = scmp.eq.s32.totalorder %s26, 0
    %p320 = por %p318, %p319
    %p321 = scmp.ne.s32.totalorder %s309, %s310
    %p322 = scmp.eq.s32.totalorder %s27, 1
    %p323 = por %p321, %p322
    %p325 = scmp.ne.s32.totalorder %s310, %s324
    %p326 = scmp.eq.s32.totalorder %s27, 0
    %p327 = por %p325, %p326
    %s329 = sadd.s32 %s328, 1
    %p332 = scmp.eq.s32.totalorder %s21, 1
    %p333 = scmp.ne.s32.totalorder %s328, %s330
    %p334 = scmp.eq.s32.totalorder %s21, 0
    %p335 = por %p333, %p334
    %p336 = scmp.ne.s32.totalorder %s328, %s330
    %p337 = scmp.eq.s32.totalorder %s26, 1
    %p338 = por %p336, %p337
    %p339 = scmp.ne.s32.totalorder %s330, %s331
    %p340 = scmp.eq.s32.totalorder %s26, 0
    %p341 = por %p339, %p340
    %p342 = scmp.ne.s32.totalorder %s330, %s331
    %p343 = scmp.eq.s32.totalorder %s27, 1
    %p344 = por %p342, %p343
    %p346 = scmp.ne.s32.totalorder %s331, %s345
    %p347 = scmp.eq.s32.totalorder %s27, 0
    %p348 = por %p346, %p347
    %s349 = ssub.s32 %s21, %s28
    %p350 = scmp.eq.s32.totalorder %s349, 0
    %s352 = sadd.s32 %s351, 1
    %s353 = scalar_select %p350, %s351, %s352
    %p356 = pneg %p350
    %p357 = scmp.eq.s32.totalorder %s21, 1
    %p358 = por %p356, %p357
    %p359 = scmp.ne.s32.totalorder %s351, %s354
    %p360 = scmp.eq.s32.totalorder %s21, 0
    %p361 = por %p359, %p360
    %p362 = scmp.ne.s32.totalorder %s351, %s354
    %p363 = scmp.eq.s32.totalorder %s26, 1
    %p364 = por %p362, %p363
    %p365 = scmp.ne.s32.totalorder %s354, %s355
    %p366 = scmp.eq.s32.totalorder %s26, 0
    %p367 = por %p365, %p366
    %p368 = scmp.ne.s32.totalorder %s354, %s355
    %p369 = scmp.eq.s32.totalorder %s27, 1
    %p370 = por %p368, %p369
    %p372 = scmp.ne.s32.totalorder %s355, %s371
    %p373 = scmp.eq.s32.totalorder %s27, 0
    %p374 = por %p372, %p373
    %p375 = scmp.le.s32.totalorder 1, %s21
    %p376 = scmp.lt.s32.totalorder %s21, 3
    %p377 = pnand %p375, %p376
    %p378 = pneg %p377
    // Predicated region
    $region9: #{tcn_gcn_unit_forward.1} parent=5 // pred_check
      _
    $region10: #{tcn_gcn_unit_forward.1} parent=5 // pred_check_branch
      %380 = sbr.rel (%p377) target = $region12
    $region11: #{tcn_gcn_unit_forward.1} parent=5 // pred_region
      %s381 = ssub.s32 %s21, 1
      // Predicated region
      $region13: #{tcn_gcn_unit_forward.1} parent=11 // pred_check
        %p382 = pneg %p68
      $region14: #{tcn_gcn_unit_forward.1} parent=11 // pred_check_branch
        %384 = sbr.rel (%p382) target = $region16
      $region15: #{tcn_gcn_unit_forward.1} parent=11 // pred_region
        _
      $region16: #{tcn_gcn_unit_forward.1} parent=11 // pred_fallthru
        _
      // Predicated region
      $region17: #{tcn_gcn_unit_forward.1} parent=11 // pred_check
        %p385 = pneg %p89
      $region18: #{tcn_gcn_unit_forward.1} parent=11 // pred_check_branch
        %387 = sbr.rel (%p385) target = $region20
      $region19: #{tcn_gcn_unit_forward.1} parent=11 // pred_region
        _
      $region20: #{tcn_gcn_unit_forward.1} parent=11 // pred_fallthru
        _
      // Predicated region
      $region21: #{tcn_gcn_unit_forward.1} parent=11 // pred_check
        %p388 = pneg %p110
      $region22: #{tcn_gcn_unit_forward.1} parent=11 // pred_check_branch
        %390 = sbr.rel (%p388) target = $region24
      $region23: #{tcn_gcn_unit_forward.1} parent=11 // pred_region
        _
      $region24: #{tcn_gcn_unit_forward.1} parent=11 // pred_fallthru
        _
      // Predicated region
      $region25: #{tcn_gcn_unit_forward.1} parent=11 // pred_check
        %p391 = pneg %p131
      $region26: #{tcn_gcn_unit_forward.1} parent=11 // pred_check_branch
        %393 = sbr.rel (%p391) target = $region28
      $region27: #{tcn_gcn_unit_forward.1} parent=11 // pred_region
        _
      $region28: #{tcn_gcn_unit_forward.1} parent=11 // pred_fallthru
        _
      // Predicated region
      $region29: #{tcn_gcn_unit_forward.1} parent=11 // pred_check
        %p394 = pneg %p152
      $region30: #{tcn_gcn_unit_forward.1} parent=11 // pred_check_branch
        %396 = sbr.rel (%p394) target = $region32
      $region31: #{tcn_gcn_unit_forward.1} parent=11 // pred_region
        _
      $region32: #{tcn_gcn_unit_forward.1} parent=11 // pred_fallthru
        _
      // Predicated region
      $region33: #{tcn_gcn_unit_forward.1} parent=11 // pred_check
        %p397 = pneg %p173
      $region34: #{tcn_gcn_unit_forward.1} parent=11 // pred_check_branch
        %399 = sbr.rel (%p397) target = $region36
      $region35: #{tcn_gcn_unit_forward.1} parent=11 // pred_region
        _
      $region36: #{tcn_gcn_unit_forward.1} parent=11 // pred_fallthru
        _
      // Predicated region
      $region37: #{tcn_gcn_unit_forward.1} parent=11 // pred_check
        %p400 = pneg %p194
      $region38: #{tcn_gcn_unit_forward.1} parent=11 // pred_check_branch
        %402 = sbr.rel (%p400) target = $region40
      $region39: #{tcn_gcn_unit_forward.1} parent=11 // pred_region
        _
      $region40: #{tcn_gcn_unit_forward.1} parent=11 // pred_fallthru
        _
      // Predicated region
      $region41: #{tcn_gcn_unit_forward.1} parent=11 // pred_check
        %p403 = pneg %p215
      $region42: #{tcn_gcn_unit_forward.1} parent=11 // pred_check_branch
        %405 = sbr.rel (%p403) target = $region44
      $region43: #{tcn_gcn_unit_forward.1} parent=11 // pred_region
        _
      $region44: #{tcn_gcn_unit_forward.1} parent=11 // pred_fallthru
        _
      // Predicated region
      $region45: #{tcn_gcn_unit_forward.1} parent=11 // pred_check
        %p406 = pneg %p236
      $region46: #{tcn_gcn_unit_forward.1} parent=11 // pred_check_branch
        %408 = sbr.rel (%p406) target = $region48
      $region47: #{tcn_gcn_unit_forward.1} parent=11 // pred_region
        _
      $region48: #{tcn_gcn_unit_forward.1} parent=11 // pred_fallthru
        _
      // Predicated region
      $region49: #{tcn_gcn_unit_forward.1} parent=11 // pred_check
        %p409 = pneg %p257
      $region50: #{tcn_gcn_unit_forward.1} parent=11 // pred_check_branch
        %411 = sbr.rel (%p409) target = $region52
      $region51: #{tcn_gcn_unit_forward.1} parent=11 // pred_region
        _
      $region52: #{tcn_gcn_unit_forward.1} parent=11 // pred_fallthru
        _
      // Predicated region
      $region53: #{tcn_gcn_unit_forward.1} parent=11 // pred_check
        %p412 = pneg %p278
      $region54: #{tcn_gcn_unit_forward.1} parent=11 // pred_check_branch
        %414 = sbr.rel (%p412) target = $region56
      $region55: #{tcn_gcn_unit_forward.1} parent=11 // pred_region
        _
      $region56: #{tcn_gcn_unit_forward.1} parent=11 // pred_fallthru
        _
      // Predicated region
      $region57: #{tcn_gcn_unit_forward.1} parent=11 // pred_check
        %p415 = pneg %p299
      $region58: #{tcn_gcn_unit_forward.1} parent=11 // pred_check_branch
        %417 = sbr.rel (%p415) target = $region60
      $region59: #{tcn_gcn_unit_forward.1} parent=11 // pred_region
        _
      $region60: #{tcn_gcn_unit_forward.1} parent=11 // pred_fallthru
        _
      // Predicated region
      $region61: #{tcn_gcn_unit_forward.1} parent=11 // pred_check
        %p418 = pneg %p320
      $region62: #{tcn_gcn_unit_forward.1} parent=11 // pred_check_branch
        %420 = sbr.rel (%p418) target = $region64
      $region63: #{tcn_gcn_unit_forward.1} parent=11 // pred_region
        _
      $region64: #{tcn_gcn_unit_forward.1} parent=11 // pred_fallthru
        _
      // Predicated region
      $region65: #{tcn_gcn_unit_forward.1} parent=11 // pred_check
        %p421 = pneg %p341
      $region66: #{tcn_gcn_unit_forward.1} parent=11 // pred_check_branch
        %423 = sbr.rel (%p421) target = $region68
      $region67: #{tcn_gcn_unit_forward.1} parent=11 // pred_region
        _
      $region68: #{tcn_gcn_unit_forward.1} parent=11 // pred_fallthru
        _
    $region12: #{tcn_gcn_unit_forward.1} parent=5 // pred_fallthru
      _
    %p424 = scmp.lt.s32.totalorder %s21, 2
    // Predicated region
    $region69: #{tcn_gcn_unit_forward.1} parent=5 // pred_check
      %p425 = pneg %p424
    $region70: #{tcn_gcn_unit_forward.1} parent=5 // pred_check_branch
      %427 = sbr.rel (%p425) target = $region72
    $region71: #{tcn_gcn_unit_forward.1} parent=5 // pred_region
      // Predicated region
      $region73: #{tcn_gcn_unit_forward.1} parent=71 // pred_check
        %p428 = pneg %p41
      $region74: #{tcn_gcn_unit_forward.1} parent=71 // pred_check_branch
        %430 = sbr.rel (%p428) target = $region76
      $region75: #{tcn_gcn_unit_forward.1} parent=71 // pred_region
        %s431 = smul.u32 50, %s21
        %p432 = scmp.lt.s32.totalorder %s431, 99
        %s433 = scalar_select %p432, %s431, 99
        %s434 = smul.addr %s433, 4
        %s435 = scalar_lea.vmem %s0, %s434
        %s436 = smul.u32 50, %s21
      $region76: #{tcn_gcn_unit_forward.1} parent=71 // pred_fallthru
        _
    $region72: #{tcn_gcn_unit_forward.1} parent=5 // pred_fallthru
      _
    %p437 = scmp.le.s32.totalorder 1, %s21
    %p438 = scmp.lt.s32.totalorder %s21, 3
    %p439 = pnand %p437, %p438
    %p440 = pneg %p439
    // Predicated region
    $region77: #{tcn_gcn_unit_forward.1} parent=5 // pred_check
      _
    $region78: #{tcn_gcn_unit_forward.1} parent=5 // pred_check_branch
      %442 = sbr.rel (%p439) target = $region80
    $region79: #{tcn_gcn_unit_forward.1} parent=5 // pred_region
      %s443 = ssub.s32 %s21, 1
      %s444 = smul.u32 50, %s26
      %p445 = scmp.lt.s32.totalorder %s444, 99
      %s446 = scalar_select %p445, %s444, 99
      %s447 = smul.addr %s446, 4
      %s448 = scalar_lea.vmem %s0, %s447
      %p449 = pneg %p47
      %p450 = pneg %p44
      %p451 = pneg %p68
      %p452 = pneg %p65
      %p453 = pneg %p89
      %p454 = pneg %p86
      %p455 = pneg %p110
      %p456 = pneg %p107
      %p457 = pneg %p131
      %p458 = pneg %p128
      %p459 = pneg %p152
      %p460 = pneg %p149
      %p461 = pneg %p173
      %p462 = pneg %p170
      %p463 = pneg %p194
      %p464 = pneg %p191
      %p465 = pneg %p215
      %p466 = pneg %p212
      %p467 = pneg %p236
      %p468 = pneg %p233
      %p469 = pneg %p257
      %p470 = pneg %p254
      %p471 = pneg %p278
      %p472 = pneg %p275
      %p473 = pneg %p299
      %p474 = pneg %p296
      %p475 = pneg %p320
      %p476 = pneg %p317
      %p477 = pneg %p341
      %p478 = pneg %p338
      %p479 = pneg %p367
      %p480 = pneg %p364
      %s481 = smul.u32 50, %s26
      %p482 = scmp.lt.s32.totalorder %s481, 99
      %s483 = scalar_select %p482, %s481, 99
      %s484 = smul.addr %s483, 4
      %s485 = scalar_lea.vmem %s15, %s484
      %s486 = smul.u32 50, %s26
      %p487 = scmp.lt.s32.totalorder %s486, 99
      %s488 = scalar_select %p487, %s486, 99
      %s489 = smul.addr %s488, 4
      %s490 = scalar_lea.vmem %s0, %s489
      %s491 = smul.u32 50, %s26
      %s492 = smul.u32 50, %s26
      %p493 = scmp.lt.s32.totalorder %s492, 99
      %s494 = scalar_select %p493, %s492, 99
      %s495 = smul.addr %s494, 4
      %s496 = scalar_lea.vmem %s15, %s495
      %s497 = smul.u32 50, %s26
      %v501 = vld [vmem:[%s490] sm:$0xf]
      %v502 = vld [vmem:[%s490 + $0x4] sm:$0xf]
      %v503 = vld [vmem:[%s490 + $0x8] sm:$0xf]
      %v504 = vld [vmem:[%s490 + $0xc] sm:$0xf]
      %v505 = vld [vmem:[%s490 + $0x10] sm:$0xf]
      %v506 = vld [vmem:[%s490 + $0x14] sm:$0xf]
      %v507 = vld [vmem:[%s490 + $0x18] sm:$0xf]
      %v508 = vld [vmem:[%s490 + $0x1c] sm:$0xf]
      %v509 = vld [vmem:[%s490 + $0x20] sm:$0xf]
      %v510 = vld [vmem:[%s490 + $0x24] sm:$0xf]
      %v511 = vld [vmem:[%s490 + $0x28] sm:$0xf]
      %v512 = vld [vmem:[%s490 + $0x2c] sm:$0xf]
      %v513 = vld [vmem:[%s490 + $0x30] sm:$0xf]
      %v514 = vld [vmem:[%s490 + $0x34] sm:$0xf]
      %v515 = vld [vmem:[%s490 + $0x38] sm:$0xf]
      %v516 = vld [vmem:[%s490 + $0x3c] sm:$0xf]
      %v517 = vld [vmem:[%s490 + $0x40] sm:$0xf]
      %v518 = vld [vmem:[%s490 + $0x44] sm:$0xf]
      %v519 = vld [vmem:[%s490 + $0x48] sm:$0xf]
      %v520 = vld [vmem:[%s490 + $0x4c] sm:$0xf]
      %v521 = vld [vmem:[%s490 + $0x50] sm:$0xf]
      %v522 = vld [vmem:[%s490 + $0x54] sm:$0xf]
      %v523 = vld [vmem:[%s490 + $0x58] sm:$0xf]
      %v524 = vld [vmem:[%s490 + $0x5c] sm:$0xf]
      %v525 = vld [vmem:[%s490 + $0x60] sm:$0xf]
      %v526 = vld [vmem:[%s490 + $0x64] sm:$0xf]
      %v527 = vld [vmem:[%s490 + $0x68] sm:$0xf]
      %v528 = vld [vmem:[%s490 + $0x6c] sm:$0xf]
      %v529 = vld [vmem:[%s490 + $0x70] sm:$0xf]
      %v530 = vld [vmem:[%s490 + $0x74] sm:$0xf]
      %v531 = vld [vmem:[%s490 + $0x78] sm:$0xf]
      %v532 = vld [vmem:[%s490 + $0x7c] sm:$0xf]
      %v533 = vld [vmem:[%s490 + $0x80] sm:$0xf]
      %v534 = vld [vmem:[%s490 + $0x84] sm:$0xf]
      %v535 = vld [vmem:[%s490 + $0x88] sm:$0xf]
      %v536 = vld [vmem:[%s490 + $0x8c] sm:$0xf]
      %v537 = vld [vmem:[%s490 + $0x90] sm:$0xf]
      %v538 = vld [vmem:[%s490 + $0x94] sm:$0xf]
      %v539 = vld [vmem:[%s490 + $0x98] sm:$0xf]
      %v540 = vld [vmem:[%s490 + $0x9c] sm:$0xf]
      %v541 = vld [vmem:[%s490 + $0xa0] sm:$0xf]
      %v542 = vld [vmem:[%s490 + $0xa4] sm:$0xf]
      %v543 = vld [vmem:[%s490 + $0xa8] sm:$0xf]
      %v544 = vld [vmem:[%s490 + $0xac] sm:$0xf]
      %v545 = vld [vmem:[%s490 + $0xb0] sm:$0xf]
      %v546 = vld [vmem:[%s490 + $0xb4] sm:$0xf]
      %v547 = vld [vmem:[%s490 + $0xb8] sm:$0xf]
      %v548 = vld [vmem:[%s490 + $0xbc] sm:$0xf]
      %v549 = vld [vmem:[%s490 + $0xc0] sm:$0xf]
      %v550 = vld [vmem:[%s490 + $0xc4] sm:$0xf]
      %v551 = vld [vmem:[%s2] sm:$0x1]
      %vm552 = vcmp.ne.f32.partialorder %v551, 0.0
      %v553 = vsel %vm552, 1, 0
      %v554 = vlaneseq
      %v555 = vshrl.u32 %v554, 7
      %v556 = vsub.s32 0, %v555
      %v557 = vrot.slane %v553, %v556
      %vm558 = vcmp.eq.s32.totalorder %v557, 1
      %v559 = vld [vmem:[%s2 + $0x1] sm:$0x1]
      %vm560 = vcmp.ne.f32.partialorder %v559, 0.0
      %v561 = vsel %vm560, 1, 0
      %v562 = vlaneseq
      %v563 = vshrl.u32 %v562, 7
      %v564 = vsub.s32 0, %v563
      %v565 = vrot.slane %v561, %v564
      %vm566 = vcmp.eq.s32.totalorder %v565, 1
      %v567 = vld [vmem:[%s2 + $0x2] sm:$0x1]
      %vm568 = vcmp.ne.f32.partialorder %v567, 0.0
      %v569 = vsel %vm568, 1, 0
      %v570 = vlaneseq
      %v571 = vshrl.u32 %v570, 7
      %v572 = vsub.s32 0, %v571
      %v573 = vrot.slane %v569, %v572
      %vm574 = vcmp.eq.s32.totalorder %v573, 1
      %v575 = vld [vmem:[%s2 + $0x3] sm:$0x1]
      %vm576 = vcmp.ne.f32.partialorder %v575, 0.0
      %v577 = vsel %vm576, 1, 0
      %v578 = vlaneseq
      %v579 = vshrl.u32 %v578, 7
      %v580 = vsub.s32 0, %v579
      %v581 = vrot.slane %v577, %v580
      %vm582 = vcmp.eq.s32.totalorder %v581, 1
      %v583 = vld [vmem:[%s2 + $0x4] sm:$0x1]
      %vm584 = vcmp.ne.f32.partialorder %v583, 0.0
      %v585 = vsel %vm584, 1, 0
      %v586 = vlaneseq
      %v587 = vshrl.u32 %v586, 7
      %v588 = vsub.s32 0, %v587
      %v589 = vrot.slane %v585, %v588
      %vm590 = vcmp.eq.s32.totalorder %v589, 1
      %v639 = vunpack.c.l.b16 %v503
      %v640 = vunpack.c.l.b16 %v504
      %v641 = vunpack.c.l.b16 %v505
      %v642 = vunpack.c.l.b16 %v506
      %v643 = vunpack.c.l.b16 %v507
      %v644 = vunpack.c.l.b16 %v508
      %v645 = vunpack.c.l.b16 %v509
      %v646 = vunpack.c.l.b16 %v510
      %v647 = vunpack.c.l.b16 %v511
      %v648 = vunpack.c.l.b16 %v512
      %v649 = vunpack.c.l.b16 %v513
      %v650 = vunpack.c.l.b16 %v514
      %v651 = vunpack.c.l.b16 %v515
      %v652 = vunpack.c.l.b16 %v516
      %v653 = vunpack.c.l.b16 %v517
      %v654 = vunpack.c.l.b16 %v518
      %v655 = vunpack.c.l.b16 %v519
      %v656 = vunpack.c.l.b16 %v520
      %v657 = vunpack.c.l.b16 %v521
      %v658 = vunpack.c.l.b16 %v522
      %v659 = vunpack.c.l.b16 %v523
      %v660 = vunpack.c.l.b16 %v524
      %v661 = vunpack.c.l.b16 %v525
      %v662 = vunpack.c.l.b16 %v526
      %v663 = vunpack.c.l.b16 %v527
      %v664 = vunpack.c.l.b16 %v528
      %v665 = vunpack.c.l.b16 %v529
      %v666 = vunpack.c.l.b16 %v530
      %v667 = vunpack.c.l.b16 %v531
      %v668 = vunpack.c.l.b16 %v532
      %v669 = vunpack.c.l.b16 %v533
      %v670 = vunpack.c.l.b16 %v534
      %v671 = vunpack.c.l.b16 %v535
      %v672 = vunpack.c.l.b16 %v536
      %v673 = vunpack.c.l.b16 %v537
      %v674 = vunpack.c.l.b16 %v538
      %v675 = vunpack.c.l.b16 %v539
      %v676 = vunpack.c.l.b16 %v540
      %v677 = vunpack.c.l.b16 %v541
      %v678 = vunpack.c.l.b16 %v542
      %v679 = vunpack.c.l.b16 %v543
      %v680 = vunpack.c.l.b16 %v544
      %v681 = vunpack.c.l.b16 %v545
      %v682 = vunpack.c.l.b16 %v546
      %v683 = vunpack.c.l.b16 %v547
      %v684 = vunpack.c.l.b16 %v548
      %v685 = vunpack.c.l.b16 %v549
      %v686 = vunpack.c.l.b16 %v550
      %v687 = vpack.c.b16 %v640, %v639
      %v688 = vpack.c.b16 %v642, %v641
      %v689 = vpack.c.b16 %v644, %v643
      %v690 = vpack.c.b16 %v646, %v645
      %v691 = vpack.c.b16 %v648, %v647
      %v692 = vpack.c.b16 %v650, %v649
      %v693 = vpack.c.b16 %v652, %v651
      %v694 = vpack.c.b16 %v654, %v653
      %v695 = vpack.c.b16 %v656, %v655
      %v696 = vpack.c.b16 %v658, %v657
      %v697 = vpack.c.b16 %v660, %v659
      %v698 = vpack.c.b16 %v662, %v661
      %v699 = vpack.c.b16 %v664, %v663
      %v700 = vpack.c.b16 %v666, %v665
      %v701 = vpack.c.b16 %v668, %v667
      %v702 = vpack.c.b16 %v670, %v669
      %v703 = vpack.c.b16 %v672, %v671
      %v704 = vpack.c.b16 %v674, %v673
      %v705 = vpack.c.b16 %v676, %v675
      %v706 = vpack.c.b16 %v678, %v677
      %v707 = vpack.c.b16 %v680, %v679
      %v708 = vpack.c.b16 %v682, %v681
      %v709 = vpack.c.b16 %v684, %v683
      %v710 = vpack.c.b16 %v686, %v685
      %v737 = vunpack.c.l.b16 %v501
      %v738 = vunpack.c.l.b16 %v502
      %v739 = vpack.c.b16 %v738, %v737
      %vm741 = vmpackc.low %vm558, %vm558
      %v742 = vsel %vm741, 65537, 0
      %v743 = vlaneseq
      %v744 = vshrl.u32 %v743, 7
      %v745 = vsub.s32 0, %v744
      %v746 = vrot.slane %v742, %v745
      %vm747 = vcmp.ne.s16.totalorder %v746, 0
      %v748 = vsel %vm747, %v687, %v739
      %v749 = vsel %vm747, %v688, %v687
      %v750 = vsel %vm747, %v689, %v688
      %v751 = vsel %vm747, %v690, %v689
      %v752 = vsel %vm747, %v691, %v690
      %v753 = vsel %vm747, %v692, %v691
      %v754 = vsel %vm747, %v693, %v692
      %v755 = vsel %vm747, %v694, %v693
      %v756 = vsel %vm747, %v695, %v694
      %v757 = vsel %vm747, %v696, %v695
      %v758 = vsel %vm747, %v697, %v696
      %v759 = vsel %vm747, %v698, %v697
      %v760 = vsel %vm747, %v699, %v698
      %v761 = vsel %vm747, %v700, %v699
      %v762 = vsel %vm747, %v701, %v700
      %v763 = vsel %vm747, %v702, %v701
      %v764 = vsel %vm747, %v703, %v702
      %v765 = vsel %vm747, %v704, %v703
      %v766 = vsel %vm747, %v705, %v704
      %v767 = vsel %vm747, %v706, %v705
      %v768 = vsel %vm747, %v707, %v706
      %v769 = vsel %vm747, %v708, %v707
      %v770 = vsel %vm747, %v709, %v708
      %v771 = vsel %vm747, %v710, %v709
      %v772 = vsel %vm747, %v739, %v710
      %vm773 = vmpackc.low %vm566, %vm566
      %v774 = vsel %vm773, 65537, 0
      %v775 = vlaneseq
      %v776 = vshrl.u32 %v775, 7
      %v777 = vsub.s32 0, %v776
      %v778 = vrot.slane %v774, %v777
      %vm779 = vcmp.ne.s16.totalorder %v778, 0
      %v780 = vsel %vm779, %v750, %v748
      %v781 = vsel %vm779, %v751, %v749
      %v782 = vsel %vm779, %v752, %v750
      %v783 = vsel %vm779, %v753, %v751
      %v784 = vsel %vm779, %v754, %v752
      %v785 = vsel %vm779, %v755, %v753
      %v786 = vsel %vm779, %v756, %v754
      %v787 = vsel %vm779, %v757, %v755
      %v788 = vsel %vm779, %v758, %v756
      %v789 = vsel %vm779, %v759, %v757
      %v790 = vsel %vm779, %v760, %v758
      %v791 = vsel %vm779, %v761, %v759
      %v792 = vsel %vm779, %v762, %v760
      %v793 = vsel %vm779, %v763, %v761
      %v794 = vsel %vm779, %v764, %v762
      %v795 = vsel %vm779, %v765, %v763
      %v796 = vsel %vm779, %v766, %v764
      %v797 = vsel %vm779, %v767, %v765
      %v798 = vsel %vm779, %v768, %v766
      %v799 = vsel %vm779, %v769, %v767
      %v800 = vsel %vm779, %v770, %v768
      %v801 = vsel %vm779, %v771, %v769
      %v802 = vsel %vm779, %v772, %v770
      %v803 = vsel %vm779, %v748, %v771
      %v804 = vsel %vm779, %v749, %v772
      %vm805 = vmpackc.low %vm574, %vm574
      %v806 = vsel %vm805, 65537, 0
      %v807 = vlaneseq
      %v808 = vshrl.u32 %v807, 7
      %v809 = vsub.s32 0, %v808
      %v810 = vrot.slane %v806, %v809
      %vm811 = vcmp.ne.s16.totalorder %v810, 0
      %v812 = vsel %vm811, %v784, %v780
      %v813 = vsel %vm811, %v785, %v781
      %v814 = vsel %vm811, %v786, %v782
      %v815 = vsel %vm811, %v787, %v783
      %v816 = vsel %vm811, %v788, %v784
      %v817 = vsel %vm811, %v789, %v785
      %v818 = vsel %vm811, %v790, %v786
      %v819 = vsel %vm811, %v791, %v787
      %v820 = vsel %vm811, %v792, %v788
      %v821 = vsel %vm811, %v793, %v789
      %v822 = vsel %vm811, %v794, %v790
      %v823 = vsel %vm811, %v795, %v791
      %v824 = vsel %vm811, %v796, %v792
      %v825 = vsel %vm811, %v797, %v793
      %v826 = vsel %vm811, %v798, %v794
      %v827 = vsel %vm811, %v799, %v795
      %v828 = vsel %vm811, %v800, %v796
      %v829 = vsel %vm811, %v801, %v797
      %v830 = vsel %vm811, %v802, %v798
      %v831 = vsel %vm811, %v803, %v799
      %v832 = vsel %vm811, %v804, %v800
      %v833 = vsel %vm811, %v780, %v801
      %v834 = vsel %vm811, %v781, %v802
      %v835 = vsel %vm811, %v782, %v803
      %v836 = vsel %vm811, %v783, %v804
      %vm837 = vmpackc.low %vm582, %vm582
      %v838 = vsel %vm837, 65537, 0
      %v839 = vlaneseq
      %v840 = vshrl.u32 %v839, 7
      %v841 = vsub.s32 0, %v840
      %v842 = vrot.slane %v838, %v841
      %vm843 = vcmp.ne.s16.totalorder %v842, 0
      %v844 = vsel %vm843, %v820, %v812
      %v845 = vsel %vm843, %v821, %v813
      %v846 = vsel %vm843, %v822, %v814
      %v847 = vsel %vm843, %v823, %v815
      %v848 = vsel %vm843, %v824, %v816
      %v849 = vsel %vm843, %v825, %v817
      %v850 = vsel %vm843, %v826, %v818
      %v851 = vsel %vm843, %v827, %v819
      %v852 = vsel %vm843, %v828, %v820
      %v853 = vsel %vm843, %v829, %v821
      %v854 = vsel %vm843, %v830, %v822
      %v855 = vsel %vm843, %v831, %v823
      %v856 = vsel %vm843, %v832, %v824
      %v857 = vsel %vm843, %v833, %v825
      %v858 = vsel %vm843, %v834, %v826
      %v859 = vsel %vm843, %v835, %v827
      %v860 = vsel %vm843, %v836, %v828
      %v861 = vsel %vm843, %v812, %v829
      %v862 = vsel %vm843, %v813, %v830
      %v863 = vsel %vm843, %v814, %v831
      %v864 = vsel %vm843, %v815, %v832
      %v865 = vsel %vm843, %v816, %v833
      %v866 = vsel %vm843, %v817, %v834
      %v867 = vsel %vm843, %v818, %v835
      %v868 = vsel %vm843, %v819, %v836
      %vm869 = vmpackc.low %vm590, %vm590
      %v870 = vsel %vm869, 65537, 0
      %v871 = vlaneseq
      %v872 = vshrl.u32 %v871, 7
      %v873 = vsub.s32 0, %v872
      %v874 = vrot.slane %v870, %v873
      %vm875 = vcmp.ne.s16.totalorder %v874, 0
      %v876 = vsel %vm875, %v860, %v844
      %v877 = vsel %vm875, %v861, %v845
      %v878 = vsel %vm875, %v862, %v846
      %v879 = vsel %vm875, %v863, %v847
      %v880 = vsel %vm875, %v864, %v848
      %v881 = vsel %vm875, %v865, %v849
      %v882 = vsel %vm875, %v866, %v850
      %v883 = vsel %vm875, %v867, %v851
      %v884 = vsel %vm875, %v868, %v852
      %v885 = vsel %vm875, %v844, %v853
      %v886 = vsel %vm875, %v845, %v854
      %v887 = vsel %vm875, %v846, %v855
      %v888 = vsel %vm875, %v847, %v856
      %v889 = vsel %vm875, %v848, %v857
      %v890 = vsel %vm875, %v849, %v858
      %v891 = vsel %vm875, %v850, %v859
      %v892 = vsel %vm875, %v851, %v860
      %v893 = vsel %vm875, %v852, %v861
      %v894 = vsel %vm875, %v853, %v862
      %v895 = vsel %vm875, %v854, %v863
      %v896 = vsel %vm875, %v855, %v864
      %v897 = vsel %vm875, %v856, %v865
      %v898 = vsel %vm875, %v857, %v866
      %v899 = vsel %vm875, %v858, %v867
      %v900 = vsel %vm875, %v859, %v868
      %v901 = vld [vmem:[%s1] sm:$0xf]
      %v902 = vld [vmem:[%s1 + $0x4] sm:$0xf]
      %v903 = vld [vmem:[%s1 + $0x8] sm:$0xf]
      %v904 = vld [vmem:[%s1 + $0xc] sm:$0xf]
      %v905 = vld [vmem:[%s1 + $0x10] sm:$0xf]
      %v906 = vld [vmem:[%s1 + $0x14] sm:$0xf]
      %v907 = vld [vmem:[%s1 + $0x18] sm:$0xf]
      %v908 = vld [vmem:[%s1 + $0x1c] sm:$0xf]
      %v909 = vld [vmem:[%s1 + $0x20] sm:$0xf]
      %v910 = vld [vmem:[%s1 + $0x24] sm:$0xf]
      %v911 = vld [vmem:[%s1 + $0x28] sm:$0xf]
      %v912 = vld [vmem:[%s1 + $0x2c] sm:$0xf]
      %v913 = vld [vmem:[%s1 + $0x30] sm:$0xf]
      %v914 = vld [vmem:[%s1 + $0x34] sm:$0xf]
      %v915 = vld [vmem:[%s1 + $0x38] sm:$0xf]
      %v916 = vld [vmem:[%s1 + $0x3c] sm:$0xf]
      %v917 = vld [vmem:[%s1 + $0x40] sm:$0xf]
      %v918 = vld [vmem:[%s1 + $0x44] sm:$0xf]
      %v919 = vld [vmem:[%s1 + $0x48] sm:$0xf]
      %v920 = vld [vmem:[%s1 + $0x4c] sm:$0xf]
      %v921 = vld [vmem:[%s1 + $0x50] sm:$0xf]
      %v922 = vld [vmem:[%s1 + $0x54] sm:$0xf]
      %v923 = vld [vmem:[%s1 + $0x58] sm:$0xf]
      %v924 = vld [vmem:[%s1 + $0x5c] sm:$0xf]
      %v925 = vld [vmem:[%s1 + $0x60] sm:$0xf]
      %v926 = vld [vmem:[%s1 + $0x64] sm:$0xf]
      %v927 = vld [vmem:[%s1 + $0x68] sm:$0xf]
      %v928 = vld [vmem:[%s1 + $0x6c] sm:$0xf]
      %v929 = vld [vmem:[%s1 + $0x70] sm:$0xf]
      %v930 = vld [vmem:[%s1 + $0x74] sm:$0xf]
      %v931 = vld [vmem:[%s1 + $0x78] sm:$0xf]
      %v932 = vld [vmem:[%s1 + $0x7c] sm:$0xf]
      %v933 = vld [vmem:[%s1 + $0x80] sm:$0xf]
      %v934 = vld [vmem:[%s1 + $0x84] sm:$0xf]
      %v935 = vld [vmem:[%s1 + $0x88] sm:$0xf]
      %v936 = vld [vmem:[%s1 + $0x8c] sm:$0xf]
      %v937 = vld [vmem:[%s1 + $0x90] sm:$0xf]
      %v938 = vld [vmem:[%s1 + $0x94] sm:$0xf]
      %v939 = vld [vmem:[%s1 + $0x98] sm:$0xf]
      %v940 = vld [vmem:[%s1 + $0x9c] sm:$0xf]
      %v941 = vld [vmem:[%s1 + $0xa0] sm:$0xf]
      %v942 = vld [vmem:[%s1 + $0xa4] sm:$0xf]
      %v943 = vld [vmem:[%s1 + $0xa8] sm:$0xf]
      %v944 = vld [vmem:[%s1 + $0xac] sm:$0xf]
      %v945 = vld [vmem:[%s1 + $0xb0] sm:$0xf]
      %v946 = vld [vmem:[%s1 + $0xb4] sm:$0xf]
      %v947 = vld [vmem:[%s1 + $0xb8] sm:$0xf]
      %v948 = vld [vmem:[%s1 + $0xbc] sm:$0xf]
      %v949 = vld [vmem:[%s1 + $0xc0] sm:$0xf]
      %v950 = vld [vmem:[%s1 + $0xc4] sm:$0xf]
      %v1001 = vunpack.c.l.b16 %v901
      %v1002 = vunpack.c.l.b16 %v902
      %v1003 = vunpack.c.l.b16 %v903
      %v1004 = vunpack.c.l.b16 %v904
      %v1005 = vunpack.c.l.b16 %v905
      %v1006 = vunpack.c.l.b16 %v906
      %v1007 = vunpack.c.l.b16 %v907
      %v1008 = vunpack.c.l.b16 %v908
      %v1009 = vunpack.c.l.b16 %v909
      %v1010 = vunpack.c.l.b16 %v910
      %v1011 = vunpack.c.l.b16 %v911
      %v1012 = vunpack.c.l.b16 %v912
      %v1013 = vunpack.c.l.b16 %v913
      %v1014 = vunpack.c.l.b16 %v914
      %v1015 = vunpack.c.l.b16 %v915
      %v1016 = vunpack.c.l.b16 %v916
      %v1017 = vunpack.c.l.b16 %v917
      %v1018 = vunpack.c.l.b16 %v918
      %v1019 = vunpack.c.l.b16 %v919
      %v1020 = vunpack.c.l.b16 %v920
      %v1021 = vunpack.c.l.b16 %v921
      %v1022 = vunpack.c.l.b16 %v922
      %v1023 = vunpack.c.l.b16 %v923
      %v1024 = vunpack.c.l.b16 %v924
      %v1025 = vunpack.c.l.b16 %v925
      %v1026 = vunpack.c.l.b16 %v926
      %v1027 = vunpack.c.l.b16 %v927
      %v1028 = vunpack.c.l.b16 %v928
      %v1029 = vunpack.c.l.b16 %v929
      %v1030 = vunpack.c.l.b16 %v930
      %v1031 = vunpack.c.l.b16 %v931
      %v1032 = vunpack.c.l.b16 %v932
      %v1033 = vunpack.c.l.b16 %v933
      %v1034 = vunpack.c.l.b16 %v934
      %v1035 = vunpack.c.l.b16 %v935
      %v1036 = vunpack.c.l.b16 %v936
      %v1037 = vunpack.c.l.b16 %v937
      %v1038 = vunpack.c.l.b16 %v938
      %v1039 = vunpack.c.l.b16 %v939
      %v1040 = vunpack.c.l.b16 %v940
      %v1041 = vunpack.c.l.b16 %v941
      %v1042 = vunpack.c.l.b16 %v942
      %v1043 = vunpack.c.l.b16 %v943
      %v1044 = vunpack.c.l.b16 %v944
      %v1045 = vunpack.c.l.b16 %v945
      %v1046 = vunpack.c.l.b16 %v946
      %v1047 = vunpack.c.l.b16 %v947
      %v1048 = vunpack.c.l.b16 %v948
      %v1049 = vunpack.c.l.b16 %v949
      %v1050 = vunpack.c.l.b16 %v950
      %v1051 = vpack.c.b16 %v1002, %v1001
      %v1052 = vpack.c.b16 %v1004, %v1003
      %v1053 = vpack.c.b16 %v1006, %v1005
      %v1054 = vpack.c.b16 %v1008, %v1007
      %v1055 = vpack.c.b16 %v1010, %v1009
      %v1056 = vpack.c.b16 %v1012, %v1011
      %v1057 = vpack.c.b16 %v1014, %v1013
      %v1058 = vpack.c.b16 %v1016, %v1015
      %v1059 = vpack.c.b16 %v1018, %v1017
      %v1060 = vpack.c.b16 %v1020, %v1019
      %v1061 = vpack.c.b16 %v1022, %v1021
      %v1062 = vpack.c.b16 %v1024, %v1023
      %v1063 = vpack.c.b16 %v1026, %v1025
      %v1064 = vpack.c.b16 %v1028, %v1027
      %v1065 = vpack.c.b16 %v1030, %v1029
      %v1066 = vpack.c.b16 %v1032, %v1031
      %v1067 = vpack.c.b16 %v1034, %v1033
      %v1068 = vpack.c.b16 %v1036, %v1035
      %v1069 = vpack.c.b16 %v1038, %v1037
      %v1070 = vpack.c.b16 %v1040, %v1039
      %v1071 = vpack.c.b16 %v1042, %v1041
      %v1072 = vpack.c.b16 %v1044, %v1043
      %v1073 = vpack.c.b16 %v1046, %v1045
      %v1074 = vpack.c.b16 %v1048, %v1047
      %v1075 = vpack.c.b16 %v1050, %v1049
      %v1101 = vmul.bf16 %v876, %v1051
      %v1102 = vmul.bf16 %v877, %v1052
      %v1103 = vmul.bf16 %v878, %v1053
      %v1104 = vmul.bf16 %v879, %v1054
      %v1105 = vmul.bf16 %v880, %v1055
      %v1106 = vmul.bf16 %v881, %v1056
      %v1107 = vmul.bf16 %v882, %v1057
      %v1108 = vmul.bf16 %v883, %v1058
      %v1109 = vmul.bf16 %v884, %v1059
      %v1110 = vmul.bf16 %v885, %v1060
      %v1111 = vmul.bf16 %v886, %v1061
      %v1112 = vmul.bf16 %v887, %v1062
      %v1113 = vmul.bf16 %v888, %v1063
      %v1114 = vmul.bf16 %v889, %v1064
      %v1115 = vmul.bf16 %v890, %v1065
      %v1116 = vmul.bf16 %v891, %v1066
      %v1117 = vmul.bf16 %v892, %v1067
      %v1118 = vmul.bf16 %v893, %v1068
      %v1119 = vmul.bf16 %v894, %v1069
      %v1120 = vmul.bf16 %v895, %v1070
      %v1121 = vmul.bf16 %v896, %v1071
      %v1122 = vmul.bf16 %v897, %v1072
      %v1123 = vmul.bf16 %v898, %v1073
      %v1124 = vmul.bf16 %v899, %v1074
      %v1125 = vmul.bf16 %v900, %v1075
      %v1126 = vld [vmem:[%s4] sm:$0x3]
      %vm1127 = vcmask 31744
      %v1129 = vsel %vm1127, %v1101, 0
      %v1132 = vsel %vm1127, %v1102, 0
      %v1135 = vsel %vm1127, %v1103, 0
      %v1138 = vsel %vm1127, %v1104, 0
      %v1141 = vsel %vm1127, %v1105, 0
      %v1144 = vsel %vm1127, %v1106, 0
      %v1147 = vsel %vm1127, %v1107, 0
      %v1150 = vsel %vm1127, %v1108, 0
      %v1153 = vsel %vm1127, %v1109, 0
      %v1156 = vsel %vm1127, %v1110, 0
      %v1159 = vsel %vm1127, %v1111, 0
      %v1162 = vsel %vm1127, %v1112, 0
      %v1165 = vsel %vm1127, %v1113, 0
      %v1168 = vsel %vm1127, %v1114, 0
      %v1171 = vsel %vm1127, %v1115, 0
      %v1174 = vsel %vm1127, %v1116, 0
      %v1177 = vsel %vm1127, %v1117, 0
      %v1180 = vsel %vm1127, %v1118, 0
      %v1183 = vsel %vm1127, %v1119, 0
      %v1186 = vsel %vm1127, %v1120, 0
      %v1189 = vsel %vm1127, %v1121, 0
      %v1192 = vsel %vm1127, %v1122, 0
      %v1195 = vsel %vm1127, %v1123, 0
      %v1198 = vsel %vm1127, %v1124, 0
      %v1201 = vsel %vm1127, %v1125, 0
      %vm1203 = vcmask 1041408
      %v1205 = vsel %vm1203, %v1126, 0
      %1207 = vmatprep.subr.bf16.mxu0 0
      %1208 = vmatpush1.bf16.msra.mxu0 %v1205
      %1209 = vmatprep.subr.bf16.mxu0 0
      %1210 = vmatpush1.bf16.msra.mxu0 0
      %1211 = vmatprep.subr.bf16.mxu0 0
      %1212 = vmatpush1.bf16.msra.mxu0 0
      %1213 = vmatprep.subr.bf16.mxu0 0
      %1214 = vmatpush1.bf16.msra.mxu0 0
      %1215 = vmatprep.subr.bf16.mxu0 0
      %1216 = vmatpush1.bf16.msra.mxu0 0
      %1217 = vmatprep.subr.bf16.mxu0 0
      %1218 = vmatpush1.bf16.msra.mxu0 0
      %1219 = vmatprep.subr.bf16.mxu0 0
      %1220 = vmatpush1.bf16.msra.mxu0 0
      %1221 = vmatprep.subr.bf16.mxu0 0
      %1222 = vmatpush1.bf16.msra.mxu0 0
      %1223 = vmatprep.subr.bf16.mxu0 0
      %1224 = vmatpush1.bf16.msra.mxu0 0
      %1225 = vmatprep.subr.bf16.mxu0 0
      %1226 = vmatpush1.bf16.msra.mxu0 0
      %1227 = vmatprep.subr.bf16.mxu0 0
      %1228 = vmatpush1.bf16.msra.mxu0 0
      %1229 = vmatprep.subr.bf16.mxu0 0
      %1230 = vmatpush1.bf16.msra.mxu0 0
      %1231 = vmatprep.subr.bf16.mxu0 0
      %1232 = vmatpush1.bf16.msra.mxu0 0
      %1233 = vmatprep.subr.bf16.mxu0 0
      %1234 = vmatpush1.bf16.msra.mxu0 0
      %1235 = vmatprep.subr.bf16.mxu0 0
      %1236 = vmatpush1.bf16.msra.mxu0 0
      %1237 = vmatprep.subr.bf16.mxu0 0
      %1238 = vmatpush1.bf16.msra.mxu0 0
      %1239 = vmatprep.mubr.bf16.mxu0 0
      %1240 = vmatmul.mubr.bf16.gmra.mrb[0].mxu0 %v1129
      %v1241 = vpop.f32.mrb[0].mxu0
      %v1242 = vadd.f32 0.0, %v1241
      %v1243 = vpop.f32.mrb[0].mxu0
      %v1244 = vpop.f32.mrb[0].mxu0
      %v1245 = vadd.f32 0.0, %v1244
      %v1246 = vpop.f32.mrb[0].mxu0
      %1247 = vmatprep.mubr.bf16.mxu0 0
      %1248 = vmatmul.mubr.bf16.gmra.mrb[0].mxu0 %v1132
      %v1249 = vpop.f32.mrb[0].mxu0
      %v1250 = vadd.f32 0.0, %v1249
      %v1251 = vpop.f32.mrb[0].mxu0
      %v1252 = vpop.f32.mrb[0].mxu0
      %v1253 = vadd.f32 0.0, %v1252
      %v1254 = vpop.f32.mrb[0].mxu0
      %1255 = vmatprep.mubr.bf16.mxu0 0
      %1256 = vmatmul.mubr.bf16.gmra.mrb[0].mxu0 %v1135
      %v1257 = vpop.f32.mrb[0].mxu0
      %v1258 = vadd.f32 0.0, %v1257
      %v1259 = vpop.f32.mrb[0].mxu0
      %v1260 = vpop.f32.mrb[0].mxu0
      %v1261 = vadd.f32 0.0, %v1260
      %v1262 = vpop.f32.mrb[0].mxu0
      %1263 = vmatprep.mubr.bf16.mxu0 0
      %1264 = vmatmul.mubr.bf16.gmra.mrb[0].mxu0 %v1138
      %v1265 = vpop.f32.mrb[0].mxu0
      %v1266 = vadd.f32 0.0, %v1265
      %v1267 = vpop.f32.mrb[0].mxu0
      %v1268 = vpop.f32.mrb[0].mxu0
      %v1269 = vadd.f32 0.0, %v1268
      %v1270 = vpop.f32.mrb[0].mxu0
      %1271 = vmatprep.mubr.bf16.mxu0 0
      %1272 = vmatmul.mubr.bf16.gmra.mrb[0].mxu0 %v1141
      %v1273 = vpop.f32.mrb[0].mxu0
      %v1274 = vadd.f32 0.0, %v1273
      %v1275 = vpop.f32.mrb[0].mxu0
      %v1276 = vpop.f32.mrb[0].mxu0
      %v1277 = vadd.f32 0.0, %v1276
      %v1278 = vpop.f32.mrb[0].mxu0
      %1279 = vmatprep.mubr.bf16.mxu0 0
      %1280 = vmatmul.mubr.bf16.gmra.mrb[0].mxu0 %v1144
      %v1281 = vpop.f32.mrb[0].mxu0
      %v1282 = vadd.f32 0.0, %v1281
      %v1283 = vpop.f32.mrb[0].mxu0
      %v1284 = vpop.f32.mrb[0].mxu0
      %v1285 = vadd.f32 0.0, %v1284
      %v1286 = vpop.f32.mrb[0].mxu0
      %1287 = vmatprep.mubr.bf16.mxu0 0
      %1288 = vmatmul.mubr.bf16.gmra.mrb[0].mxu0 %v1147
      %v1289 = vpop.f32.mrb[0].mxu0
      %v1290 = vadd.f32 0.0, %v1289
      %v1291 = vpop.f32.mrb[0].mxu0
      %v1292 = vpop.f32.mrb[0].mxu0
      %v1293 = vadd.f32 0.0, %v1292
      %v1294 = vpop.f32.mrb[0].mxu0
      %1295 = vmatprep.mubr.bf16.mxu0 0
      %1296 = vmatmul.mubr.bf16.gmra.mrb[0].mxu0 %v1150
      %v1297 = vpop.f32.mrb[0].mxu0
      %v1298 = vadd.f32 0.0, %v1297
      %v1299 = vpop.f32.mrb[0].mxu0
      %v1300 = vpop.f32.mrb[0].mxu0
      %v1301 = vadd.f32 0.0, %v1300
      %v1302 = vpop.f32.mrb[0].mxu0
      %1303 = vmatprep.mubr.bf16.mxu0 0
      %1304 = vmatmul.mubr.bf16.gmra.mrb[0].mxu0 %v1153
      %v1305 = vpop.f32.mrb[0].mxu0
      %v1306 = vadd.f32 0.0, %v1305
      %v1307 = vpop.f32.mrb[0].mxu0
      %v1308 = vpop.f32.mrb[0].mxu0
      %v1309 = vadd.f32 0.0, %v1308
      %v1310 = vpop.f32.mrb[0].mxu0
      %1311 = vmatprep.mubr.bf16.mxu0 0
      %1312 = vmatmul.mubr.bf16.gmra.mrb[0].mxu0 %v1156
      %v1313 = vpop.f32.mrb[0].mxu0
      %v1314 = vadd.f32 0.0, %v1313
      %v1315 = vpop.f32.mrb[0].mxu0
      %v1316 = vpop.f32.mrb[0].mxu0
      %v1317 = vadd.f32 0.0, %v1316
      %v1318 = vpop.f32.mrb[0].mxu0
      %1319 = vmatprep.mubr.bf16.mxu0 0
      %1320 = vmatmul.mubr.bf16.gmra.mrb[0].mxu0 %v1159
      %v1321 = vpop.f32.mrb[0].mxu0
      %v1322 = vadd.f32 0.0, %v1321
      %v1323 = vpop.f32.mrb[0].mxu0
      %v1324 = vpop.f32.mrb[0].mxu0
      %v1325 = vadd.f32 0.0, %v1324
      %v1326 = vpop.f32.mrb[0].mxu0
      %1327 = vmatprep.mubr.bf16.mxu0 0
      %1328 = vmatmul.mubr.bf16.gmra.mrb[0].mxu0 %v1162
      %v1329 = vpop.f32.mrb[0].mxu0
      %v1330 = vadd.f32 0.0, %v1329
      %v1331 = vpop.f32.mrb[0].mxu0
      %v1332 = vpop.f32.mrb[0].mxu0
      %v1333 = vadd.f32 0.0, %v1332
      %v1334 = vpop.f32.mrb[0].mxu0
      %1335 = vmatprep.mubr.bf16.mxu0 0
      %1336 = vmatmul.mubr.bf16.gmra.mrb[0].mxu0 %v1165
      %v1337 = vpop.f32.mrb[0].mxu0
      %v1338 = vadd.f32 0.0, %v1337
      %v1339 = vpop.f32.mrb[0].mxu0
      %v1340 = vpop.f32.mrb[0].mxu0
      %v1341 = vadd.f32 0.0, %v1340
      %v1342 = vpop.f32.mrb[0].mxu0
      %1343 = vmatprep.mubr.bf16.mxu0 0
      %1344 = vmatmul.mubr.bf16.gmra.mrb[0].mxu0 %v1168
      %v1345 = vpop.f32.mrb[0].mxu0
      %v1346 = vadd.f32 0.0, %v1345
      %v1347 = vpop.f32.mrb[0].mxu0
      %v1348 = vpop.f32.mrb[0].mxu0
      %v1349 = vadd.f32 0.0, %v1348
      %v1350 = vpop.f32.mrb[0].mxu0
      %1351 = vmatprep.mubr.bf16.mxu0 0
      %1352 = vmatmul.mubr.bf16.gmra.mrb[0].mxu0 %v1171
      %v1353 = vpop.f32.mrb[0].mxu0
      %v1354 = vadd.f32 0.0, %v1353
      %v1355 = vpop.f32.mrb[0].mxu0
      %v1356 = vpop.f32.mrb[0].mxu0
      %v1357 = vadd.f32 0.0, %v1356
      %v1358 = vpop.f32.mrb[0].mxu0
      %1359 = vmatprep.mubr.bf16.mxu0 0
      %1360 = vmatmul.mubr.bf16.gmra.mrb[0].mxu0 %v1174
      %v1361 = vpop.f32.mrb[0].mxu0
      %v1362 = vadd.f32 0.0, %v1361
      %v1363 = vpop.f32.mrb[0].mxu0
      %v1364 = vpop.f32.mrb[0].mxu0
      %v1365 = vadd.f32 0.0, %v1364
      %v1366 = vpop.f32.mrb[0].mxu0
      %1367 = vmatprep.mubr.bf16.mxu0 0
      %1368 = vmatmul.mubr.bf16.gmra.mrb[0].mxu0 %v1177
      %v1369 = vpop.f32.mrb[0].mxu0
      %v1370 = vadd.f32 0.0, %v1369
      %v1371 = vpop.f32.mrb[0].mxu0
      %v1372 = vpop.f32.mrb[0].mxu0
      %v1373 = vadd.f32 0.0, %v1372
      %v1374 = vpop.f32.mrb[0].mxu0
      %1375 = vmatprep.mubr.bf16.mxu0 0
      %1376 = vmatmul.mubr.bf16.gmra.mrb[0].mxu0 %v1180
      %v1377 = vpop.f32.mrb[0].mxu0
      %v1378 = vadd.f32 0.0, %v1377
      %v1379 = vpop.f32.mrb[0].mxu0
      %v1380 = vpop.f32.mrb[0].mxu0
      %v1381 = vadd.f32 0.0, %v1380
      %v1382 = vpop.f32.mrb[0].mxu0
      %1383 = vmatprep.mubr.bf16.mxu0 0
      %1384 = vmatmul.mubr.bf16.gmra.mrb[0].mxu0 %v1183
      %v1385 = vpop.f32.mrb[0].mxu0
      %v1386 = vadd.f32 0.0, %v1385
      %v1387 = vpop.f32.mrb[0].mxu0
      %v1388 = vpop.f32.mrb[0].mxu0
      %v1389 = vadd.f32 0.0, %v1388
      %v1390 = vpop.f32.mrb[0].mxu0
      %1391 = vmatprep.mubr.bf16.mxu0 0
      %1392 = vmatmul.mubr.bf16.gmra.mrb[0].mxu0 %v1186
      %v1393 = vpop.f32.mrb[0].mxu0
      %v1394 = vadd.f32 0.0, %v1393
      %v1395 = vpop.f32.mrb[0].mxu0
      %v1396 = vpop.f32.mrb[0].mxu0
      %v1397 = vadd.f32 0.0, %v1396
      %v1398 = vpop.f32.mrb[0].mxu0
      %1399 = vmatprep.mubr.bf16.mxu0 0
      %1400 = vmatmul.mubr.bf16.gmra.mrb[0].mxu0 %v1189
      %v1401 = vpop.f32.mrb[0].mxu0
      %v1402 = vadd.f32 0.0, %v1401
      %v1403 = vpop.f32.mrb[0].mxu0
      %v1404 = vpop.f32.mrb[0].mxu0
      %v1405 = vadd.f32 0.0, %v1404
      %v1406 = vpop.f32.mrb[0].mxu0
      %1407 = vmatprep.mubr.bf16.mxu0 0
      %1408 = vmatmul.mubr.bf16.gmra.mrb[0].mxu0 %v1192
      %v1409 = vpop.f32.mrb[0].mxu0
      %v1410 = vadd.f32 0.0, %v1409
      %v1411 = vpop.f32.mrb[0].mxu0
      %v1412 = vpop.f32.mrb[0].mxu0
      %v1413 = vadd.f32 0.0, %v1412
      %v1414 = vpop.f32.mrb[0].mxu0
      %1415 = vmatprep.mubr.bf16.mxu0 0
      %1416 = vmatmul.mubr.bf16.gmra.mrb[0].mxu0 %v1195
      %v1417 = vpop.f32.mrb[0].mxu0
      %v1418 = vadd.f32 0.0, %v1417
      %v1419 = vpop.f32.mrb[0].mxu0
      %v1420 = vpop.f32.mrb[0].mxu0
      %v1421 = vadd.f32 0.0, %v1420
      %v1422 = vpop.f32.mrb[0].mxu0
      %1423 = vmatprep.mubr.bf16.mxu0 0
      %1424 = vmatmul.mubr.bf16.gmra.mrb[0].mxu0 %v1198
      %v1425 = vpop.f32.mrb[0].mxu0
      %v1426 = vadd.f32 0.0, %v1425
      %v1427 = vpop.f32.mrb[0].mxu0
      %v1428 = vpop.f32.mrb[0].mxu0
      %v1429 = vadd.f32 0.0, %v1428
      %v1430 = vpop.f32.mrb[0].mxu0
      %1431 = vmatprep.mubr.bf16.mxu0 0
      %1432 = vmatmul.mubr.bf16.gmra.mrb[0].mxu0 %v1201
      %v1433 = vpop.f32.mrb[0].mxu0
      %v1434 = vadd.f32 0.0, %v1433
      %v1435 = vpop.f32.mrb[0].mxu0
      %v1436 = vpop.f32.mrb[0].mxu0
      %v1437 = vadd.f32 0.0, %v1436
      %v1438 = vpop.f32.mrb[0].mxu0
      %1439 = vdwg.mxu0
      %v1440 = vld [vmem:[%s3] sm:$0x1]
      %vm1441 = vcmp.ne.f32.partialorder %v1440, 0.0
      %v1442 = vsel %vm1441, 1, 0
      %v1443 = vlaneseq
      %v1444 = vshrl.u32 %v1443, 7
      %v1445 = vsub.s32 0, %v1444
      %v1446 = vrot.slane %v1442, %v1445
      %vm1447 = vcmp.eq.s32.totalorder %v1446, 1
      %v1448 = vld [vmem:[%s3 + $0x1] sm:$0x1]
      %vm1449 = vcmp.ne.f32.partialorder %v1448, 0.0
      %v1450 = vsel %vm1449, 1, 0
      %v1451 = vlaneseq
      %v1452 = vshrl.u32 %v1451, 7
      %v1453 = vsub.s32 0, %v1452
      %v1454 = vrot.slane %v1450, %v1453
      %vm1455 = vcmp.eq.s32.totalorder %v1454, 1
      %v1456 = vld [vmem:[%s3 + $0x2] sm:$0x1]
      %vm1457 = vcmp.ne.f32.partialorder %v1456, 0.0
      %v1458 = vsel %vm1457, 1, 0
      %v1459 = vlaneseq
      %v1460 = vshrl.u32 %v1459, 7
      %v1461 = vsub.s32 0, %v1460
      %v1462 = vrot.slane %v1458, %v1461
      %vm1463 = vcmp.eq.s32.totalorder %v1462, 1
      %v1464 = vld [vmem:[%s3 + $0x3] sm:$0x1]
      %vm1465 = vcmp.ne.f32.partialorder %v1464, 0.0
      %v1466 = vsel %vm1465, 1, 0
      %v1467 = vlaneseq
      %v1468 = vshrl.u32 %v1467, 7
      %v1469 = vsub.s32 0, %v1468
      %v1470 = vrot.slane %v1466, %v1469
      %vm1471 = vcmp.eq.s32.totalorder %v1470, 1
      %v1472 = vld [vmem:[%s3 + $0x4] sm:$0x1]
      %vm1473 = vcmp.ne.f32.partialorder %v1472, 0.0
      %v1474 = vsel %vm1473, 1, 0
      %v1475 = vlaneseq
      %v1476 = vshrl.u32 %v1475, 7
      %v1477 = vsub.s32 0, %v1476
      %v1478 = vrot.slane %v1474, %v1477
      %vm1479 = vcmp.eq.s32.totalorder %v1478, 1
      %v1480 = vsel %vm1447, %v1434, %v1242
      %v1481 = vsel %vm1447, %v1437, %v1245
      %v1482 = vsel %vm1447, %v1242, %v1250
      %v1483 = vsel %vm1447, %v1245, %v1253
      %v1484 = vsel %vm1447, %v1250, %v1258
      %v1485 = vsel %vm1447, %v1253, %v1261
      %v1486 = vsel %vm1447, %v1258, %v1266
      %v1487 = vsel %vm1447, %v1261, %v1269
      %v1488 = vsel %vm1447, %v1266, %v1274
      %v1489 = vsel %vm1447, %v1269, %v1277
      %v1490 = vsel %vm1447, %v1274, %v1282
      %v1491 = vsel %vm1447, %v1277, %v1285
      %v1492 = vsel %vm1447, %v1282, %v1290
      %v1493 = vsel %vm1447, %v1285, %v1293
      %v1494 = vsel %vm1447, %v1290, %v1298
      %v1495 = vsel %vm1447, %v1293, %v1301
      %v1496 = vsel %vm1447, %v1298, %v1306
      %v1497 = vsel %vm1447, %v1301, %v1309
      %v1498 = vsel %vm1447, %v1306, %v1314
      %v1499 = vsel %vm1447, %v1309, %v1317
      %v1500 = vsel %vm1447, %v1314, %v1322
      %v1501 = vsel %vm1447, %v1317, %v1325
      %v1502 = vsel %vm1447, %v1322, %v1330
      %v1503 = vsel %vm1447, %v1325, %v1333
      %v1504 = vsel %vm1447, %v1330, %v1338
      %v1505 = vsel %vm1447, %v1333, %v1341
      %v1506 = vsel %vm1447, %v1338, %v1346
      %v1507 = vsel %vm1447, %v1341, %v1349
      %v1508 = vsel %vm1447, %v1346, %v1354
      %v1509 = vsel %vm1447, %v1349, %v1357
      %v1510 = vsel %vm1447, %v1354, %v1362
      %v1511 = vsel %vm1447, %v1357, %v1365
      %v1512 = vsel %vm1447, %v1362, %v1370
      %v1513 = vsel %vm1447, %v1365, %v1373
      %v1514 = vsel %vm1447, %v1370, %v1378
      %v1515 = vsel %vm1447, %v1373, %v1381
      %v1516 = vsel %vm1447, %v1378, %v1386
      %v1517 = vsel %vm1447, %v1381, %v1389
      %v1518 = vsel %vm1447, %v1386, %v1394
      %v1519 = vsel %vm1447, %v1389, %v1397
      %v1520 = vsel %vm1447, %v1394, %v1402
      %v1521 = vsel %vm1447, %v1397, %v1405
      %v1522 = vsel %vm1447, %v1402, %v1410
      %v1523 = vsel %vm1447, %v1405, %v1413
      %v1524 = vsel %vm1447, %v1410, %v1418
      %v1525 = vsel %vm1447, %v1413, %v1421
      %v1526 = vsel %vm1447, %v1418, %v1426
      %v1527 = vsel %vm1447, %v1421, %v1429
      %v1528 = vsel %vm1447, %v1426, %v1434
      %v1529 = vsel %vm1447, %v1429, %v1437
      %v1530 = vsel %vm1455, %v1526, %v1480
      %v1531 = vsel %vm1455, %v1527, %v1481
      %v1532 = vsel %vm1455, %v1528, %v1482
      %v1533 = vsel %vm1455, %v1529, %v1483
      %v1534 = vsel %vm1455, %v1480, %v1484
      %v1535 = vsel %vm1455, %v1481, %v1485
      %v1536 = vsel %vm1455, %v1482, %v1486
      %v1537 = vsel %vm1455, %v1483, %v1487
      %v1538 = vsel %vm1455, %v1484, %v1488
      %v1539 = vsel %vm1455, %v1485, %v1489
      %v1540 = vsel %vm1455, %v1486, %v1490
      %v1541 = vsel %vm1455, %v1487, %v1491
      %v1542 = vsel %vm1455, %v1488, %v1492
      %v1543 = vsel %vm1455, %v1489, %v1493
      %v1544 = vsel %vm1455, %v1490, %v1494
      %v1545 = vsel %vm1455, %v1491, %v1495
      %v1546 = vsel %vm1455, %v1492, %v1496
      %v1547 = vsel %vm1455, %v1493, %v1497
      %v1548 = vsel %vm1455, %v1494, %v1498
      %v1549 = vsel %vm1455, %v1495, %v1499
      %v1550 = vsel %vm1455, %v1496, %v1500
      %v1551 = vsel %vm1455, %v1497, %v1501
      %v1552 = vsel %vm1455, %v1498, %v1502
      %v1553 = vsel %vm1455, %v1499, %v1503
      %v1554 = vsel %vm1455, %v1500, %v1504
      %v1555 = vsel %vm1455, %v1501, %v1505
      %v1556 = vsel %vm1455, %v1502, %v1506
      %v1557 = vsel %vm1455, %v1503, %v1507
      %v1558 = vsel %vm1455, %v1504, %v1508
      %v1559 = vsel %vm1455, %v1505, %v1509
      %v1560 = vsel %vm1455, %v1506, %v1510
      %v1561 = vsel %vm1455, %v1507, %v1511
      %v1562 = vsel %vm1455, %v1508, %v1512
      %v1563 = vsel %vm1455, %v1509, %v1513
      %v1564 = vsel %vm1455, %v1510, %v1514
      %v1565 = vsel %vm1455, %v1511, %v1515
      %v1566 = vsel %vm1455, %v1512, %v1516
      %v1567 = vsel %vm1455, %v1513, %v1517
      %v1568 = vsel %vm1455, %v1514, %v1518
      %v1569 = vsel %vm1455, %v1515, %v1519
      %v1570 = vsel %vm1455, %v1516, %v1520
      %v1571 = vsel %vm1455, %v1517, %v1521
      %v1572 = vsel %vm1455, %v1518, %v1522
      %v1573 = vsel %vm1455, %v1519, %v1523
      %v1574 = vsel %vm1455, %v1520, %v1524
      %v1575 = vsel %vm1455, %v1521, %v1525
      %v1576 = vsel %vm1455, %v1522, %v1526
      %v1577 = vsel %vm1455, %v1523, %v1527
      %v1578 = vsel %vm1455, %v1524, %v1528
      %v1579 = vsel %vm1455, %v1525, %v1529
      %v1580 = vsel %vm1463, %v1572, %v1530
      %v1581 = vsel %vm1463, %v1573, %v1531
      %v1582 = vsel %vm1463, %v1574, %v1532
      %v1583 = vsel %vm1463, %v1575, %v1533
      %v1584 = vsel %vm1463, %v1576, %v1534
      %v1585 = vsel %vm1463, %v1577, %v1535
      %v1586 = vsel %vm1463, %v1578, %v1536
      %v1587 = vsel %vm1463, %v1579, %v1537
      %v1588 = vsel %vm1463, %v1530, %v1538
      %v1589 = vsel %vm1463, %v1531, %v1539
      %v1590 = vsel %vm1463, %v1532, %v1540
      %v1591 = vsel %vm1463, %v1533, %v1541
      %v1592 = vsel %vm1463, %v1534, %v1542
      %v1593 = vsel %vm1463, %v1535, %v1543
      %v1594 = vsel %vm1463, %v1536, %v1544
      %v1595 = vsel %vm1463, %v1537, %v1545
      %v1596 = vsel %vm1463, %v1538, %v1546
      %v1597 = vsel %vm1463, %v1539, %v1547
      %v1598 = vsel %vm1463, %v1540, %v1548
      %v1599 = vsel %vm1463, %v1541, %v1549
      %v1600 = vsel %vm1463, %v1542, %v1550
      %v1601 = vsel %vm1463, %v1543, %v1551
      %v1602 = vsel %vm1463, %v1544, %v1552
      %v1603 = vsel %vm1463, %v1545, %v1553
      %v1604 = vsel %vm1463, %v1546, %v1554
      %v1605 = vsel %vm1463, %v1547, %v1555
      %v1606 = vsel %vm1463, %v1548, %v1556
      %v1607 = vsel %vm1463, %v1549, %v1557
      %v1608 = vsel %vm1463, %v1550, %v1558
      %v1609 = vsel %vm1463, %v1551, %v1559
      %v1610 = vsel %vm1463, %v1552, %v1560
      %v1611 = vsel %vm1463, %v1553, %v1561
      %v1612 = vsel %vm1463, %v1554, %v1562
      %v1613 = vsel %vm1463, %v1555, %v1563
      %v1614 = vsel %vm1463, %v1556, %v1564
      %v1615 = vsel %vm1463, %v1557, %v1565
      %v1616 = vsel %vm1463, %v1558, %v1566
      %v1617 = vsel %vm1463, %v1559, %v1567
      %v1618 = vsel %vm1463, %v1560, %v1568
      %v1619 = vsel %vm1463, %v1561, %v1569
      %v1620 = vsel %vm1463, %v1562, %v1570
      %v1621 = vsel %vm1463, %v1563, %v1571
      %v1622 = vsel %vm1463, %v1564, %v1572
      %v1623 = vsel %vm1463, %v1565, %v1573
      %v1624 = vsel %vm1463, %v1566, %v1574
      %v1625 = vsel %vm1463, %v1567, %v1575
      %v1626 = vsel %vm1463, %v1568, %v1576
      %v1627 = vsel %vm1463, %v1569, %v1577
      %v1628 = vsel %vm1463, %v1570, %v1578
      %v1629 = vsel %vm1463, %v1571, %v1579
      %v1630 = vsel %vm1471, %v1614, %v1580
      %v1631 = vsel %vm1471, %v1615, %v1581
      %v1632 = vsel %vm1471, %v1616, %v1582
      %v1633 = vsel %vm1471, %v1617, %v1583
      %v1634 = vsel %vm1471, %v1618, %v1584
      %v1635 = vsel %vm1471, %v1619, %v1585
      %v1636 = vsel %vm1471, %v1620, %v1586
      %v1637 = vsel %vm1471, %v1621, %v1587
      %v1638 = vsel %vm1471, %v1622, %v1588
      %v1639 = vsel %vm1471, %v1623, %v1589
      %v1640 = vsel %vm1471, %v1624, %v1590
      %v1641 = vsel %vm1471, %v1625, %v1591
      %v1642 = vsel %vm1471, %v1626, %v1592
      %v1643 = vsel %vm1471, %v1627, %v1593
      %v1644 = vsel %vm1471, %v1628, %v1594
      %v1645 = vsel %vm1471, %v1629, %v1595
      %v1646 = vsel %vm1471, %v1580, %v1596
      %v1647 = vsel %vm1471, %v1581, %v1597
      %v1648 = vsel %vm1471, %v1582, %v1598
      %v1649 = vsel %vm1471, %v1583, %v1599
      %v1650 = vsel %vm1471, %v1584, %v1600
      %v1651 = vsel %vm1471, %v1585, %v1601
      %v1652 = vsel %vm1471, %v1586, %v1602
      %v1653 = vsel %vm1471, %v1587, %v1603
      %v1654 = vsel %vm1471, %v1588, %v1604
      %v1655 = vsel %vm1471, %v1589, %v1605
      %v1656 = vsel %vm1471, %v1590, %v1606
      %v1657 = vsel %vm1471, %v1591, %v1607
      %v1658 = vsel %vm1471, %v1592, %v1608
      %v1659 = vsel %vm1471, %v1593, %v1609
      %v1660 = vsel %vm1471, %v1594, %v1610
      %v1661 = vsel %vm1471, %v1595, %v1611
      %v1662 = vsel %vm1471, %v1596, %v1612
      %v1663 = vsel %vm1471, %v1597, %v1613
      %v1664 = vsel %vm1471, %v1598, %v1614
      %v1665 = vsel %vm1471, %v1599, %v1615
      %v1666 = vsel %vm1471, %v1600, %v1616
      %v1667 = vsel %vm1471, %v1601, %v1617
      %v1668 = vsel %vm1471, %v1602, %v1618
      %v1669 = vsel %vm1471, %v1603, %v1619
      %v1670 = vsel %vm1471, %v1604, %v1620
      %v1671 = vsel %vm1471, %v1605, %v1621
      %v1672 = vsel %vm1471, %v1606, %v1622
      %v1673 = vsel %vm1471, %v1607, %v1623
      %v1674 = vsel %vm1471, %v1608, %v1624
      %v1675 = vsel %vm1471, %v1609, %v1625
      %v1676 = vsel %vm1471, %v1610, %v1626
      %v1677 = vsel %vm1471, %v1611, %v1627
      %v1678 = vsel %vm1471, %v1612, %v1628
      %v1679 = vsel %vm1471, %v1613, %v1629
      %v1680 = vsel %vm1479, %v1648, %v1630
      %v1681 = vsel %vm1479, %v1649, %v1631
      %v1682 = vsel %vm1479, %v1650, %v1632
      %v1683 = vsel %vm1479, %v1651, %v1633
      %v1684 = vsel %vm1479, %v1652, %v1634
      %v1685 = vsel %vm1479, %v1653, %v1635
      %v1686 = vsel %vm1479, %v1654, %v1636
      %v1687 = vsel %vm1479, %v1655, %v1637
      %v1688 = vsel %vm1479, %v1656, %v1638
      %v1689 = vsel %vm1479, %v1657, %v1639
      %v1690 = vsel %vm1479, %v1658, %v1640
      %v1691 = vsel %vm1479, %v1659, %v1641
      %v1692 = vsel %vm1479, %v1660, %v1642
      %v1693 = vsel %vm1479, %v1661, %v1643
      %v1694 = vsel %vm1479, %v1662, %v1644
      %v1695 = vsel %vm1479, %v1663, %v1645
      %v1696 = vsel %vm1479, %v1664, %v1646
      %v1697 = vsel %vm1479, %v1665, %v1647
      %v1698 = vsel %vm1479, %v1666, %v1648
      %v1699 = vsel %vm1479, %v1667, %v1649
      %v1700 = vsel %vm1479, %v1668, %v1650
      %v1701 = vsel %vm1479, %v1669, %v1651
      %v1702 = vsel %vm1479, %v1670, %v1652
      %v1703 = vsel %vm1479, %v1671, %v1653
      %v1704 = vsel %vm1479, %v1672, %v1654
      %v1705 = vsel %vm1479, %v1673, %v1655
      %v1706 = vsel %vm1479, %v1674, %v1656
      %v1707 = vsel %vm1479, %v1675, %v1657
      %v1708 = vsel %vm1479, %v1676, %v1658
      %v1709 = vsel %vm1479, %v1677, %v1659
      %v1710 = vsel %vm1479, %v1678, %v1660
      %v1711 = vsel %vm1479, %v1679, %v1661
      %v1712 = vsel %vm1479, %v1630, %v1662
      %v1713 = vsel %vm1479, %v1631, %v1663
      %v1714 = vsel %vm1479, %v1632, %v1664
      %v1715 = vsel %vm1479, %v1633, %v1665
      %v1716 = vsel %vm1479, %v1634, %v1666
      %v1717 = vsel %vm1479, %v1635, %v1667
      %v1718 = vsel %vm1479, %v1636, %v1668
      %v1719 = vsel %vm1479, %v1637, %v1669
      %v1720 = vsel %vm1479, %v1638, %v1670
      %v1721 = vsel %vm1479, %v1639, %v1671
      %v1722 = vsel %vm1479, %v1640, %v1672
      %v1723 = vsel %vm1479, %v1641, %v1673
      %v1724 = vsel %vm1479, %v1642, %v1674
      %v1725 = vsel %vm1479, %v1643, %v1675
      %v1726 = vsel %vm1479, %v1644, %v1676
      %v1727 = vsel %vm1479, %v1645, %v1677
      %v1728 = vsel %vm1479, %v1646, %v1678
      %v1729 = vsel %vm1479, %v1647, %v1679
      %v1730 = vld [vmem:[%s5] sm:$0xff]
      %v1731 = vld [vmem:[%s5 + $0x8] sm:$0xff]
      %v1732 = vld [vmem:[%s5 + $0x10] sm:$0xff]
      %v1733 = vld [vmem:[%s5 + $0x18] sm:$0xff]
      %v1734 = vld [vmem:[%s5 + $0x20] sm:$0xff]
      %v1735 = vld [vmem:[%s5 + $0x28] sm:$0xff]
      %v1736 = vld [vmem:[%s5 + $0x30] sm:$0xff]
      %v1737 = vld [vmem:[%s5 + $0x38] sm:$0xff]
      %v1738 = vld [vmem:[%s5 + $0x40] sm:$0xff]
      %v1739 = vld [vmem:[%s5 + $0x48] sm:$0xff]
      %v1740 = vld [vmem:[%s5 + $0x50] sm:$0xff]
      %v1741 = vld [vmem:[%s5 + $0x58] sm:$0xff]
      %v1742 = vld [vmem:[%s5 + $0x60] sm:$0xff]
      %v1743 = vld [vmem:[%s5 + $0x68] sm:$0xff]
      %v1744 = vld [vmem:[%s5 + $0x70] sm:$0xff]
      %v1745 = vld [vmem:[%s5 + $0x78] sm:$0xff]
      %v1746 = vld [vmem:[%s5 + $0x80] sm:$0xff]
      %v1747 = vld [vmem:[%s5 + $0x88] sm:$0xff]
      %v1748 = vld [vmem:[%s5 + $0x90] sm:$0xff]
      %v1749 = vld [vmem:[%s5 + $0x98] sm:$0xff]
      %v1750 = vld [vmem:[%s5 + $0xa0] sm:$0xff]
      %v1751 = vld [vmem:[%s5 + $0xa8] sm:$0xff]
      %v1752 = vld [vmem:[%s5 + $0xb0] sm:$0xff]
      %v1753 = vld [vmem:[%s5 + $0xb8] sm:$0xff]
      %v1754 = vld [vmem:[%s5 + $0xc0] sm:$0xff]
      %v1755 = vld [vmem:[%s5 + $0xc8] sm:$0xff]
      %v1756 = vld [vmem:[%s5 + $0xd0] sm:$0xff]
      %v1757 = vld [vmem:[%s5 + $0xd8] sm:$0xff]
      %v1758 = vld [vmem:[%s5 + $0xe0] sm:$0xff]
      %v1759 = vld [vmem:[%s5 + $0xe8] sm:$0xff]
      %v1760 = vld [vmem:[%s5 + $0xf0] sm:$0xff]
      %v1761 = vld [vmem:[%s5 + $0xf8] sm:$0xff]
      %v1762 = vld [vmem:[%s5 + $0x100] sm:$0xff]
      %v1763 = vld [vmem:[%s5 + $0x108] sm:$0xff]
      %v1764 = vld [vmem:[%s5 + $0x110] sm:$0xff]
      %v1765 = vld [vmem:[%s5 + $0x118] sm:$0xff]
      %v1766 = vld [vmem:[%s5 + $0x120] sm:$0xff]
      %v1767 = vld [vmem:[%s5 + $0x128] sm:$0xff]
      %v1768 = vld [vmem:[%s5 + $0x130] sm:$0xff]
      %v1769 = vld [vmem:[%s5 + $0x138] sm:$0xff]
      %v1770 = vld [vmem:[%s5 + $0x140] sm:$0xff]
      %v1771 = vld [vmem:[%s5 + $0x148] sm:$0xff]
      %v1772 = vld [vmem:[%s5 + $0x150] sm:$0xff]
      %v1773 = vld [vmem:[%s5 + $0x158] sm:$0xff]
      %v1774 = vld [vmem:[%s5 + $0x160] sm:$0xff]
      %v1775 = vld [vmem:[%s5 + $0x168] sm:$0xff]
      %v1776 = vld [vmem:[%s5 + $0x170] sm:$0xff]
      %v1777 = vld [vmem:[%s5 + $0x178] sm:$0xff]
      %v1778 = vld [vmem:[%s5 + $0x180] sm:$0xff]
      %v1779 = vld [vmem:[%s5 + $0x188] sm:$0xff]
      %v1780 = vmul.f32 %v1680, %v1730
      %v1781 = vmul.f32 %v1681, %v1731
      %v1782 = vmul.f32 %v1682, %v1732
      %v1783 = vmul.f32 %v1683, %v1733
      %v1784 = vmul.f32 %v1684, %v1734
      %v1785 = vmul.f32 %v1685, %v1735
      %v1786 = vmul.f32 %v1686, %v1736
      %v1787 = vmul.f32 %v1687, %v1737
      %v1788 = vmul.f32 %v1688, %v1738
      %v1789 = vmul.f32 %v1689, %v1739
      %v1790 = vmul.f32 %v1690, %v1740
      %v1791 = vmul.f32 %v1691, %v1741
      %v1792 = vmul.f32 %v1692, %v1742
      %v1793 = vmul.f32 %v1693, %v1743
      %v1794 = vmul.f32 %v1694, %v1744
      %v1795 = vmul.f32 %v1695, %v1745
      %v1796 = vmul.f32 %v1696, %v1746
      %v1797 = vmul.f32 %v1697, %v1747
      %v1798 = vmul.f32 %v1698, %v1748
      %v1799 = vmul.f32 %v1699, %v1749
      %v1800 = vmul.f32 %v1700, %v1750
      %v1801 = vmul.f32 %v1701, %v1751
      %v1802 = vmul.f32 %v1702, %v1752
      %v1803 = vmul.f32 %v1703, %v1753
      %v1804 = vmul.f32 %v1704, %v1754
      %v1805 = vmul.f32 %v1705, %v1755
      %v1806 = vmul.f32 %v1706, %v1756
      %v1807 = vmul.f32 %v1707, %v1757
      %v1808 = vmul.f32 %v1708, %v1758
      %v1809 = vmul.f32 %v1709, %v1759
      %v1810 = vmul.f32 %v1710, %v1760
      %v1811 = vmul.f32 %v1711, %v1761
      %v1812 = vmul.f32 %v1712, %v1762
      %v1813 = vmul.f32 %v1713, %v1763
      %v1814 = vmul.f32 %v1714, %v1764
      %v1815 = vmul.f32 %v1715, %v1765
      %v1816 = vmul.f32 %v1716, %v1766
      %v1817 = vmul.f32 %v1717, %v1767
      %v1818 = vmul.f32 %v1718, %v1768
      %v1819 = vmul.f32 %v1719, %v1769
      %v1820 = vmul.f32 %v1720, %v1770
      %v1821 = vmul.f32 %v1721, %v1771
      %v1822 = vmul.f32 %v1722, %v1772
      %v1823 = vmul.f32 %v1723, %v1773
      %v1824 = vmul.f32 %v1724, %v1774
      %v1825 = vmul.f32 %v1725, %v1775
      %v1826 = vmul.f32 %v1726, %v1776
      %v1827 = vmul.f32 %v1727, %v1777
      %v1828 = vmul.f32 %v1728, %v1778
      %v1829 = vmul.f32 %v1729, %v1779
      %v1830 = vld [vmem:[%s6] sm:$0xff]
      %v1831 = vld [vmem:[%s6 + $0x8] sm:$0xff]
      %v1832 = vld [vmem:[%s6 + $0x10] sm:$0xff]
      %v1833 = vld [vmem:[%s6 + $0x18] sm:$0xff]
      %v1834 = vld [vmem:[%s6 + $0x20] sm:$0xff]
      %v1835 = vld [vmem:[%s6 + $0x28] sm:$0xff]
      %v1836 = vld [vmem:[%s6 + $0x30] sm:$0xff]
      %v1837 = vld [vmem:[%s6 + $0x38] sm:$0xff]
      %v1838 = vld [vmem:[%s6 + $0x40] sm:$0xff]
      %v1839 = vld [vmem:[%s6 + $0x48] sm:$0xff]
      %v1840 = vld [vmem:[%s6 + $0x50] sm:$0xff]
      %v1841 = vld [vmem:[%s6 + $0x58] sm:$0xff]
      %v1842 = vld [vmem:[%s6 + $0x60] sm:$0xff]
      %v1843 = vld [vmem:[%s6 + $0x68] sm:$0xff]
      %v1844 = vld [vmem:[%s6 + $0x70] sm:$0xff]
      %v1845 = vld [vmem:[%s6 + $0x78] sm:$0xff]
      %v1846 = vld [vmem:[%s6 + $0x80] sm:$0xff]
      %v1847 = vld [vmem:[%s6 + $0x88] sm:$0xff]
      %v1848 = vld [vmem:[%s6 + $0x90] sm:$0xff]
      %v1849 = vld [vmem:[%s6 + $0x98] sm:$0xff]
      %v1850 = vld [vmem:[%s6 + $0xa0] sm:$0xff]
      %v1851 = vld [vmem:[%s6 + $0xa8] sm:$0xff]
      %v1852 = vld [vmem:[%s6 + $0xb0] sm:$0xff]
      %v1853 = vld [vmem:[%s6 + $0xb8] sm:$0xff]
      %v1854 = vld [vmem:[%s6 + $0xc0] sm:$0xff]
      %v1855 = vld [vmem:[%s6 + $0xc8] sm:$0xff]
      %v1856 = vld [vmem:[%s6 + $0xd0] sm:$0xff]
      %v1857 = vld [vmem:[%s6 + $0xd8] sm:$0xff]
      %v1858 = vld [vmem:[%s6 + $0xe0] sm:$0xff]
      %v1859 = vld [vmem:[%s6 + $0xe8] sm:$0xff]
      %v1860 = vld [vmem:[%s6 + $0xf0] sm:$0xff]
      %v1861 = vld [vmem:[%s6 + $0xf8] sm:$0xff]
      %v1862 = vld [vmem:[%s6 + $0x100] sm:$0xff]
      %v1863 = vld [vmem:[%s6 + $0x108] sm:$0xff]
      %v1864 = vld [vmem:[%s6 + $0x110] sm:$0xff]
      %v1865 = vld [vmem:[%s6 + $0x118] sm:$0xff]
      %v1866 = vld [vmem:[%s6 + $0x120] sm:$0xff]
      %v1867 = vld [vmem:[%s6 + $0x128] sm:$0xff]
      %v1868 = vld [vmem:[%s6 + $0x130] sm:$0xff]
      %v1869 = vld [vmem:[%s6 + $0x138] sm:$0xff]
      %v1870 = vld [vmem:[%s6 + $0x140] sm:$0xff]
      %v1871 = vld [vmem:[%s6 + $0x148] sm:$0xff]
      %v1872 = vld [vmem:[%s6 + $0x150] sm:$0xff]
      %v1873 = vld [vmem:[%s6 + $0x158] sm:$0xff]
      %v1874 = vld [vmem:[%s6 + $0x160] sm:$0xff]
      %v1875 = vld [vmem:[%s6 + $0x168] sm:$0xff]
      %v1876 = vld [vmem:[%s6 + $0x170] sm:$0xff]
      %v1877 = vld [vmem:[%s6 + $0x178] sm:$0xff]
      %v1878 = vld [vmem:[%s6 + $0x180] sm:$0xff]
      %v1879 = vld [vmem:[%s6 + $0x188] sm:$0xff]
      %v1880 = vadd.f32 %v1780, %v1830
      %v1881 = vadd.f32 %v1781, %v1831
      %v1882 = vadd.f32 %v1782, %v1832
      %v1883 = vadd.f32 %v1783, %v1833
      %v1884 = vadd.f32 %v1784, %v1834
      %v1885 = vadd.f32 %v1785, %v1835
      %v1886 = vadd.f32 %v1786, %v1836
      %v1887 = vadd.f32 %v1787, %v1837
      %v1888 = vadd.f32 %v1788, %v1838
      %v1889 = vadd.f32 %v1789, %v1839
      %v1890 = vadd.f32 %v1790, %v1840
      %v1891 = vadd.f32 %v1791, %v1841
      %v1892 = vadd.f32 %v1792, %v1842
      %v1893 = vadd.f32 %v1793, %v1843
      %v1894 = vadd.f32 %v1794, %v1844
      %v1895 = vadd.f32 %v1795, %v1845
      %v1896 = vadd.f32 %v1796, %v1846
      %v1897 = vadd.f32 %v1797, %v1847
      %v1898 = vadd.f32 %v1798, %v1848
      %v1899 = vadd.f32 %v1799, %v1849
      %v1900 = vadd.f32 %v1800, %v1850
      %v1901 = vadd.f32 %v1801, %v1851
      %v1902 = vadd.f32 %v1802, %v1852
      %v1903 = vadd.f32 %v1803, %v1853
      %v1904 = vadd.f32 %v1804, %v1854
      %v1905 = vadd.f32 %v1805, %v1855
      %v1906 = vadd.f32 %v1806, %v1856
      %v1907 = vadd.f32 %v1807, %v1857
      %v1908 = vadd.f32 %v1808, %v1858
      %v1909 = vadd.f32 %v1809, %v1859
      %v1910 = vadd.f32 %v1810, %v1860
      %v1911 = vadd.f32 %v1811, %v1861
      %v1912 = vadd.f32 %v1812, %v1862
      %v1913 = vadd.f32 %v1813, %v1863
      %v1914 = vadd.f32 %v1814, %v1864
      %v1915 = vadd.f32 %v1815, %v1865
      %v1916 = vadd.f32 %v1816, %v1866
      %v1917 = vadd.f32 %v1817, %v1867
      %v1918 = vadd.f32 %v1818, %v1868
      %v1919 = vadd.f32 %v1819, %v1869
      %v1920 = vadd.f32 %v1820, %v1870
      %v1921 = vadd.f32 %v1821, %v1871
      %v1922 = vadd.f32 %v1822, %v1872
      %v1923 = vadd.f32 %v1823, %v1873
      %v1924 = vadd.f32 %v1824, %v1874
      %v1925 = vadd.f32 %v1825, %v1875
      %v1926 = vadd.f32 %v1826, %v1876
      %v1927 = vadd.f32 %v1827, %v1877
      %v1928 = vadd.f32 %v1828, %v1878
      %v1929 = vadd.f32 %v1829, %v1879
      %v1930 = vld [vmem:[%s7] sm:$0x3]
      %v1931 = vld [vmem:[%s8] sm:$0x1]
      %v1933 = vlaneseq
      %v1934 = vshrl.u32 %v1933, 7
      %v1935 = vsub.s32 0, %v1934
      %v1936 = vrot.slane %v1931, %v1935
      %v1939 = vsel %vm1127, %v739, 0
      %v1942 = vsel %vm1127, %v687, 0
      %v1945 = vsel %vm1127, %v688, 0
      %v1948 = vsel %vm1127, %v689, 0
      %v1951 = vsel %vm1127, %v690, 0
      %v1954 = vsel %vm1127, %v691, 0
      %v1957 = vsel %vm1127, %v692, 0
      %v1960 = vsel %vm1127, %v693, 0
      %v1963 = vsel %vm1127, %v694, 0
      %v1966 = vsel %vm1127, %v695, 0
      %v1969 = vsel %vm1127, %v696, 0
      %v1972 = vsel %vm1127, %v697, 0
      %v1975 = vsel %vm1127, %v698, 0
      %v1978 = vsel %vm1127, %v699, 0
      %v1981 = vsel %vm1127, %v700, 0
      %v1984 = vsel %vm1127, %v701, 0
      %v1987 = vsel %vm1127, %v702, 0
      %v1990 = vsel %vm1127, %v703, 0
      %v1993 = vsel %vm1127, %v704, 0
      %v1996 = vsel %vm1127, %v705, 0
      %v1999 = vsel %vm1127, %v706, 0
      %v2002 = vsel %vm1127, %v707, 0
      %v2005 = vsel %vm1127, %v708, 0
      %v2008 = vsel %vm1127, %v709, 0
      %v2011 = vsel %vm1127, %v710, 0
      %v2014 = vsel %vm1203, %v1930, 0
      %2016 = vmatprep.subr.bf16.mxu0 0
      %2017 = vmatpush1.bf16.msra.mxu0 %v2014
      %2018 = vmatprep.subr.bf16.mxu0 0
      %2019 = vmatpush1.bf16.msra.mxu0 0
      %2020 = vmatprep.subr.bf16.mxu0 0
      %2021 = vmatpush1.bf16.msra.mxu0 0
      %2022 = vmatprep.subr.bf16.mxu0 0
      %2023 = vmatpush1.bf16.msra.mxu0 0
      %2024 = vmatprep.subr.bf16.mxu0 0
      %2025 = vmatpush1.bf16.msra.mxu0 0
      %2026 = vmatprep.subr.bf16.mxu0 0
      %2027 = vmatpush1.bf16.msra.mxu0 0
      %2028 = vmatprep.subr.bf16.mxu0 0
      %2029 = vmatpush1.bf16.msra.mxu0 0
      %2030 = vmatprep.subr.bf16.mxu0 0
      %2031 = vmatpush1.bf16.msra.mxu0 0
      %2032 = vmatprep.subr.bf16.mxu0 0
      %2033 = vmatpush1.bf16.msra.mxu0 0
      %2034 = vmatprep.subr.bf16.mxu0 0
      %2035 = vmatpush1.bf16.msra.mxu0 0
      %2036 = vmatprep.subr.bf16.mxu0 0
      %2037 = vmatpush1.bf16.msra.mxu0 0
      %2038 = vmatprep.subr.bf16.mxu0 0
      %2039 = vmatpush1.bf16.msra.mxu0 0
      %2040 = vmatprep.subr.bf16.mxu0 0
      %2041 = vmatpush1.bf16.msra.mxu0 0
      %2042 = vmatprep.subr.bf16.mxu0 0
      %2043 = vmatpush1.bf16.msra.mxu0 0
      %2044 = vmatprep.subr.bf16.mxu0 0
      %2045 = vmatpush1.bf16.msra.mxu0 0
      %2046 = vmatprep.subr.bf16.mxu0 0
      %2047 = vmatpush1.bf16.msra.mxu0 0
      %2048 = vmatprep.mubr.bf16.mxu0 0
      %2049 = vmatmul.mubr.bf16.gmra.mrb[0].mxu0 %v1939
      %v2050 = vpop.f32.mrb[0].mxu0
      %v2051 = vadd.f32 %v1936, %v2050
      %v2052 = vpop.f32.mrb[0].mxu0
      %v2053 = vpop.f32.mrb[0].mxu0
      %v2054 = vadd.f32 %v1936, %v2053
      %v2055 = vpop.f32.mrb[0].mxu0
      %2056 = vmatprep.mubr.bf16.mxu0 0
      %2057 = vmatmul.mubr.bf16.gmra.mrb[0].mxu0 %v1942
      %v2058 = vpop.f32.mrb[0].mxu0
      %v2059 = vadd.f32 %v1936, %v2058
      %v2060 = vpop.f32.mrb[0].mxu0
      %v2061 = vpop.f32.mrb[0].mxu0
      %v2062 = vadd.f32 %v1936, %v2061
      %v2063 = vpop.f32.mrb[0].mxu0
      %2064 = vmatprep.mubr.bf16.mxu0 0
      %2065 = vmatmul.mubr.bf16.gmra.mrb[0].mxu0 %v1945
      %v2066 = vpop.f32.mrb[0].mxu0
      %v2067 = vadd.f32 %v1936, %v2066
      %v2068 = vpop.f32.mrb[0].mxu0
      %v2069 = vpop.f32.mrb[0].mxu0
      %v2070 = vadd.f32 %v1936, %v2069
      %v2071 = vpop.f32.mrb[0].mxu0
      %2072 = vmatprep.mubr.bf16.mxu0 0
      %2073 = vmatmul.mubr.bf16.gmra.mrb[0].mxu0 %v1948
      %v2074 = vpop.f32.mrb[0].mxu0
      %v2075 = vadd.f32 %v1936, %v2074
      %v2076 = vpop.f32.mrb[0].mxu0
      %v2077 = vpop.f32.mrb[0].mxu0
      %v2078 = vadd.f32 %v1936, %v2077
      %v2079 = vpop.f32.mrb[0].mxu0
      %2080 = vmatprep.mubr.bf16.mxu0 0
      %2081 = vmatmul.mubr.bf16.gmra.mrb[0].mxu0 %v1951
      %v2082 = vpop.f32.mrb[0].mxu0
      %v2083 = vadd.f32 %v1936, %v2082
      %v2084 = vpop.f32.mrb[0].mxu0
      %v2085 = vpop.f32.mrb[0].mxu0
      %v2086 = vadd.f32 %v1936, %v2085
      %v2087 = vpop.f32.mrb[0].mxu0
      %2088 = vmatprep.mubr.bf16.mxu0 0
      %2089 = vmatmul.mubr.bf16.gmra.mrb[0].mxu0 %v1954
      %v2090 = vpop.f32.mrb[0].mxu0
      %v2091 = vadd.f32 %v1936, %v2090
      %v2092 = vpop.f32.mrb[0].mxu0
      %v2093 = vpop.f32.mrb[0].mxu0
      %v2094 = vadd.f32 %v1936, %v2093
      %v2095 = vpop.f32.mrb[0].mxu0
      %2096 = vmatprep.mubr.bf16.mxu0 0
      %2097 = vmatmul.mubr.bf16.gmra.mrb[0].mxu0 %v1957
      %v2098 = vpop.f32.mrb[0].mxu0
      %v2099 = vadd.f32 %v1936, %v2098
      %v2100 = vpop.f32.mrb[0].mxu0
      %v2101 = vpop.f32.mrb[0].mxu0
      %v2102 = vadd.f32 %v1936, %v2101
      %v2103 = vpop.f32.mrb[0].mxu0
      %2104 = vmatprep.mubr.bf16.mxu0 0
      %2105 = vmatmul.mubr.bf16.gmra.mrb[0].mxu0 %v1960
      %v2106 = vpop.f32.mrb[0].mxu0
      %v2107 = vadd.f32 %v1936, %v2106
      %v2108 = vpop.f32.mrb[0].mxu0
      %v2109 = vpop.f32.mrb[0].mxu0
      %v2110 = vadd.f32 %v1936, %v2109
      %v2111 = vpop.f32.mrb[0].mxu0
      %2112 = vmatprep.mubr.bf16.mxu0 0
      %2113 = vmatmul.mubr.bf16.gmra.mrb[0].mxu0 %v1963
      %v2114 = vpop.f32.mrb[0].mxu0
      %v2115 = vadd.f32 %v1936, %v2114
      %v2116 = vpop.f32.mrb[0].mxu0
      %v2117 = vpop.f32.mrb[0].mxu0
      %v2118 = vadd.f32 %v1936, %v2117
      %v2119 = vpop.f32.mrb[0].mxu0
      %2120 = vmatprep.mubr.bf16.mxu0 0
      %2121 = vmatmul.mubr.bf16.gmra.mrb[0].mxu0 %v1966
      %v2122 = vpop.f32.mrb[0].mxu0
      %v2123 = vadd.f32 %v1936, %v2122
      %v2124 = vpop.f32.mrb[0].mxu0
      %v2125 = vpop.f32.mrb[0].mxu0
      %v2126 = vadd.f32 %v1936, %v2125
      %v2127 = vpop.f32.mrb[0].mxu0
      %2128 = vmatprep.mubr.bf16.mxu0 0
      %2129 = vmatmul.mubr.bf16.gmra.mrb[0].mxu0 %v1969
      %v2130 = vpop.f32.mrb[0].mxu0
      %v2131 = vadd.f32 %v1936, %v2130
      %v2132 = vpop.f32.mrb[0].mxu0
      %v2133 = vpop.f32.mrb[0].mxu0
      %v2134 = vadd.f32 %v1936, %v2133
      %v2135 = vpop.f32.mrb[0].mxu0
      %2136 = vmatprep.mubr.bf16.mxu0 0
      %2137 = vmatmul.mubr.bf16.gmra.mrb[0].mxu0 %v1972
      %v2138 = vpop.f32.mrb[0].mxu0
      %v2139 = vadd.f32 %v1936, %v2138
      %v2140 = vpop.f32.mrb[0].mxu0
      %v2141 = vpop.f32.mrb[0].mxu0
      %v2142 = vadd.f32 %v1936, %v2141
      %v2143 = vpop.f32.mrb[0].mxu0
      %2144 = vmatprep.mubr.bf16.mxu0 0
      %2145 = vmatmul.mubr.bf16.gmra.mrb[0].mxu0 %v1975
      %v2146 = vpop.f32.mrb[0].mxu0
      %v2147 = vadd.f32 %v1936, %v2146
      %v2148 = vpop.f32.mrb[0].mxu0
      %v2149 = vpop.f32.mrb[0].mxu0
      %v2150 = vadd.f32 %v1936, %v2149
      %v2151 = vpop.f32.mrb[0].mxu0
      %2152 = vmatprep.mubr.bf16.mxu0 0
      %2153 = vmatmul.mubr.bf16.gmra.mrb[0].mxu0 %v1978
      %v2154 = vpop.f32.mrb[0].mxu0
      %v2155 = vadd.f32 %v1936, %v2154
      %v2156 = vpop.f32.mrb[0].mxu0
      %v2157 = vpop.f32.mrb[0].mxu0
      %v2158 = vadd.f32 %v1936, %v2157
      %v2159 = vpop.f32.mrb[0].mxu0
      %2160 = vmatprep.mubr.bf16.mxu0 0
      %2161 = vmatmul.mubr.bf16.gmra.mrb[0].mxu0 %v1981
      %v2162 = vpop.f32.mrb[0].mxu0
      %v2163 = vadd.f32 %v1936, %v2162
      %v2164 = vpop.f32.mrb[0].mxu0
      %v2165 = vpop.f32.mrb[0].mxu0
      %v2166 = vadd.f32 %v1936, %v2165
      %v2167 = vpop.f32.mrb[0].mxu0
      %2168 = vmatprep.mubr.bf16.mxu0 0
      %2169 = vmatmul.mubr.bf16.gmra.mrb[0].mxu0 %v1984
      %v2170 = vpop.f32.mrb[0].mxu0
      %v2171 = vadd.f32 %v1936, %v2170
      %v2172 = vpop.f32.mrb[0].mxu0
      %v2173 = vpop.f32.mrb[0].mxu0
      %v2174 = vadd.f32 %v1936, %v2173
      %v2175 = vpop.f32.mrb[0].mxu0
      %2176 = vmatprep.mubr.bf16.mxu0 0
      %2177 = vmatmul.mubr.bf16.gmra.mrb[0].mxu0 %v1987
      %v2178 = vpop.f32.mrb[0].mxu0
      %v2179 = vadd.f32 %v1936, %v2178
      %v2180 = vpop.f32.mrb[0].mxu0
      %v2181 = vpop.f32.mrb[0].mxu0
      %v2182 = vadd.f32 %v1936, %v2181
      %v2183 = vpop.f32.mrb[0].mxu0
      %2184 = vmatprep.mubr.bf16.mxu0 0
      %2185 = vmatmul.mubr.bf16.gmra.mrb[0].mxu0 %v1990
      %v2186 = vpop.f32.mrb[0].mxu0
      %v2187 = vadd.f32 %v1936, %v2186
      %v2188 = vpop.f32.mrb[0].mxu0
      %v2189 = vpop.f32.mrb[0].mxu0
      %v2190 = vadd.f32 %v1936, %v2189
      %v2191 = vpop.f32.mrb[0].mxu0
      %2192 = vmatprep.mubr.bf16.mxu0 0
      %2193 = vmatmul.mubr.bf16.gmra.mrb[0].mxu0 %v1993
      %v2194 = vpop.f32.mrb[0].mxu0
      %v2195 = vadd.f32 %v1936, %v2194
      %v2196 = vpop.f32.mrb[0].mxu0
      %v2197 = vpop.f32.mrb[0].mxu0
      %v2198 = vadd.f32 %v1936, %v2197
      %v2199 = vpop.f32.mrb[0].mxu0
      %2200 = vmatprep.mubr.bf16.mxu0 0
      %2201 = vmatmul.mubr.bf16.gmra.mrb[0].mxu0 %v1996
      %v2202 = vpop.f32.mrb[0].mxu0
      %v2203 = vadd.f32 %v1936, %v2202
      %v2204 = vpop.f32.mrb[0].mxu0
      %v2205 = vpop.f32.mrb[0].mxu0
      %v2206 = vadd.f32 %v1936, %v2205
      %v2207 = vpop.f32.mrb[0].mxu0
      %2208 = vmatprep.mubr.bf16.mxu0 0
      %2209 = vmatmul.mubr.bf16.gmra.mrb[0].mxu0 %v1999
      %v2210 = vpop.f32.mrb[0].mxu0
      %v2211 = vadd.f32 %v1936, %v2210
      %v2212 = vpop.f32.mrb[0].mxu0
      %v2213 = vpop.f32.mrb[0].mxu0
      %v2214 = vadd.f32 %v1936, %v2213
      %v2215 = vpop.f32.mrb[0].mxu0
      %2216 = vmatprep.mubr.bf16.mxu0 0
      %2217 = vmatmul.mubr.bf16.gmra.mrb[0].mxu0 %v2002
      %v2218 = vpop.f32.mrb[0].mxu0
      %v2219 = vadd.f32 %v1936, %v2218
      %v2220 = vpop.f32.mrb[0].mxu0
      %v2221 = vpop.f32.mrb[0].mxu0
      %v2222 = vadd.f32 %v1936, %v2221
      %v2223 = vpop.f32.mrb[0].mxu0
      %2224 = vmatprep.mubr.bf16.mxu0 0
      %2225 = vmatmul.mubr.bf16.gmra.mrb[0].mxu0 %v2005
      %v2226 = vpop.f32.mrb[0].mxu0
      %v2227 = vadd.f32 %v1936, %v2226
      %v2228 = vpop.f32.mrb[0].mxu0
      %v2229 = vpop.f32.mrb[0].mxu0
      %v2230 = vadd.f32 %v1936, %v2229
      %v2231 = vpop.f32.mrb[0].mxu0
      %2232 = vmatprep.mubr.bf16.mxu0 0
      %2233 = vmatmul.mubr.bf16.gmra.mrb[0].mxu0 %v2008
      %v2234 = vpop.f32.mrb[0].mxu0
      %v2235 = vadd.f32 %v1936, %v2234
      %v2236 = vpop.f32.mrb[0].mxu0
      %v2237 = vpop.f32.mrb[0].mxu0
      %v2238 = vadd.f32 %v1936, %v2237
      %v2239 = vpop.f32.mrb[0].mxu0
      %2240 = vmatprep.mubr.bf16.mxu0 0
      %2241 = vmatmul.mubr.bf16.gmra.mrb[0].mxu0 %v2011
      %v2242 = vpop.f32.mrb[0].mxu0
      %v2243 = vadd.f32 %v1936, %v2242
      %v2244 = vpop.f32.mrb[0].mxu0
      %v2245 = vpop.f32.mrb[0].mxu0
      %v2246 = vadd.f32 %v1936, %v2245
      %v2247 = vpop.f32.mrb[0].mxu0
      %2248 = vdwg.mxu0
      %v2249 = vadd.f32 %v1880, %v2051
      %v2250 = vadd.f32 %v1881, %v2054
      %v2251 = vadd.f32 %v1882, %v2059
      %v2252 = vadd.f32 %v1883, %v2062
      %v2253 = vadd.f32 %v1884, %v2067
      %v2254 = vadd.f32 %v1885, %v2070
      %v2255 = vadd.f32 %v1886, %v2075
      %v2256 = vadd.f32 %v1887, %v2078
      %v2257 = vadd.f32 %v1888, %v2083
      %v2258 = vadd.f32 %v1889, %v2086
      %v2259 = vadd.f32 %v1890, %v2091
      %v2260 = vadd.f32 %v1891, %v2094
      %v2261 = vadd.f32 %v1892, %v2099
      %v2262 = vadd.f32 %v1893, %v2102
      %v2263 = vadd.f32 %v1894, %v2107
      %v2264 = vadd.f32 %v1895, %v2110
      %v2265 = vadd.f32 %v1896, %v2115
      %v2266 = vadd.f32 %v1897, %v2118
      %v2267 = vadd.f32 %v1898, %v2123
      %v2268 = vadd.f32 %v1899, %v2126
      %v2269 = vadd.f32 %v1900, %v2131
      %v2270 = vadd.f32 %v1901, %v2134
      %v2271 = vadd.f32 %v1902, %v2139
      %v2272 = vadd.f32 %v1903, %v2142
      %v2273 = vadd.f32 %v1904, %v2147
      %v2274 = vadd.f32 %v1905, %v2150
      %v2275 = vadd.f32 %v1906, %v2155
      %v2276 = vadd.f32 %v1907, %v2158
      %v2277 = vadd.f32 %v1908, %v2163
      %v2278 = vadd.f32 %v1909, %v2166
      %v2279 = vadd.f32 %v1910, %v2171
      %v2280 = vadd.f32 %v1911, %v2174
      %v2281 = vadd.f32 %v1912, %v2179
      %v2282 = vadd.f32 %v1913, %v2182
      %v2283 = vadd.f32 %v1914, %v2187
      %v2284 = vadd.f32 %v1915, %v2190
      %v2285 = vadd.f32 %v1916, %v2195
      %v2286 = vadd.f32 %v1917, %v2198
      %v2287 = vadd.f32 %v1918, %v2203
      %v2288 = vadd.f32 %v1919, %v2206
      %v2289 = vadd.f32 %v1920, %v2211
      %v2290 = vadd.f32 %v1921, %v2214
      %v2291 = vadd.f32 %v1922, %v2219
      %v2292 = vadd.f32 %v1923, %v2222
      %v2293 = vadd.f32 %v1924, %v2227
      %v2294 = vadd.f32 %v1925, %v2230
      %v2295 = vadd.f32 %v1926, %v2235
      %v2296 = vadd.f32 %v1927, %v2238
      %v2297 = vadd.f32 %v1928, %v2243
      %v2298 = vadd.f32 %v1929, %v2246
      %v2299 = vmax.f32 %v2249, 0.0
      %v2300 = vmax.f32 %v2250, 0.0
      %v2301 = vmax.f32 %v2251, 0.0
      %v2302 = vmax.f32 %v2252, 0.0
      %v2303 = vmax.f32 %v2253, 0.0
      %v2304 = vmax.f32 %v2254, 0.0
      %v2305 = vmax.f32 %v2255, 0.0
      %v2306 = vmax.f32 %v2256, 0.0
      %v2307 = vmax.f32 %v2257, 0.0
      %v2308 = vmax.f32 %v2258, 0.0
      %v2309 = vmax.f32 %v2259, 0.0
      %v2310 = vmax.f32 %v2260, 0.0
      %v2311 = vmax.f32 %v2261, 0.0
      %v2312 = vmax.f32 %v2262, 0.0
      %v2313 = vmax.f32 %v2263, 0.0
      %v2314 = vmax.f32 %v2264, 0.0
      %v2315 = vmax.f32 %v2265, 0.0
      %v2316 = vmax.f32 %v2266, 0.0
      %v2317 = vmax.f32 %v2267, 0.0
      %v2318 = vmax.f32 %v2268, 0.0
      %v2319 = vmax.f32 %v2269, 0.0
      %v2320 = vmax.f32 %v2270, 0.0
      %v2321 = vmax.f32 %v2271, 0.0
      %v2322 = vmax.f32 %v2272, 0.0
      %v2323 = vmax.f32 %v2273, 0.0
      %v2324 = vmax.f32 %v2274, 0.0
      %v2325 = vmax.f32 %v2275, 0.0
      %v2326 = vmax.f32 %v2276, 0.0
      %v2327 = vmax.f32 %v2277, 0.0
      %v2328 = vmax.f32 %v2278, 0.0
      %v2329 = vmax.f32 %v2279, 0.0
      %v2330 = vmax.f32 %v2280, 0.0
      %v2331 = vmax.f32 %v2281, 0.0
      %v2332 = vmax.f32 %v2282, 0.0
      %v2333 = vmax.f32 %v2283, 0.0
      %v2334 = vmax.f32 %v2284, 0.0
      %v2335 = vmax.f32 %v2285, 0.0
      %v2336 = vmax.f32 %v2286, 0.0
      %v2337 = vmax.f32 %v2287, 0.0
      %v2338 = vmax.f32 %v2288, 0.0
      %v2339 = vmax.f32 %v2289, 0.0
      %v2340 = vmax.f32 %v2290, 0.0
      %v2341 = vmax.f32 %v2291, 0.0
      %v2342 = vmax.f32 %v2292, 0.0
      %v2343 = vmax.f32 %v2293, 0.0
      %v2344 = vmax.f32 %v2294, 0.0
      %v2345 = vmax.f32 %v2295, 0.0
      %v2346 = vmax.f32 %v2296, 0.0
      %v2347 = vmax.f32 %v2297, 0.0
      %v2348 = vmax.f32 %v2298, 0.0
      %v2349 = vpack.c.bf16 %v2300, %v2299
      %v2350 = vpack.c.bf16 %v2302, %v2301
      %v2351 = vpack.c.bf16 %v2304, %v2303
      %v2352 = vpack.c.bf16 %v2306, %v2305
      %v2353 = vpack.c.bf16 %v2308, %v2307
      %v2354 = vpack.c.bf16 %v2310, %v2309
      %v2355 = vpack.c.bf16 %v2312, %v2311
      %v2356 = vpack.c.bf16 %v2314, %v2313
      %v2357 = vpack.c.bf16 %v2316, %v2315
      %v2358 = vpack.c.bf16 %v2318, %v2317
      %v2359 = vpack.c.bf16 %v2320, %v2319
      %v2360 = vpack.c.bf16 %v2322, %v2321
      %v2361 = vpack.c.bf16 %v2324, %v2323
      %v2362 = vpack.c.bf16 %v2326, %v2325
      %v2363 = vpack.c.bf16 %v2328, %v2327
      %v2364 = vpack.c.bf16 %v2330, %v2329
      %v2365 = vpack.c.bf16 %v2332, %v2331
      %v2366 = vpack.c.bf16 %v2334, %v2333
      %v2367 = vpack.c.bf16 %v2336, %v2335
      %v2368 = vpack.c.bf16 %v2338, %v2337
      %v2369 = vpack.c.bf16 %v2340, %v2339
      %v2370 = vpack.c.bf16 %v2342, %v2341
      %v2371 = vpack.c.bf16 %v2344, %v2343
      %v2372 = vpack.c.bf16 %v2346, %v2345
      %v2373 = vpack.c.bf16 %v2348, %v2347
      %v2374 = vld [vmem:[%s9] sm:$0xf]
      %v2375 = vld [vmem:[%s10] sm:$0x1]
      %v2377 = vlaneseq
      %v2378 = vshrl.u32 %v2377, 7
      %v2379 = vsub.s32 0, %v2378
      %v2380 = vrot.slane %v2375, %v2379
      %vm2382 = vcmask 64512
      %v2384 = vsel %vm2382, %v2349, 0
      %v2387 = vsel %vm2382, %v2350, 0
      %v2390 = vsel %vm2382, %v2351, 0
      %v2393 = vsel %vm2382, %v2352, 0
      %v2396 = vsel %vm2382, %v2353, 0
      %v2399 = vsel %vm2382, %v2354, 0
      %v2402 = vsel %vm2382, %v2355, 0
      %v2405 = vsel %vm2382, %v2356, 0
      %v2408 = vsel %vm2382, %v2357, 0
      %v2411 = vsel %vm2382, %v2358, 0
      %v2414 = vsel %vm2382, %v2359, 0
      %v2417 = vsel %vm2382, %v2360, 0
      %v2420 = vsel %vm2382, %v2361, 0
      %v2423 = vsel %vm2382, %v2362, 0
      %v2426 = vsel %vm2382, %v2363, 0
      %v2429 = vsel %vm2382, %v2364, 0
      %v2432 = vsel %vm2382, %v2365, 0
      %v2435 = vsel %vm2382, %v2366, 0
      %v2438 = vsel %vm2382, %v2367, 0
      %v2441 = vsel %vm2382, %v2368, 0
      %v2444 = vsel %vm2382, %v2369, 0
      %v2447 = vsel %vm2382, %v2370, 0
      %v2450 = vsel %vm2382, %v2371, 0
      %v2453 = vsel %vm2382, %v2372, 0
      %v2456 = vsel %vm2382, %v2373, 0
      %vm2458 = vcmask 1043456
      %v2460 = vsel %vm2458, %v2374, 0
      %2462 = vmatprep.subr.bf16.mxu0 0
      %2463 = vmatpush1.bf16.msra.mxu0 %v2460
      %2464 = vmatprep.subr.bf16.mxu0 0
      %2465 = vmatpush1.bf16.msra.mxu0 0
      %2466 = vmatprep.subr.bf16.mxu0 0
      %2467 = vmatpush1.bf16.msra.mxu0 0
      %2468 = vmatprep.subr.bf16.mxu0 0
      %2469 = vmatpush1.bf16.msra.mxu0 0
      %2470 = vmatprep.subr.bf16.mxu0 0
      %2471 = vmatpush1.bf16.msra.mxu0 0
      %2472 = vmatprep.subr.bf16.mxu0 0
      %2473 = vmatpush1.bf16.msra.mxu0 0
      %2474 = vmatprep.subr.bf16.mxu0 0
      %2475 = vmatpush1.bf16.msra.mxu0 0
      %2476 = vmatprep.subr.bf16.mxu0 0
      %2477 = vmatpush1.bf16.msra.mxu0 0
      %2478 = vmatprep.subr.bf16.mxu0 0
      %2479 = vmatpush1.bf16.msra.mxu0 0
      %2480 = vmatprep.subr.bf16.mxu0 0
      %2481 = vmatpush1.bf16.msra.mxu0 0
      %2482 = vmatprep.subr.bf16.mxu0 0
      %2483 = vmatpush1.bf16.msra.mxu0 0
      %2484 = vmatprep.subr.bf16.mxu0 0
      %2485 = vmatpush1.bf16.msra.mxu0 0
      %2486 = vmatprep.subr.bf16.mxu0 0
      %2487 = vmatpush1.bf16.msra.mxu0 0
      %2488 = vmatprep.subr.bf16.mxu0 0
      %2489 = vmatpush1.bf16.msra.mxu0 0
      %2490 = vmatprep.subr.bf16.mxu0 0
      %2491 = vmatpush1.bf16.msra.mxu0 0
      %2492 = vmatprep.subr.bf16.mxu0 0
      %2493 = vmatpush1.bf16.msra.mxu0 0
      %2494 = vmatprep.mubr.bf16.mxu0 0
      %2495 = vmatmul.mubr.bf16.gmra.mrb[0].mxu0 %v2384
      %v2496 = vpop.f32.mrb[0].mxu0
      %v2497 = vadd.f32 %v2380, %v2496
      %v2498 = vpop.f32.mrb[0].mxu0
      %v2499 = vpop.f32.mrb[0].mxu0
      %v2500 = vadd.f32 %v2380, %v2499
      %v2501 = vpop.f32.mrb[0].mxu0
      %2502 = vmatprep.mubr.bf16.mxu0 0
      %2503 = vmatmul.mubr.bf16.gmra.mrb[0].mxu0 %v2387
      %v2504 = vpop.f32.mrb[0].mxu0
      %v2505 = vadd.f32 %v2380, %v2504
      %v2506 = vpop.f32.mrb[0].mxu0
      %v2507 = vpop.f32.mrb[0].mxu0
      %v2508 = vadd.f32 %v2380, %v2507
      %v2509 = vpop.f32.mrb[0].mxu0
      %2510 = vmatprep.mubr.bf16.mxu0 0
      %2511 = vmatmul.mubr.bf16.gmra.mrb[0].mxu0 %v2390
      %v2512 = vpop.f32.mrb[0].mxu0
      %v2513 = vadd.f32 %v2380, %v2512
      %v2514 = vpop.f32.mrb[0].mxu0
      %v2515 = vpop.f32.mrb[0].mxu0
      %v2516 = vadd.f32 %v2380, %v2515
      %v2517 = vpop.f32.mrb[0].mxu0
      %2518 = vmatprep.mubr.bf16.mxu0 0
      %2519 = vmatmul.mubr.bf16.gmra.mrb[0].mxu0 %v2393
      %v2520 = vpop.f32.mrb[0].mxu0
      %v2521 = vadd.f32 %v2380, %v2520
      %v2522 = vpop.f32.mrb[0].mxu0
      %v2523 = vpop.f32.mrb[0].mxu0
      %v2524 = vadd.f32 %v2380, %v2523
      %v2525 = vpop.f32.mrb[0].mxu0
      %2526 = vmatprep.mubr.bf16.mxu0 0
      %2527 = vmatmul.mubr.bf16.gmra.mrb[0].mxu0 %v2396
      %v2528 = vpop.f32.mrb[0].mxu0
      %v2529 = vadd.f32 %v2380, %v2528
      %v2530 = vpop.f32.mrb[0].mxu0
      %v2531 = vpop.f32.mrb[0].mxu0
      %v2532 = vadd.f32 %v2380, %v2531
      %v2533 = vpop.f32.mrb[0].mxu0
      %2534 = vmatprep.mubr.bf16.mxu0 0
      %2535 = vmatmul.mubr.bf16.gmra.mrb[0].mxu0 %v2399
      %v2536 = vpop.f32.mrb[0].mxu0
      %v2537 = vadd.f32 %v2380, %v2536
      %v2538 = vpop.f32.mrb[0].mxu0
      %v2539 = vpop.f32.mrb[0].mxu0
      %v2540 = vadd.f32 %v2380, %v2539
      %v2541 = vpop.f32.mrb[0].mxu0
      %2542 = vmatprep.mubr.bf16.mxu0 0
      %2543 = vmatmul.mubr.bf16.gmra.mrb[0].mxu0 %v2402
      %v2544 = vpop.f32.mrb[0].mxu0
      %v2545 = vadd.f32 %v2380, %v2544
      %v2546 = vpop.f32.mrb[0].mxu0
      %v2547 = vpop.f32.mrb[0].mxu0
      %v2548 = vadd.f32 %v2380, %v2547
      %v2549 = vpop.f32.mrb[0].mxu0
      %2550 = vmatprep.mubr.bf16.mxu0 0
      %2551 = vmatmul.mubr.bf16.gmra.mrb[0].mxu0 %v2405
      %v2552 = vpop.f32.mrb[0].mxu0
      %v2553 = vadd.f32 %v2380, %v2552
      %v2554 = vpop.f32.mrb[0].mxu0
      %v2555 = vpop.f32.mrb[0].mxu0
      %v2556 = vadd.f32 %v2380, %v2555
      %v2557 = vpop.f32.mrb[0].mxu0
      %2558 = vmatprep.mubr.bf16.mxu0 0
      %2559 = vmatmul.mubr.bf16.gmra.mrb[0].mxu0 %v2408
      %v2560 = vpop.f32.mrb[0].mxu0
      %v2561 = vadd.f32 %v2380, %v2560
      %v2562 = vpop.f32.mrb[0].mxu0
      %v2563 = vpop.f32.mrb[0].mxu0
      %v2564 = vadd.f32 %v2380, %v2563
      %v2565 = vpop.f32.mrb[0].mxu0
      %2566 = vmatprep.mubr.bf16.mxu0 0
      %2567 = vmatmul.mubr.bf16.gmra.mrb[0].mxu0 %v2411
      %v2568 = vpop.f32.mrb[0].mxu0
      %v2569 = vadd.f32 %v2380, %v2568
      %v2570 = vpop.f32.mrb[0].mxu0
      %v2571 = vpop.f32.mrb[0].mxu0
      %v2572 = vadd.f32 %v2380, %v2571
      %v2573 = vpop.f32.mrb[0].mxu0
      %2574 = vmatprep.mubr.bf16.mxu0 0
      %2575 = vmatmul.mubr.bf16.gmra.mrb[0].mxu0 %v2414
      %v2576 = vpop.f32.mrb[0].mxu0
      %v2577 = vadd.f32 %v2380, %v2576
      %v2578 = vpop.f32.mrb[0].mxu0
      %v2579 = vpop.f32.mrb[0].mxu0
      %v2580 = vadd.f32 %v2380, %v2579
      %v2581 = vpop.f32.mrb[0].mxu0
      %2582 = vmatprep.mubr.bf16.mxu0 0
      %2583 = vmatmul.mubr.bf16.gmra.mrb[0].mxu0 %v2417
      %v2584 = vpop.f32.mrb[0].mxu0
      %v2585 = vadd.f32 %v2380, %v2584
      %v2586 = vpop.f32.mrb[0].mxu0
      %v2587 = vpop.f32.mrb[0].mxu0
      %v2588 = vadd.f32 %v2380, %v2587
      %v2589 = vpop.f32.mrb[0].mxu0
      %2590 = vmatprep.mubr.bf16.mxu0 0
      %2591 = vmatmul.mubr.bf16.gmra.mrb[0].mxu0 %v2420
      %v2592 = vpop.f32.mrb[0].mxu0
      %v2593 = vadd.f32 %v2380, %v2592
      %v2594 = vpop.f32.mrb[0].mxu0
      %v2595 = vpop.f32.mrb[0].mxu0
      %v2596 = vadd.f32 %v2380, %v2595
      %v2597 = vpop.f32.mrb[0].mxu0
      %2598 = vmatprep.mubr.bf16.mxu0 0
      %2599 = vmatmul.mubr.bf16.gmra.mrb[0].mxu0 %v2423
      %v2600 = vpop.f32.mrb[0].mxu0
      %v2601 = vadd.f32 %v2380, %v2600
      %v2602 = vpop.f32.mrb[0].mxu0
      %v2603 = vpop.f32.mrb[0].mxu0
      %v2604 = vadd.f32 %v2380, %v2603
      %v2605 = vpop.f32.mrb[0].mxu0
      %2606 = vmatprep.mubr.bf16.mxu0 0
      %2607 = vmatmul.mubr.bf16.gmra.mrb[0].mxu0 %v2426
      %v2608 = vpop.f32.mrb[0].mxu0
      %v2609 = vadd.f32 %v2380, %v2608
      %v2610 = vpop.f32.mrb[0].mxu0
      %v2611 = vpop.f32.mrb[0].mxu0
      %v2612 = vadd.f32 %v2380, %v2611
      %v2613 = vpop.f32.mrb[0].mxu0
      %2614 = vmatprep.mubr.bf16.mxu0 0
      %2615 = vmatmul.mubr.bf16.gmra.mrb[0].mxu0 %v2429
      %v2616 = vpop.f32.mrb[0].mxu0
      %v2617 = vadd.f32 %v2380, %v2616
      %v2618 = vpop.f32.mrb[0].mxu0
      %v2619 = vpop.f32.mrb[0].mxu0
      %v2620 = vadd.f32 %v2380, %v2619
      %v2621 = vpop.f32.mrb[0].mxu0
      %2622 = vmatprep.mubr.bf16.mxu0 0
      %2623 = vmatmul.mubr.bf16.gmra.mrb[0].mxu0 %v2432
      %v2624 = vpop.f32.mrb[0].mxu0
      %v2625 = vadd.f32 %v2380, %v2624
      %v2626 = vpop.f32.mrb[0].mxu0
      %v2627 = vpop.f32.mrb[0].mxu0
      %v2628 = vadd.f32 %v2380, %v2627
      %v2629 = vpop.f32.mrb[0].mxu0
      %2630 = vmatprep.mubr.bf16.mxu0 0
      %2631 = vmatmul.mubr.bf16.gmra.mrb[0].mxu0 %v2435
      %v2632 = vpop.f32.mrb[0].mxu0
      %v2633 = vadd.f32 %v2380, %v2632
      %v2634 = vpop.f32.mrb[0].mxu0
      %v2635 = vpop.f32.mrb[0].mxu0
      %v2636 = vadd.f32 %v2380, %v2635
      %v2637 = vpop.f32.mrb[0].mxu0
      %2638 = vmatprep.mubr.bf16.mxu0 0
      %2639 = vmatmul.mubr.bf16.gmra.mrb[0].mxu0 %v2438
      %v2640 = vpop.f32.mrb[0].mxu0
      %v2641 = vadd.f32 %v2380, %v2640
      %v2642 = vpop.f32.mrb[0].mxu0
      %v2643 = vpop.f32.mrb[0].mxu0
      %v2644 = vadd.f32 %v2380, %v2643
      %v2645 = vpop.f32.mrb[0].mxu0
      %2646 = vmatprep.mubr.bf16.mxu0 0
      %2647 = vmatmul.mubr.bf16.gmra.mrb[0].mxu0 %v2441
      %v2648 = vpop.f32.mrb[0].mxu0
      %v2649 = vadd.f32 %v2380, %v2648
      %v2650 = vpop.f32.mrb[0].mxu0
      %v2651 = vpop.f32.mrb[0].mxu0
      %v2652 = vadd.f32 %v2380, %v2651
      %v2653 = vpop.f32.mrb[0].mxu0
      %2654 = vmatprep.mubr.bf16.mxu0 0
      %2655 = vmatmul.mubr.bf16.gmra.mrb[0].mxu0 %v2444
      %v2656 = vpop.f32.mrb[0].mxu0
      %v2657 = vadd.f32 %v2380, %v2656
      %v2658 = vpop.f32.mrb[0].mxu0
      %v2659 = vpop.f32.mrb[0].mxu0
      %v2660 = vadd.f32 %v2380, %v2659
      %v2661 = vpop.f32.mrb[0].mxu0
      %2662 = vmatprep.mubr.bf16.mxu0 0
      %2663 = vmatmul.mubr.bf16.gmra.mrb[0].mxu0 %v2447
      %v2664 = vpop.f32.mrb[0].mxu0
      %v2665 = vadd.f32 %v2380, %v2664
      %v2666 = vpop.f32.mrb[0].mxu0
      %v2667 = vpop.f32.mrb[0].mxu0
      %v2668 = vadd.f32 %v2380, %v2667
      %v2669 = vpop.f32.mrb[0].mxu0
      %2670 = vmatprep.mubr.bf16.mxu0 0
      %2671 = vmatmul.mubr.bf16.gmra.mrb[0].mxu0 %v2450
      %v2672 = vpop.f32.mrb[0].mxu0
      %v2673 = vadd.f32 %v2380, %v2672
      %v2674 = vpop.f32.mrb[0].mxu0
      %v2675 = vpop.f32.mrb[0].mxu0
      %v2676 = vadd.f32 %v2380, %v2675
      %v2677 = vpop.f32.mrb[0].mxu0
      %2678 = vmatprep.mubr.bf16.mxu0 0
      %2679 = vmatmul.mubr.bf16.gmra.mrb[0].mxu0 %v2453
      %v2680 = vpop.f32.mrb[0].mxu0
      %v2681 = vadd.f32 %v2380, %v2680
      %v2682 = vpop.f32.mrb[0].mxu0
      %v2683 = vpop.f32.mrb[0].mxu0
      %v2684 = vadd.f32 %v2380, %v2683
      %v2685 = vpop.f32.mrb[0].mxu0
      %2686 = vmatprep.mubr.bf16.mxu0 0
      %2687 = vmatmul.mubr.bf16.gmra.mrb[0].mxu0 %v2456
      %v2688 = vpop.f32.mrb[0].mxu0
      %v2689 = vadd.f32 %v2380, %v2688
      %v2690 = vpop.f32.mrb[0].mxu0
      %v2691 = vpop.f32.mrb[0].mxu0
      %v2692 = vadd.f32 %v2380, %v2691
      %v2693 = vpop.f32.mrb[0].mxu0
      %2694 = vdwg.mxu0
      %v2695 = vmax.f32 %v2497, 0.0
      %v2696 = vmax.f32 %v2500, 0.0
      %v2697 = vmax.f32 %v2505, 0.0
      %v2698 = vmax.f32 %v2508, 0.0
      %v2699 = vmax.f32 %v2513, 0.0
      %v2700 = vmax.f32 %v2516, 0.0
      %v2701 = vmax.f32 %v2521, 0.0
      %v2702 = vmax.f32 %v2524, 0.0
      %v2703 = vmax.f32 %v2529, 0.0
      %v2704 = vmax.f32 %v2532, 0.0
      %v2705 = vmax.f32 %v2537, 0.0
      %v2706 = vmax.f32 %v2540, 0.0
      %v2707 = vmax.f32 %v2545, 0.0
      %v2708 = vmax.f32 %v2548, 0.0
      %v2709 = vmax.f32 %v2553, 0.0
      %v2710 = vmax.f32 %v2556, 0.0
      %v2711 = vmax.f32 %v2561, 0.0
      %v2712 = vmax.f32 %v2564, 0.0
      %v2713 = vmax.f32 %v2569, 0.0
      %v2714 = vmax.f32 %v2572, 0.0
      %v2715 = vmax.f32 %v2577, 0.0
      %v2716 = vmax.f32 %v2580, 0.0
      %v2717 = vmax.f32 %v2585, 0.0
      %v2718 = vmax.f32 %v2588, 0.0
      %v2719 = vmax.f32 %v2593, 0.0
      %v2720 = vmax.f32 %v2596, 0.0
      %v2721 = vmax.f32 %v2601, 0.0
      %v2722 = vmax.f32 %v2604, 0.0
      %v2723 = vmax.f32 %v2609, 0.0
      %v2724 = vmax.f32 %v2612, 0.0
      %v2725 = vmax.f32 %v2617, 0.0
      %v2726 = vmax.f32 %v2620, 0.0
      %v2727 = vmax.f32 %v2625, 0.0
      %v2728 = vmax.f32 %v2628, 0.0
      %v2729 = vmax.f32 %v2633, 0.0
      %v2730 = vmax.f32 %v2636, 0.0
      %v2731 = vmax.f32 %v2641, 0.0
      %v2732 = vmax.f32 %v2644, 0.0
      %v2733 = vmax.f32 %v2649, 0.0
      %v2734 = vmax.f32 %v2652, 0.0
      %v2735 = vmax.f32 %v2657, 0.0
      %v2736 = vmax.f32 %v2660, 0.0
      %v2737 = vmax.f32 %v2665, 0.0
      %v2738 = vmax.f32 %v2668, 0.0
      %v2739 = vmax.f32 %v2673, 0.0
      %v2740 = vmax.f32 %v2676, 0.0
      %v2741 = vmax.f32 %v2681, 0.0
      %v2742 = vmax.f32 %v2684, 0.0
      %v2743 = vmax.f32 %v2689, 0.0
      %v2744 = vmax.f32 %v2692, 0.0
      %v2745 = vld [vmem:[%s11] sm:$0x1]
      %v2747 = vlaneseq
      %v2748 = vshrl.u32 %v2747, 7
      %v2749 = vsub.s32 0, %v2748
      %v2750 = vrot.slane %v2745, %v2749
      %v2752 = vmul.f32 %v2695, %v2750
      %v2753 = vmul.f32 %v2696, %v2750
      %v2754 = vmul.f32 %v2697, %v2750
      %v2755 = vmul.f32 %v2698, %v2750
      %v2756 = vmul.f32 %v2699, %v2750
      %v2757 = vmul.f32 %v2700, %v2750
      %v2758 = vmul.f32 %v2701, %v2750
      %v2759 = vmul.f32 %v2702, %v2750
      %v2760 = vmul.f32 %v2703, %v2750
      %v2761 = vmul.f32 %v2704, %v2750
      %v2762 = vmul.f32 %v2705, %v2750
      %v2763 = vmul.f32 %v2706, %v2750
      %v2764 = vmul.f32 %v2707, %v2750
      %v2765 = vmul.f32 %v2708, %v2750
      %v2766 = vmul.f32 %v2709, %v2750
      %v2767 = vmul.f32 %v2710, %v2750
      %v2768 = vmul.f32 %v2711, %v2750
      %v2769 = vmul.f32 %v2712, %v2750
      %v2770 = vmul.f32 %v2713, %v2750
      %v2771 = vmul.f32 %v2714, %v2750
      %v2772 = vmul.f32 %v2715, %v2750
      %v2773 = vmul.f32 %v2716, %v2750
      %v2774 = vmul.f32 %v2717, %v2750
      %v2775 = vmul.f32 %v2718, %v2750
      %v2776 = vmul.f32 %v2719, %v2750
      %v2777 = vmul.f32 %v2720, %v2750
      %v2778 = vmul.f32 %v2721, %v2750
      %v2779 = vmul.f32 %v2722, %v2750
      %v2780 = vmul.f32 %v2723, %v2750
      %v2781 = vmul.f32 %v2724, %v2750
      %v2782 = vmul.f32 %v2725, %v2750
      %v2783 = vmul.f32 %v2726, %v2750
      %v2784 = vmul.f32 %v2727, %v2750
      %v2785 = vmul.f32 %v2728, %v2750
      %v2786 = vmul.f32 %v2729, %v2750
      %v2787 = vmul.f32 %v2730, %v2750
      %v2788 = vmul.f32 %v2731, %v2750
      %v2789 = vmul.f32 %v2732, %v2750
      %v2790 = vmul.f32 %v2733, %v2750
      %v2791 = vmul.f32 %v2734, %v2750
      %v2792 = vmul.f32 %v2735, %v2750
      %v2793 = vmul.f32 %v2736, %v2750
      %v2794 = vmul.f32 %v2737, %v2750
      %v2795 = vmul.f32 %v2738, %v2750
      %v2796 = vmul.f32 %v2739, %v2750
      %v2797 = vmul.f32 %v2740, %v2750
      %v2798 = vmul.f32 %v2741, %v2750
      %v2799 = vmul.f32 %v2742, %v2750
      %v2800 = vmul.f32 %v2743, %v2750
      %v2801 = vmul.f32 %v2744, %v2750
      %v2802 = vld [vmem:[%s12] sm:$0x1]
      %v2804 = vlaneseq
      %v2805 = vshrl.u32 %v2804, 7
      %v2806 = vsub.s32 0, %v2805
      %v2807 = vrot.slane %v2802, %v2806
      %v2809 = vadd.f32 %v2752, %v2807
      %v2810 = vadd.f32 %v2753, %v2807
      %v2811 = vadd.f32 %v2754, %v2807
      %v2812 = vadd.f32 %v2755, %v2807
      %v2813 = vadd.f32 %v2756, %v2807
      %v2814 = vadd.f32 %v2757, %v2807
      %v2815 = vadd.f32 %v2758, %v2807
      %v2816 = vadd.f32 %v2759, %v2807
      %v2817 = vadd.f32 %v2760, %v2807
      %v2818 = vadd.f32 %v2761, %v2807
      %v2819 = vadd.f32 %v2762, %v2807
      %v2820 = vadd.f32 %v2763, %v2807
      %v2821 = vadd.f32 %v2764, %v2807
      %v2822 = vadd.f32 %v2765, %v2807
      %v2823 = vadd.f32 %v2766, %v2807
      %v2824 = vadd.f32 %v2767, %v2807
      %v2825 = vadd.f32 %v2768, %v2807
      %v2826 = vadd.f32 %v2769, %v2807
      %v2827 = vadd.f32 %v2770, %v2807
      %v2828 = vadd.f32 %v2771, %v2807
      %v2829 = vadd.f32 %v2772, %v2807
      %v2830 = vadd.f32 %v2773, %v2807
      %v2831 = vadd.f32 %v2774, %v2807
      %v2832 = vadd.f32 %v2775, %v2807
      %v2833 = vadd.f32 %v2776, %v2807
      %v2834 = vadd.f32 %v2777, %v2807
      %v2835 = vadd.f32 %v2778, %v2807
      %v2836 = vadd.f32 %v2779, %v2807
      %v2837 = vadd.f32 %v2780, %v2807
      %v2838 = vadd.f32 %v2781, %v2807
      %v2839 = vadd.f32 %v2782, %v2807
      %v2840 = vadd.f32 %v2783, %v2807
      %v2841 = vadd.f32 %v2784, %v2807
      %v2842 = vadd.f32 %v2785, %v2807
      %v2843 = vadd.f32 %v2786, %v2807
      %v2844 = vadd.f32 %v2787, %v2807
      %v2845 = vadd.f32 %v2788, %v2807
      %v2846 = vadd.f32 %v2789, %v2807
      %v2847 = vadd.f32 %v2790, %v2807
      %v2848 = vadd.f32 %v2791, %v2807
      %v2849 = vadd.f32 %v2792, %v2807
      %v2850 = vadd.f32 %v2793, %v2807
      %v2851 = vadd.f32 %v2794, %v2807
      %v2852 = vadd.f32 %v2795, %v2807
      %v2853 = vadd.f32 %v2796, %v2807
      %v2854 = vadd.f32 %v2797, %v2807
      %v2855 = vadd.f32 %v2798, %v2807
      %v2856 = vadd.f32 %v2799, %v2807
      %v2857 = vadd.f32 %v2800, %v2807
      %v2858 = vadd.f32 %v2801, %v2807
      %v2859 = vld [vmem:[%s13] sm:$0x3]
      %v2860 = vld [vmem:[%s14] sm:$0x1]
      %v2862 = vlaneseq
      %v2863 = vshrl.u32 %v2862, 7
      %v2864 = vsub.s32 0, %v2863
      %v2865 = vrot.slane %v2860, %v2864
      %v2868 = vsel %vm1203, %v2859, 0
      %2870 = vmatprep.subr.bf16.mxu0 0
      %2871 = vmatpush1.bf16.msra.mxu0 %v2868
      %2872 = vmatprep.subr.bf16.mxu0 0
      %2873 = vmatpush1.bf16.msra.mxu0 0
      %2874 = vmatprep.subr.bf16.mxu0 0
      %2875 = vmatpush1.bf16.msra.mxu0 0
      %2876 = vmatprep.subr.bf16.mxu0 0
      %2877 = vmatpush1.bf16.msra.mxu0 0
      %2878 = vmatprep.subr.bf16.mxu0 0
      %2879 = vmatpush1.bf16.msra.mxu0 0
      %2880 = vmatprep.subr.bf16.mxu0 0
      %2881 = vmatpush1.bf16.msra.mxu0 0
      %2882 = vmatprep.subr.bf16.mxu0 0
      %2883 = vmatpush1.bf16.msra.mxu0 0
      %2884 = vmatprep.subr.bf16.mxu0 0
      %2885 = vmatpush1.bf16.msra.mxu0 0
      %2886 = vmatprep.subr.bf16.mxu0 0
      %2887 = vmatpush1.bf16.msra.mxu0 0
      %2888 = vmatprep.subr.bf16.mxu0 0
      %2889 = vmatpush1.bf16.msra.mxu0 0
      %2890 = vmatprep.subr.bf16.mxu0 0
      %2891 = vmatpush1.bf16.msra.mxu0 0
      %2892 = vmatprep.subr.bf16.mxu0 0
      %2893 = vmatpush1.bf16.msra.mxu0 0
      %2894 = vmatprep.subr.bf16.mxu0 0
      %2895 = vmatpush1.bf16.msra.mxu0 0
      %2896 = vmatprep.subr.bf16.mxu0 0
      %2897 = vmatpush1.bf16.msra.mxu0 0
      %2898 = vmatprep.subr.bf16.mxu0 0
      %2899 = vmatpush1.bf16.msra.mxu0 0
      %2900 = vmatprep.subr.bf16.mxu0 0
      %2901 = vmatpush1.bf16.msra.mxu0 0
      %2902 = vmatprep.mubr.bf16.mxu0 0
      %2903 = vmatmul.mubr.bf16.gmra.mrb[0].mxu0 %v1939
      %v2904 = vpop.f32.mrb[0].mxu0
      %v2905 = vadd.f32 %v2865, %v2904
      %v2906 = vpop.f32.mrb[0].mxu0
      %v2907 = vpop.f32.mrb[0].mxu0
      %v2908 = vadd.f32 %v2865, %v2907
      %v2909 = vpop.f32.mrb[0].mxu0
      %2910 = vmatprep.mubr.bf16.mxu0 0
      %2911 = vmatmul.mubr.bf16.gmra.mrb[0].mxu0 %v1942
      %v2912 = vpop.f32.mrb[0].mxu0
      %v2913 = vadd.f32 %v2865, %v2912
      %v2914 = vpop.f32.mrb[0].mxu0
      %v2915 = vpop.f32.mrb[0].mxu0
      %v2916 = vadd.f32 %v2865, %v2915
      %v2917 = vpop.f32.mrb[0].mxu0
      %2918 = vmatprep.mubr.bf16.mxu0 0
      %2919 = vmatmul.mubr.bf16.gmra.mrb[0].mxu0 %v1945
      %v2920 = vpop.f32.mrb[0].mxu0
      %v2921 = vadd.f32 %v2865, %v2920
      %v2922 = vpop.f32.mrb[0].mxu0
      %v2923 = vpop.f32.mrb[0].mxu0
      %v2924 = vadd.f32 %v2865, %v2923
      %v2925 = vpop.f32.mrb[0].mxu0
      %2926 = vmatprep.mubr.bf16.mxu0 0
      %2927 = vmatmul.mubr.bf16.gmra.mrb[0].mxu0 %v1948
      %v2928 = vpop.f32.mrb[0].mxu0
      %v2929 = vadd.f32 %v2865, %v2928
      %v2930 = vpop.f32.mrb[0].mxu0
      %v2931 = vpop.f32.mrb[0].mxu0
      %v2932 = vadd.f32 %v2865, %v2931
      %v2933 = vpop.f32.mrb[0].mxu0
      %2934 = vmatprep.mubr.bf16.mxu0 0
      %2935 = vmatmul.mubr.bf16.gmra.mrb[0].mxu0 %v1951
      %v2936 = vpop.f32.mrb[0].mxu0
      %v2937 = vadd.f32 %v2865, %v2936
      %v2938 = vpop.f32.mrb[0].mxu0
      %v2939 = vpop.f32.mrb[0].mxu0
      %v2940 = vadd.f32 %v2865, %v2939
      %v2941 = vpop.f32.mrb[0].mxu0
      %2942 = vmatprep.mubr.bf16.mxu0 0
      %2943 = vmatmul.mubr.bf16.gmra.mrb[0].mxu0 %v1954
      %v2944 = vpop.f32.mrb[0].mxu0
      %v2945 = vadd.f32 %v2865, %v2944
      %v2946 = vpop.f32.mrb[0].mxu0
      %v2947 = vpop.f32.mrb[0].mxu0
      %v2948 = vadd.f32 %v2865, %v2947
      %v2949 = vpop.f32.mrb[0].mxu0
      %2950 = vmatprep.mubr.bf16.mxu0 0
      %2951 = vmatmul.mubr.bf16.gmra.mrb[0].mxu0 %v1957
      %v2952 = vpop.f32.mrb[0].mxu0
      %v2953 = vadd.f32 %v2865, %v2952
      %v2954 = vpop.f32.mrb[0].mxu0
      %v2955 = vpop.f32.mrb[0].mxu0
      %v2956 = vadd.f32 %v2865, %v2955
      %v2957 = vpop.f32.mrb[0].mxu0
      %2958 = vmatprep.mubr.bf16.mxu0 0
      %2959 = vmatmul.mubr.bf16.gmra.mrb[0].mxu0 %v1960
      %v2960 = vpop.f32.mrb[0].mxu0
      %v2961 = vadd.f32 %v2865, %v2960
      %v2962 = vpop.f32.mrb[0].mxu0
      %v2963 = vpop.f32.mrb[0].mxu0
      %v2964 = vadd.f32 %v2865, %v2963
      %v2965 = vpop.f32.mrb[0].mxu0
      %2966 = vmatprep.mubr.bf16.mxu0 0
      %2967 = vmatmul.mubr.bf16.gmra.mrb[0].mxu0 %v1963
      %v2968 = vpop.f32.mrb[0].mxu0
      %v2969 = vadd.f32 %v2865, %v2968
      %v2970 = vpop.f32.mrb[0].mxu0
      %v2971 = vpop.f32.mrb[0].mxu0
      %v2972 = vadd.f32 %v2865, %v2971
      %v2973 = vpop.f32.mrb[0].mxu0
      %2974 = vmatprep.mubr.bf16.mxu0 0
      %2975 = vmatmul.mubr.bf16.gmra.mrb[0].mxu0 %v1966
      %v2976 = vpop.f32.mrb[0].mxu0
      %v2977 = vadd.f32 %v2865, %v2976
      %v2978 = vpop.f32.mrb[0].mxu0
      %v2979 = vpop.f32.mrb[0].mxu0
      %v2980 = vadd.f32 %v2865, %v2979
      %v2981 = vpop.f32.mrb[0].mxu0
      %2982 = vmatprep.mubr.bf16.mxu0 0
      %2983 = vmatmul.mubr.bf16.gmra.mrb[0].mxu0 %v1969
      %v2984 = vpop.f32.mrb[0].mxu0
      %v2985 = vadd.f32 %v2865, %v2984
      %v2986 = vpop.f32.mrb[0].mxu0
      %v2987 = vpop.f32.mrb[0].mxu0
      %v2988 = vadd.f32 %v2865, %v2987
      %v2989 = vpop.f32.mrb[0].mxu0
      %2990 = vmatprep.mubr.bf16.mxu0 0
      %2991 = vmatmul.mubr.bf16.gmra.mrb[0].mxu0 %v1972
      %v2992 = vpop.f32.mrb[0].mxu0
      %v2993 = vadd.f32 %v2865, %v2992
      %v2994 = vpop.f32.mrb[0].mxu0
      %v2995 = vpop.f32.mrb[0].mxu0
      %v2996 = vadd.f32 %v2865, %v2995
      %v2997 = vpop.f32.mrb[0].mxu0
      %2998 = vmatprep.mubr.bf16.mxu0 0
      %2999 = vmatmul.mubr.bf16.gmra.mrb[0].mxu0 %v1975
      %v3000 = vpop.f32.mrb[0].mxu0
      %v3001 = vadd.f32 %v2865, %v3000
      %v3002 = vpop.f32.mrb[0].mxu0
      %v3003 = vpop.f32.mrb[0].mxu0
      %v3004 = vadd.f32 %v2865, %v3003
      %v3005 = vpop.f32.mrb[0].mxu0
      %3006 = vmatprep.mubr.bf16.mxu0 0
      %3007 = vmatmul.mubr.bf16.gmra.mrb[0].mxu0 %v1978
      %v3008 = vpop.f32.mrb[0].mxu0
      %v3009 = vadd.f32 %v2865, %v3008
      %v3010 = vpop.f32.mrb[0].mxu0
      %v3011 = vpop.f32.mrb[0].mxu0
      %v3012 = vadd.f32 %v2865, %v3011
      %v3013 = vpop.f32.mrb[0].mxu0
      %3014 = vmatprep.mubr.bf16.mxu0 0
      %3015 = vmatmul.mubr.bf16.gmra.mrb[0].mxu0 %v1981
      %v3016 = vpop.f32.mrb[0].mxu0
      %v3017 = vadd.f32 %v2865, %v3016
      %v3018 = vpop.f32.mrb[0].mxu0
      %v3019 = vpop.f32.mrb[0].mxu0
      %v3020 = vadd.f32 %v2865, %v3019
      %v3021 = vpop.f32.mrb[0].mxu0
      %3022 = vmatprep.mubr.bf16.mxu0 0
      %3023 = vmatmul.mubr.bf16.gmra.mrb[0].mxu0 %v1984
      %v3024 = vpop.f32.mrb[0].mxu0
      %v3025 = vadd.f32 %v2865, %v3024
      %v3026 = vpop.f32.mrb[0].mxu0
      %v3027 = vpop.f32.mrb[0].mxu0
      %v3028 = vadd.f32 %v2865, %v3027
      %v3029 = vpop.f32.mrb[0].mxu0
      %3030 = vmatprep.mubr.bf16.mxu0 0
      %3031 = vmatmul.mubr.bf16.gmra.mrb[0].mxu0 %v1987
      %v3032 = vpop.f32.mrb[0].mxu0
      %v3033 = vadd.f32 %v2865, %v3032
      %v3034 = vpop.f32.mrb[0].mxu0
      %v3035 = vpop.f32.mrb[0].mxu0
      %v3036 = vadd.f32 %v2865, %v3035
      %v3037 = vpop.f32.mrb[0].mxu0
      %3038 = vmatprep.mubr.bf16.mxu0 0
      %3039 = vmatmul.mubr.bf16.gmra.mrb[0].mxu0 %v1990
      %v3040 = vpop.f32.mrb[0].mxu0
      %v3041 = vadd.f32 %v2865, %v3040
      %v3042 = vpop.f32.mrb[0].mxu0
      %v3043 = vpop.f32.mrb[0].mxu0
      %v3044 = vadd.f32 %v2865, %v3043
      %v3045 = vpop.f32.mrb[0].mxu0
      %3046 = vmatprep.mubr.bf16.mxu0 0
      %3047 = vmatmul.mubr.bf16.gmra.mrb[0].mxu0 %v1993
      %v3048 = vpop.f32.mrb[0].mxu0
      %v3049 = vadd.f32 %v2865, %v3048
      %v3050 = vpop.f32.mrb[0].mxu0
      %v3051 = vpop.f32.mrb[0].mxu0
      %v3052 = vadd.f32 %v2865, %v3051
      %v3053 = vpop.f32.mrb[0].mxu0
      %3054 = vmatprep.mubr.bf16.mxu0 0
      %3055 = vmatmul.mubr.bf16.gmra.mrb[0].mxu0 %v1996
      %v3056 = vpop.f32.mrb[0].mxu0
      %v3057 = vadd.f32 %v2865, %v3056
      %v3058 = vpop.f32.mrb[0].mxu0
      %v3059 = vpop.f32.mrb[0].mxu0
      %v3060 = vadd.f32 %v2865, %v3059
      %v3061 = vpop.f32.mrb[0].mxu0
      %3062 = vmatprep.mubr.bf16.mxu0 0
      %3063 = vmatmul.mubr.bf16.gmra.mrb[0].mxu0 %v1999
      %v3064 = vpop.f32.mrb[0].mxu0
      %v3065 = vadd.f32 %v2865, %v3064
      %v3066 = vpop.f32.mrb[0].mxu0
      %v3067 = vpop.f32.mrb[0].mxu0
      %v3068 = vadd.f32 %v2865, %v3067
      %v3069 = vpop.f32.mrb[0].mxu0
      %3070 = vmatprep.mubr.bf16.mxu0 0
      %3071 = vmatmul.mubr.bf16.gmra.mrb[0].mxu0 %v2002
      %v3072 = vpop.f32.mrb[0].mxu0
      %v3073 = vadd.f32 %v2865, %v3072
      %v3074 = vpop.f32.mrb[0].mxu0
      %v3075 = vpop.f32.mrb[0].mxu0
      %v3076 = vadd.f32 %v2865, %v3075
      %v3077 = vpop.f32.mrb[0].mxu0
      %3078 = vmatprep.mubr.bf16.mxu0 0
      %3079 = vmatmul.mubr.bf16.gmra.mrb[0].mxu0 %v2005
      %v3080 = vpop.f32.mrb[0].mxu0
      %v3081 = vadd.f32 %v2865, %v3080
      %v3082 = vpop.f32.mrb[0].mxu0
      %v3083 = vpop.f32.mrb[0].mxu0
      %v3084 = vadd.f32 %v2865, %v3083
      %v3085 = vpop.f32.mrb[0].mxu0
      %3086 = vmatprep.mubr.bf16.mxu0 0
      %3087 = vmatmul.mubr.bf16.gmra.mrb[0].mxu0 %v2008
      %v3088 = vpop.f32.mrb[0].mxu0
      %v3089 = vadd.f32 %v2865, %v3088
      %v3090 = vpop.f32.mrb[0].mxu0
      %v3091 = vpop.f32.mrb[0].mxu0
      %v3092 = vadd.f32 %v2865, %v3091
      %v3093 = vpop.f32.mrb[0].mxu0
      %3094 = vmatprep.mubr.bf16.mxu0 0
      %3095 = vmatmul.mubr.bf16.gmra.mrb[0].mxu0 %v2011
      %v3096 = vpop.f32.mrb[0].mxu0
      %v3097 = vadd.f32 %v2865, %v3096
      %v3098 = vpop.f32.mrb[0].mxu0
      %v3099 = vpop.f32.mrb[0].mxu0
      %v3100 = vadd.f32 %v2865, %v3099
      %v3101 = vpop.f32.mrb[0].mxu0
      %3102 = vdwg.mxu0
      %v3103 = vadd.f32 %v2809, %v2905
      %v3104 = vadd.f32 %v2810, %v2908
      %v3105 = vadd.f32 %v2811, %v2913
      %v3106 = vadd.f32 %v2812, %v2916
      %v3107 = vadd.f32 %v2813, %v2921
      %v3108 = vadd.f32 %v2814, %v2924
      %v3109 = vadd.f32 %v2815, %v2929
      %v3110 = vadd.f32 %v2816, %v2932
      %v3111 = vadd.f32 %v2817, %v2937
      %v3112 = vadd.f32 %v2818, %v2940
      %v3113 = vadd.f32 %v2819, %v2945
      %v3114 = vadd.f32 %v2820, %v2948
      %v3115 = vadd.f32 %v2821, %v2953
      %v3116 = vadd.f32 %v2822, %v2956
      %v3117 = vadd.f32 %v2823, %v2961
      %v3118 = vadd.f32 %v2824, %v2964
      %v3119 = vadd.f32 %v2825, %v2969
      %v3120 = vadd.f32 %v2826, %v2972
      %v3121 = vadd.f32 %v2827, %v2977
      %v3122 = vadd.f32 %v2828, %v2980
      %v3123 = vadd.f32 %v2829, %v2985
      %v3124 = vadd.f32 %v2830, %v2988
      %v3125 = vadd.f32 %v2831, %v2993
      %v3126 = vadd.f32 %v2832, %v2996
      %v3127 = vadd.f32 %v2833, %v3001
      %v3128 = vadd.f32 %v2834, %v3004
      %v3129 = vadd.f32 %v2835, %v3009
      %v3130 = vadd.f32 %v2836, %v3012
      %v3131 = vadd.f32 %v2837, %v3017
      %v3132 = vadd.f32 %v2838, %v3020
      %v3133 = vadd.f32 %v2839, %v3025
      %v3134 = vadd.f32 %v2840, %v3028
      %v3135 = vadd.f32 %v2841, %v3033
      %v3136 = vadd.f32 %v2842, %v3036
      %v3137 = vadd.f32 %v2843, %v3041
      %v3138 = vadd.f32 %v2844, %v3044
      %v3139 = vadd.f32 %v2845, %v3049
      %v3140 = vadd.f32 %v2846, %v3052
      %v3141 = vadd.f32 %v2847, %v3057
      %v3142 = vadd.f32 %v2848, %v3060
      %v3143 = vadd.f32 %v2849, %v3065
      %v3144 = vadd.f32 %v2850, %v3068
      %v3145 = vadd.f32 %v2851, %v3073
      %v3146 = vadd.f32 %v2852, %v3076
      %v3147 = vadd.f32 %v2853, %v3081
      %v3148 = vadd.f32 %v2854, %v3084
      %v3149 = vadd.f32 %v2855, %v3089
      %v3150 = vadd.f32 %v2856, %v3092
      %v3151 = vadd.f32 %v2857, %v3097
      %v3152 = vadd.f32 %v2858, %v3100
      %v3153 = vmax.f32 %v3103, 0.0
      %v3154 = vmax.f32 %v3104, 0.0
      %v3155 = vmax.f32 %v3105, 0.0
      %v3156 = vmax.f32 %v3106, 0.0
      %v3157 = vmax.f32 %v3107, 0.0
      %v3158 = vmax.f32 %v3108, 0.0
      %v3159 = vmax.f32 %v3109, 0.0
      %v3160 = vmax.f32 %v3110, 0.0
      %v3161 = vmax.f32 %v3111, 0.0
      %v3162 = vmax.f32 %v3112, 0.0
      %v3163 = vmax.f32 %v3113, 0.0
      %v3164 = vmax.f32 %v3114, 0.0
      %v3165 = vmax.f32 %v3115, 0.0
      %v3166 = vmax.f32 %v3116, 0.0
      %v3167 = vmax.f32 %v3117, 0.0
      %v3168 = vmax.f32 %v3118, 0.0
      %v3169 = vmax.f32 %v3119, 0.0
      %v3170 = vmax.f32 %v3120, 0.0
      %v3171 = vmax.f32 %v3121, 0.0
      %v3172 = vmax.f32 %v3122, 0.0
      %v3173 = vmax.f32 %v3123, 0.0
      %v3174 = vmax.f32 %v3124, 0.0
      %v3175 = vmax.f32 %v3125, 0.0
      %v3176 = vmax.f32 %v3126, 0.0
      %v3177 = vmax.f32 %v3127, 0.0
      %v3178 = vmax.f32 %v3128, 0.0
      %v3179 = vmax.f32 %v3129, 0.0
      %v3180 = vmax.f32 %v3130, 0.0
      %v3181 = vmax.f32 %v3131, 0.0
      %v3182 = vmax.f32 %v3132, 0.0
      %v3183 = vmax.f32 %v3133, 0.0
      %v3184 = vmax.f32 %v3134, 0.0
      %v3185 = vmax.f32 %v3135, 0.0
      %v3186 = vmax.f32 %v3136, 0.0
      %v3187 = vmax.f32 %v3137, 0.0
      %v3188 = vmax.f32 %v3138, 0.0
      %v3189 = vmax.f32 %v3139, 0.0
      %v3190 = vmax.f32 %v3140, 0.0
      %v3191 = vmax.f32 %v3141, 0.0
      %v3192 = vmax.f32 %v3142, 0.0
      %v3193 = vmax.f32 %v3143, 0.0
      %v3194 = vmax.f32 %v3144, 0.0
      %v3195 = vmax.f32 %v3145, 0.0
      %v3196 = vmax.f32 %v3146, 0.0
      %v3197 = vmax.f32 %v3147, 0.0
      %v3198 = vmax.f32 %v3148, 0.0
      %v3199 = vmax.f32 %v3149, 0.0
      %v3200 = vmax.f32 %v3150, 0.0
      %v3201 = vmax.f32 %v3151, 0.0
      %v3202 = vmax.f32 %v3152, 0.0
      %v3203 = vpack.c.bf16 %v3154, %v3153
      %v3204 = vpack.c.bf16 %v3156, %v3155
      %v3205 = vpack.c.bf16 %v3158, %v3157
      %v3206 = vpack.c.bf16 %v3160, %v3159
      %v3207 = vpack.c.bf16 %v3162, %v3161
      %v3208 = vpack.c.bf16 %v3164, %v3163
      %v3209 = vpack.c.bf16 %v3166, %v3165
      %v3210 = vpack.c.bf16 %v3168, %v3167
      %v3211 = vpack.c.bf16 %v3170, %v3169
      %v3212 = vpack.c.bf16 %v3172, %v3171
      %v3213 = vpack.c.bf16 %v3174, %v3173
      %v3214 = vpack.c.bf16 %v3176, %v3175
      %v3215 = vpack.c.bf16 %v3178, %v3177
      %v3216 = vpack.c.bf16 %v3180, %v3179
      %v3217 = vpack.c.bf16 %v3182, %v3181
      %v3218 = vpack.c.bf16 %v3184, %v3183
      %v3219 = vpack.c.bf16 %v3186, %v3185
      %v3220 = vpack.c.bf16 %v3188, %v3187
      %v3221 = vpack.c.bf16 %v3190, %v3189
      %v3222 = vpack.c.bf16 %v3192, %v3191
      %v3223 = vpack.c.bf16 %v3194, %v3193
      %v3224 = vpack.c.bf16 %v3196, %v3195
      %v3225 = vpack.c.bf16 %v3198, %v3197
      %v3226 = vpack.c.bf16 %v3200, %v3199
      %v3227 = vpack.c.bf16 %v3202, %v3201
      %v3253 = vunpack.c.l.b16 %v3203
      %v3254 = vunpack.c.h.b16 %v3203
      %v3255 = vunpack.c.l.b16 %v3204
      %v3256 = vunpack.c.h.b16 %v3204
      %v3257 = vunpack.c.l.b16 %v3205
      %v3258 = vunpack.c.h.b16 %v3205
      %v3259 = vunpack.c.l.b16 %v3206
      %v3260 = vunpack.c.h.b16 %v3206
      %v3261 = vunpack.c.l.b16 %v3207
      %v3262 = vunpack.c.h.b16 %v3207
      %v3263 = vunpack.c.l.b16 %v3208
      %v3264 = vunpack.c.h.b16 %v3208
      %v3265 = vunpack.c.l.b16 %v3209
      %v3266 = vunpack.c.h.b16 %v3209
      %v3267 = vunpack.c.l.b16 %v3210
      %v3268 = vunpack.c.h.b16 %v3210
      %v3269 = vunpack.c.l.b16 %v3211
      %v3270 = vunpack.c.h.b16 %v3211
      %v3271 = vunpack.c.l.b16 %v3212
      %v3272 = vunpack.c.h.b16 %v3212
      %v3273 = vunpack.c.l.b16 %v3213
      %v3274 = vunpack.c.h.b16 %v3213
      %v3275 = vunpack.c.l.b16 %v3214
      %v3276 = vunpack.c.h.b16 %v3214
      %v3277 = vunpack.c.l.b16 %v3215
      %v3278 = vunpack.c.h.b16 %v3215
      %v3279 = vunpack.c.l.b16 %v3216
      %v3280 = vunpack.c.h.b16 %v3216
      %v3281 = vunpack.c.l.b16 %v3217
      %v3282 = vunpack.c.h.b16 %v3217
      %v3283 = vunpack.c.l.b16 %v3218
      %v3284 = vunpack.c.h.b16 %v3218
      %v3285 = vunpack.c.l.b16 %v3219
      %v3286 = vunpack.c.h.b16 %v3219
      %v3287 = vunpack.c.l.b16 %v3220
      %v3288 = vunpack.c.h.b16 %v3220
      %v3289 = vunpack.c.l.b16 %v3221
      %v3290 = vunpack.c.h.b16 %v3221
      %v3291 = vunpack.c.l.b16 %v3222
      %v3292 = vunpack.c.h.b16 %v3222
      %v3293 = vunpack.c.l.b16 %v3223
      %v3294 = vunpack.c.h.b16 %v3223
      %v3295 = vunpack.c.l.b16 %v3224
      %v3296 = vunpack.c.h.b16 %v3224
      %v3297 = vunpack.c.l.b16 %v3225
      %v3298 = vunpack.c.h.b16 %v3225
      %v3299 = vunpack.c.l.b16 %v3226
      %v3300 = vunpack.c.h.b16 %v3226
      %v3301 = vunpack.c.l.b16 %v3227
      %v3302 = vunpack.c.h.b16 %v3227
      %v3303 = vpack.c.b16 %v3253, %v3253
      %v3304 = vpack.c.b16 %v3254, %v3254
      %v3305 = vpack.c.b16 %v3255, %v3255
      %v3306 = vpack.c.b16 %v3256, %v3256
      %v3307 = vpack.c.b16 %v3257, %v3257
      %v3308 = vpack.c.b16 %v3258, %v3258
      %v3309 = vpack.c.b16 %v3259, %v3259
      %v3310 = vpack.c.b16 %v3260, %v3260
      %v3311 = vpack.c.b16 %v3261, %v3261
      %v3312 = vpack.c.b16 %v3262, %v3262
      %v3313 = vpack.c.b16 %v3263, %v3263
      %v3314 = vpack.c.b16 %v3264, %v3264
      %v3315 = vpack.c.b16 %v3265, %v3265
      %v3316 = vpack.c.b16 %v3266, %v3266
      %v3317 = vpack.c.b16 %v3267, %v3267
      %v3318 = vpack.c.b16 %v3268, %v3268
      %v3319 = vpack.c.b16 %v3269, %v3269
      %v3320 = vpack.c.b16 %v3270, %v3270
      %v3321 = vpack.c.b16 %v3271, %v3271
      %v3322 = vpack.c.b16 %v3272, %v3272
      %v3323 = vpack.c.b16 %v3273, %v3273
      %v3324 = vpack.c.b16 %v3274, %v3274
      %v3325 = vpack.c.b16 %v3275, %v3275
      %v3326 = vpack.c.b16 %v3276, %v3276
      %v3327 = vpack.c.b16 %v3277, %v3277
      %v3328 = vpack.c.b16 %v3278, %v3278
      %v3329 = vpack.c.b16 %v3279, %v3279
      %v3330 = vpack.c.b16 %v3280, %v3280
      %v3331 = vpack.c.b16 %v3281, %v3281
      %v3332 = vpack.c.b16 %v3282, %v3282
      %v3333 = vpack.c.b16 %v3283, %v3283
      %v3334 = vpack.c.b16 %v3284, %v3284
      %v3335 = vpack.c.b16 %v3285, %v3285
      %v3336 = vpack.c.b16 %v3286, %v3286
      %v3337 = vpack.c.b16 %v3287, %v3287
      %v3338 = vpack.c.b16 %v3288, %v3288
      %v3339 = vpack.c.b16 %v3289, %v3289
      %v3340 = vpack.c.b16 %v3290, %v3290
      %v3341 = vpack.c.b16 %v3291, %v3291
      %v3342 = vpack.c.b16 %v3292, %v3292
      %v3343 = vpack.c.b16 %v3293, %v3293
      %v3344 = vpack.c.b16 %v3294, %v3294
      %v3345 = vpack.c.b16 %v3295, %v3295
      %v3346 = vpack.c.b16 %v3296, %v3296
      %v3347 = vpack.c.b16 %v3297, %v3297
      %v3348 = vpack.c.b16 %v3298, %v3298
      %v3349 = vpack.c.b16 %v3299, %v3299
      %v3350 = vpack.c.b16 %v3300, %v3300
      %v3351 = vpack.c.b16 %v3301, %v3301
      %v3352 = vpack.c.b16 %v3302, %v3302
      %vm3403 = vcmask 60416
      %3404 = vst.msk [vmem:[%s496] sm:$0xf] %vm3403, %v3303
      %3405 = vst.msk [vmem:[%s496 + $0x4] sm:$0xf] %vm3403, %v3304
      %3406 = vst.msk [vmem:[%s496 + $0x8] sm:$0xf] %vm3403, %v3305
      %3407 = vst.msk [vmem:[%s496 + $0xc] sm:$0xf] %vm3403, %v3306
      %3408 = vst.msk [vmem:[%s496 + $0x10] sm:$0xf] %vm3403, %v3307
      %3409 = vst.msk [vmem:[%s496 + $0x14] sm:$0xf] %vm3403, %v3308
      %3410 = vst.msk [vmem:[%s496 + $0x18] sm:$0xf] %vm3403, %v3309
      %3411 = vst.msk [vmem:[%s496 + $0x1c] sm:$0xf] %vm3403, %v3310
      %3412 = vst.msk [vmem:[%s496 + $0x20] sm:$0xf] %vm3403, %v3311
      %3413 = vst.msk [vmem:[%s496 + $0x24] sm:$0xf] %vm3403, %v3312
      %3414 = vst.msk [vmem:[%s496 + $0x28] sm:$0xf] %vm3403, %v3313
      %3415 = vst.msk [vmem:[%s496 + $0x2c] sm:$0xf] %vm3403, %v3314
      %3416 = vst.msk [vmem:[%s496 + $0x30] sm:$0xf] %vm3403, %v3315
      %3417 = vst.msk [vmem:[%s496 + $0x34] sm:$0xf] %vm3403, %v3316
      %3418 = vst.msk [vmem:[%s496 + $0x38] sm:$0xf] %vm3403, %v3317
      %3419 = vst.msk [vmem:[%s496 + $0x3c] sm:$0xf] %vm3403, %v3318
      %3420 = vst.msk [vmem:[%s496 + $0x40] sm:$0xf] %vm3403, %v3319
      %3421 = vst.msk [vmem:[%s496 + $0x44] sm:$0xf] %vm3403, %v3320
      %3422 = vst.msk [vmem:[%s496 + $0x48] sm:$0xf] %vm3403, %v3321
      %3423 = vst.msk [vmem:[%s496 + $0x4c] sm:$0xf] %vm3403, %v3322
      %3424 = vst.msk [vmem:[%s496 + $0x50] sm:$0xf] %vm3403, %v3323
      %3425 = vst.msk [vmem:[%s496 + $0x54] sm:$0xf] %vm3403, %v3324
      %3426 = vst.msk [vmem:[%s496 + $0x58] sm:$0xf] %vm3403, %v3325
      %3427 = vst.msk [vmem:[%s496 + $0x5c] sm:$0xf] %vm3403, %v3326
      %3428 = vst.msk [vmem:[%s496 + $0x60] sm:$0xf] %vm3403, %v3327
      %3429 = vst.msk [vmem:[%s496 + $0x64] sm:$0xf] %vm3403, %v3328
      %3430 = vst.msk [vmem:[%s496 + $0x68] sm:$0xf] %vm3403, %v3329
      %3431 = vst.msk [vmem:[%s496 + $0x6c] sm:$0xf] %vm3403, %v3330
      %3432 = vst.msk [vmem:[%s496 + $0x70] sm:$0xf] %vm3403, %v3331
      %3433 = vst.msk [vmem:[%s496 + $0x74] sm:$0xf] %vm3403, %v3332
      %3434 = vst.msk [vmem:[%s496 + $0x78] sm:$0xf] %vm3403, %v3333
      %3435 = vst.msk [vmem:[%s496 + $0x7c] sm:$0xf] %vm3403, %v3334
      %3436 = vst.msk [vmem:[%s496 + $0x80] sm:$0xf] %vm3403, %v3335
      %3437 = vst.msk [vmem:[%s496 + $0x84] sm:$0xf] %vm3403, %v3336
      %3438 = vst.msk [vmem:[%s496 + $0x88] sm:$0xf] %vm3403, %v3337
      %3439 = vst.msk [vmem:[%s496 + $0x8c] sm:$0xf] %vm3403, %v3338
      %3440 = vst.msk [vmem:[%s496 + $0x90] sm:$0xf] %vm3403, %v3339
      %3441 = vst.msk [vmem:[%s496 + $0x94] sm:$0xf] %vm3403, %v3340
      %3442 = vst.msk [vmem:[%s496 + $0x98] sm:$0xf] %vm3403, %v3341
      %3443 = vst.msk [vmem:[%s496 + $0x9c] sm:$0xf] %vm3403, %v3342
      %3444 = vst.msk [vmem:[%s496 + $0xa0] sm:$0xf] %vm3403, %v3343
      %3445 = vst.msk [vmem:[%s496 + $0xa4] sm:$0xf] %vm3403, %v3344
      %3446 = vst.msk [vmem:[%s496 + $0xa8] sm:$0xf] %vm3403, %v3345
      %3447 = vst.msk [vmem:[%s496 + $0xac] sm:$0xf] %vm3403, %v3346
      %3448 = vst.msk [vmem:[%s496 + $0xb0] sm:$0xf] %vm3403, %v3347
      %3449 = vst.msk [vmem:[%s496 + $0xb4] sm:$0xf] %vm3403, %v3348
      %3450 = vst.msk [vmem:[%s496 + $0xb8] sm:$0xf] %vm3403, %v3349
      %3451 = vst.msk [vmem:[%s496 + $0xbc] sm:$0xf] %vm3403, %v3350
      %3452 = vst.msk [vmem:[%s496 + $0xc0] sm:$0xf] %vm3403, %v3351
      %3453 = vst.msk [vmem:[%s496 + $0xc4] sm:$0xf] %vm3403, %v3352
      %s3454 = smul.u32 50, %s26
      %p3455 = scmp.lt.s32.totalorder %s3454, 99
      %s3456 = scalar_select %p3455, %s3454, 99
      %s3457 = smul.addr %s3456, 4
      %s3458 = scalar_lea.vmem %s15, %s3457
      // Predicated region
      $region81: #{tcn_gcn_unit_forward.1} parent=79 // pred_check
        %p3459 = pneg %p364
      $region82: #{tcn_gcn_unit_forward.1} parent=79 // pred_check_branch
        %3461 = sbr.rel (%p3459) target = $region84
      $region83: #{tcn_gcn_unit_forward.1} parent=79 // pred_region
        %s3462 = smul.u32 50, %s26
      $region84: #{tcn_gcn_unit_forward.1} parent=79 // pred_fallthru
        _
    $region80: #{tcn_gcn_unit_forward.1} parent=5 // pred_fallthru
      _
    %p3463 = scmp.le.s32.totalorder 2, %s21
    // Predicated region
    $region85: #{tcn_gcn_unit_forward.1} parent=5 // pred_check
      %p3464 = pneg %p3463
    $region86: #{tcn_gcn_unit_forward.1} parent=5 // pred_check_branch
      %3466 = sbr.rel (%p3464) target = $region88
    $region87: #{tcn_gcn_unit_forward.1} parent=5 // pred_region
      %s3467 = ssub.s32 %s21, 2
      // Predicated region
      $region89: #{tcn_gcn_unit_forward.1} parent=87 // pred_check
        %p3468 = pneg %p370
      $region90: #{tcn_gcn_unit_forward.1} parent=87 // pred_check_branch
        %3470 = sbr.rel (%p3468) target = $region92
      $region91: #{tcn_gcn_unit_forward.1} parent=87 // pred_region
        %s3471 = smul.u32 50, %s27
        %p3472 = scmp.lt.s32.totalorder %s3471, 99
        %s3473 = scalar_select %p3472, %s3471, 99
        %s3474 = smul.addr %s3473, 4
        %s3475 = scalar_lea.vmem %s15, %s3474
      $region92: #{tcn_gcn_unit_forward.1} parent=87 // pred_fallthru
        _
    $region88: #{tcn_gcn_unit_forward.1} parent=5 // pred_fallthru
      _
  $region6: #{tcn_gcn_unit_forward.1} parent=0 // loop_footer
    %s25 = sadd.s32 1, %s21
  $region7: #{tcn_gcn_unit_forward.1} parent=0 // loop_footer_branch
    %20 = sbr.rel target = $region3
  $region8: #{tcn_gcn_unit_forward.1} parent=0 // loop_exit
    _

</llo_original>
